<compile_context>
chip_gen: v7x
topology: tpu7x:2x2x1
jax: 0.10.0
libtpu: 0.0.40
codegen_flags: <defaults>
</compile_context>

<pallas_src>
import functools

import jax
import jax.numpy as jnp
from jax import lax
from jax.experimental import pallas as pl
from jax.experimental.pallas import tpu as pltpu

_MIB = 1024 * 1024


def _round_up(x, m):
    return -(-x // m) * m


def _largest_divisor_leq(n, cap):
    cap = max(1, min(n, cap))
    for d in range(cap, 0, -1):
        if n % d == 0:
            return d
    return 1


def _predict_head_kernel(x_ref, w1_ref, o_ref, *, inv_p, bblk):
    # x_ref : (bblk, C, tp)   f32  channels-first feature tile (cast to bf16 in-kernel)
    # w1_ref: (128, C)        bf16 1x1-conv weight in native (out, in) layout (resident)
    # o_ref : (bblk, 1, 128)  f32  pooled accumulator, resident across the P grid axis
    p = pl.program_id(1)

    @pl.when(p == 0)
    def _():
        o_ref[...] = jnp.zeros_like(o_ref)

    w1 = w1_ref[...]                                            # (128, C) bf16

    def body(b, carry):
        # Cast after DMA (features travel as f32; no separate XLA cast copy in HBM).
        xb = x_ref[b].astype(jnp.bfloat16)                      # (C, tp)
        # Conv2d(2048->128, 1x1, bias=False): MXU-natural (M,K)@(K,N), f32 accumulate.
        h = jnp.dot(w1, xb, preferred_element_type=jnp.float32)  # (128, tp)
        # Swish_Module: x * sigmoid(x)
        h = h * jax.nn.sigmoid(h)
        # Partial spatial sum for AdaptiveAvgPool2d((1,1)).
        s = jnp.sum(h, axis=1)                                  # (128,)
        o_ref[b] = o_ref[b] + s[None, :]
        return carry

    lax.fori_loop(0, bblk, body, 0)

    @pl.when(p == pl.num_programs(1) - 1)
    def _():
        o_ref[...] = o_ref[...] * inv_p                         # sum -> mean


def effnet_wind_predict_head(features_nchw, w1, bn_gamma, bn_beta, bn_mean, bn_var,
                             w2, b2, eps=1e-5):
    """features_nchw: (B, 2048, H, W) NCHW feature map (what `extract` would output).
       w1: (128, 2048) conv weight (PyTorch (out,in,1,1) squeezed)
       w2: (4, 128)    conv weight, b2: (4,) bias.
       Returns (B, 4, 1, 1) to match the PyTorch module output."""
    B, C, H, W = features_nchw.shape
    P = H * W

    # (B, C, H, W) -> (B, C, P): pure reshape, no HBM transpose, no dtype copy.
    x = features_nchw.reshape(B, C, P)
    in_bytes = jnp.dtype(x.dtype).itemsize
    w1_native = w1.astype(jnp.bfloat16)                          # (128, C), tiny one-off

    # ---- generation-aware block sizing -------------------------------------
    try:
        info = pltpu.get_tpu_info()
        vmem_capacity = int(getattr(info, "vmem_capacity_bytes", 64 * _MIB))
    except Exception:
        vmem_capacity = 64 * _MIB                                # conservative (v7x per-TC)
    block_budget = min(20 * _MIB, vmem_capacity // 5)            # per feature block

    p_padded = _round_up(P, 128)                                 # lane padding in VMEM
    bytes_per_img = C * p_padded * in_bytes

    if bytes_per_img <= block_budget:
        tp = P
        bblk = max(1, min(B, block_budget // bytes_per_img))
        if B >= 2:                                               # keep >=2 parallel steps (v7x)
            bblk = min(bblk, -(-B // 2))
        bblk = _largest_divisor_leq(B, bblk)                     # no batch padding/masking
        n_p = 1
    else:
        # One image exceeds the budget: tile the spatial axis with lane-aligned tiles
        # that divide P exactly (pooling is a sum, so splitting P is exact).
        bblk = 1
        max_tp = (block_budget // (C * in_bytes)) // 128 * 128
        tp = 0
        t = max(128, max_tp)
        while t >= 128:
            if P % t == 0:
                tp = t
                break
            t -= 128
        if tp == 0:
            # TODO(synk): no lane-aligned divisor of P fits the budget; fall back to full P.
            tp = P
        n_p = P // tp

    n_b = B // bblk
    x_block_bytes = bblk * C * _round_up(tp, 128) * in_bytes
    vmem_limit = int(min(max(vmem_capacity - 8 * _MIB, 32 * _MIB),
                         max(32 * _MIB, 2 * x_block_bytes + 8 * _MIB)))

    cost = pl.CostEstimate(
        flops=2 * B * P * C * 128,
        transcendentals=B * P * 128,
        bytes_accessed=B * C * P * in_bytes + C * 128 * 2 + B * 128 * 4,
    )

    kernel = functools.partial(_predict_head_kernel, inv_p=1.0 / P, bblk=bblk)

    pooled = pl.pallas_call(
        kernel,
        out_shape=jax.ShapeDtypeStruct((B, 1, 128), jnp.float32),
        grid_spec=pltpu.PrefetchScalarGridSpec(
            num_scalar_prefetch=0,
            grid=(n_b, n_p),
            in_specs=[
                pl.BlockSpec((bblk, C, tp), lambda b, p: (b, 0, p)),   # feature tile (f32)
                pl.BlockSpec((128, C), lambda b, p: (0, 0)),           # w1 resident (bf16)
            ],
            out_specs=pl.BlockSpec((bblk, 1, 128), lambda b, p: (b, 0, 0)),
        ),
        compiler_params=pltpu.CompilerParams(
            dimension_semantics=("parallel", "arbitrary"),
            vmem_limit_bytes=vmem_limit,
        ),
        cost_estimate=cost,
    )(x, w1_native)

    pooled = pooled[:, 0, :]                                     # (B, 128) f32

    # Fold eval-mode BatchNorm (affine commutes with the mean) + Conv2d(128->4, bias)
    # into a tiny epilogue matmul:
    #   mean(h*scale + shift) @ w2^T + b2 = mean(h) @ (scale[:,None]*w2^T) + (shift @ w2^T + b2)
    scale = (bn_gamma / jnp.sqrt(bn_var + eps)).astype(jnp.float32)   # (128,)
    shift = (bn_beta - bn_mean * scale).astype(jnp.float32)           # (128,)
    w2_t = jnp.transpose(w2).astype(jnp.float32)                      # (128, 4)
    w2_eff = scale[:, None] * w2_t                                    # (128, 4)
    b2_eff = shift @ w2_t + b2.astype(jnp.float32)                    # (4,)

    out = pooled @ w2_eff + b2_eff                                    # (B, 4)
    return out.reshape(B, 4, 1, 1)                                    # match PyTorch output


def _reference_head(features_nchw, w1, bn_gamma, bn_beta, bn_mean, bn_var, w2, b2, eps=1e-5):
    """Pure-JAX reference for the predict head (PyTorch eval-mode BN), using the same
       bf16 matmul precision as the kernel."""
    B, C, H, W = features_nchw.shape
    xt = jnp.transpose(features_nchw.reshape(B, C, H * W), (0, 2, 1)).astype(jnp.bfloat16)
    h = jnp.einsum("bpc,oc->bpo", xt, w1.astype(jnp.bfloat16),
                   preferred_element_type=jnp.float32)
    h = h * jax.nn.sigmoid(h)
    scale = bn_gamma / jnp.sqrt(bn_var + eps)
    shift = bn_beta - bn_mean * scale
    h = h * scale[None, None, :] + shift[None, None, :]
    pooled = jnp.mean(h, axis=1)                                      # (B, 128)
    out = pooled @ w2.astype(jnp.float32).T + b2
    return out.reshape(B, 4, 1, 1)


if __name__ == "__main__":
    key = jax.random.PRNGKey(0)
    k_feat, k_w1, k_g, k_b, k_m, k_v, k_w2, k_b2 = jax.random.split(key, 8)

    # Small, shape-consistent example: feature map that `extract` would emit
    # (B=2, C=2048 required by the predict head, tiny 4x4 spatial grid).
    B, C, H, W = 2, 2048, 4, 4
    features = jax.random.normal(k_feat, (B, C, H, W), dtype=jnp.float32)

    # Deterministic synthetic parameters (shapes from the module __init__).
    w1 = 0.02 * jax.random.normal(k_w1, (128, 2048), dtype=jnp.float32)   # Conv2d(2048,128,1,1,bias=False)
    bn_gamma = 1.0 + 0.1 * jax.random.normal(k_g, (128,), dtype=jnp.float32)
    bn_beta = 0.1 * jax.random.normal(k_b, (128,), dtype=jnp.float32)
    bn_mean = 0.1 * jax.random.normal(k_m, (128,), dtype=jnp.float32)
    bn_var = jnp.abs(1.0 + 0.1 * jax.random.normal(k_v, (128,), dtype=jnp.float32))
    w2 = 0.1 * jax.random.normal(k_w2, (4, 128), dtype=jnp.float32)       # Conv2d(128,4,1,1,bias=True)
    b2 = 0.1 * jax.random.normal(k_b2, (4,), dtype=jnp.float32)

    out = effnet_wind_predict_head(features, w1, bn_gamma, bn_beta, bn_mean, bn_var, w2, b2)
    out = jax.block_until_ready(out)

    ref = _reference_head(features, w1, bn_gamma, bn_beta, bn_mean, bn_var, w2, b2)
    assert out.shape == (B, 4, 1, 1), out.shape
    assert jnp.allclose(out, ref, atol=2e-3, rtol=2e-3), (out, ref)

    print("KERNEL_OK")
</pallas_src>

<mosaic_0001>
module attributes {stable_mosaic.version = 11 : i64} {
  func.func @_predict_head_kernel(%arg0: i32, %arg1: i32, %arg2: memref<1x2048x16xf32, #tpu.memory_space<vmem>>, %arg3: memref<128x2048xbf16, #tpu.memory_space<vmem>>, %arg4: memref<1x1x128xf32, #tpu.memory_space<vmem>>) attributes {dimension_semantics = [#tpu.dimension_semantics<parallel>, #tpu.dimension_semantics<arbitrary>], iteration_bounds = array<i64: 2, 1>, scalar_prefetch = 0 : i64, scratch_operands = 0 : i64, tpu.core_type = #tpu.core_type<tc>, window_params = [{transform_indices = @transform_0, window_bounds = array<i64: 1, 2048, 16>}, {pipeline_mode = #tpu.pipeline_mode<synchronous>, transform_indices = @transform_1, window_bounds = array<i64: 128, 2048>}, {transform_indices = @transform_2, window_bounds = array<i64: 1, 1, 128>}]} {
    %c0_i32 = arith.constant 0 : i32
    %0 = arith.cmpi eq, %arg1, %c0_i32 : i32
    %1 = arith.extui %0 : i1 to i32
    %c0_i32_0 = arith.constant 0 : i32
    %2 = arith.cmpi ne, %1, %c0_i32_0 : i32
    scf.if %2 {
      %cst_13 = arith.constant 0.000000e+00 : f32
      %28 = vector.broadcast %cst_13 : f32 to vector<1x1x128xf32>
      %c0_14 = arith.constant 0 : index
      %c0_15 = arith.constant 0 : index
      %c0_16 = arith.constant 0 : index
      %29 = vector.load %arg4[%c0_14, %c0_15, %c0_16] : memref<1x1x128xf32, #tpu.memory_space<vmem>>, vector<1x1x128xf32>
      tpu.vector_store %arg4[%c0_14, %c0_15, %c0_16], %28 {strides = array<i32>} : memref<1x1x128xf32, #tpu.memory_space<vmem>>, vector<1x1x128xf32>,
    } else {
    }
    %c0 = arith.constant 0 : index
    %c0_1 = arith.constant 0 : index
    %3 = vector.load %arg3[%c0, %c0_1] : memref<128x2048xbf16, #tpu.memory_space<vmem>>, vector<128x2048xbf16>
    %c0_i32_2 = arith.constant 0 : i32
    %4 = arith.index_cast %c0_i32_2 : i32 to index
    %c0_3 = arith.constant 0 : index
    %c0_4 = arith.constant 0 : index
    %5 = vector.load %arg2[%4, %c0_3, %c0_4] : memref<1x2048x16xf32, #tpu.memory_space<vmem>>, vector<1x2048x16xf32>
    %6 = vector.shape_cast %5 : vector<1x2048x16xf32> to vector<2048x16xf32>
    %7 = arith.truncf %6 : vector<2048x16xf32> to vector<2048x16xbf16>
    %cst = arith.constant dense<0.000000e+00> : vector<128x16xf32>
    %8 = tpu.matmul %3, %7, %cst {dimension_numbers = #tpu.dot_dimension_numbers<[1], [0], [0], [1], [0, 0, 1, 1], [], []>} : vector<128x2048xbf16>, vector<2048x16xbf16>, vector<128x16xf32> -> vector<128x16xf32>
    %9 = arith.negf %8 : vector<128x16xf32>
    %10 = math.exp %9 : vector<128x16xf32>
    %cst_5 = arith.constant 1.000000e+00 : f32
    %11 = vector.broadcast %cst_5 : f32 to vector<128x16xf32>
    %12 = arith.addf %11, %10 : vector<128x16xf32>
    %13 = arith.divf %11, %12 : vector<128x16xf32>
    %14 = arith.mulf %8, %13 : vector<128x16xf32>
    %cst_6 = arith.constant dense<0.000000e+00> : vector<128xf32>
    %15 = vector.multi_reduction <add>, %14, %cst_6 [1] : vector<128x16xf32> to vector<128xf32>
    %16 = arith.index_cast %c0_i32_2 : i32 to index
    %c0_7 = arith.constant 0 : index
    %c0_8 = arith.constant 0 : index
    %17 = vector.load %arg4[%16, %c0_7, %c0_8] : memref<1x1x128xf32, #tpu.memory_space<vmem>>, vector<1x1x128xf32>
    %18 = vector.shape_cast %17 : vector<1x1x128xf32> to vector<1x128xf32>
    %19 = vector.shape_cast %15 : vector<128xf32> to vector<1x128xf32>
    %20 = arith.addf %18, %19 : vector<1x128xf32>
    %21 = arith.index_cast %c0_i32_2 : i32 to index
    %c0_9 = arith.constant 0 : index
    %c0_10 = arith.constant 0 : index
    %22 = vector.load %arg4[%21, %c0_9, %c0_10] : memref<1x1x128xf32, #tpu.memory_space<vmem>>, vector<1x1x128xf32>
    %23 = vector.shape_cast %22 : vector<1x1x128xf32> to vector<1x128xf32>
    %24 = vector.shape_cast %20 : vector<1x128xf32> to vector<1x1x128xf32>
    tpu.vector_store %arg4[%21, %c0_9, %c0_10], %24 {strides = array<i32>} : memref<1x1x128xf32, #tpu.memory_space<vmem>>, vector<1x1x128xf32>,
    %c1_i32 = arith.constant 1 : i32
    %c0_i32_11 = arith.constant 0 : i32
    %25 = arith.cmpi eq, %arg1, %c0_i32_11 : i32
    %26 = arith.extui %25 : i1 to i32
    %c0_i32_12 = arith.constant 0 : i32
    %27 = arith.cmpi ne, %26, %c0_i32_12 : i32
    scf.if %27 {
      %c0_13 = arith.constant 0 : index
      %c0_14 = arith.constant 0 : index
      %c0_15 = arith.constant 0 : index
      %28 = vector.load %arg4[%c0_13, %c0_14, %c0_15] : memref<1x1x128xf32, #tpu.memory_space<vmem>>, vector<1x1x128xf32>
      %cst_16 = arith.constant 6.250000e-02 : f32
      %29 = vector.broadcast %cst_16 : f32 to vector<1x1x128xf32>
      %30 = arith.mulf %28, %29 : vector<1x1x128xf32>
      %c0_17 = arith.constant 0 : index
      %c0_18 = arith.constant 0 : index
      %c0_19 = arith.constant 0 : index
      %31 = vector.load %arg4[%c0_17, %c0_18, %c0_19] : memref<1x1x128xf32, #tpu.memory_space<vmem>>, vector<1x1x128xf32>
      tpu.vector_store %arg4[%c0_17, %c0_18, %c0_19], %30 {strides = array<i32>} : memref<1x1x128xf32, #tpu.memory_space<vmem>>, vector<1x1x128xf32>,
    } else {
    }
    return
  }
  func.func @transform_0(%arg0: i32, %arg1: i32) -> (i32, i32, i32) {
    %c0_i32 = arith.constant 0 : i32
    %c0_i32_0 = arith.constant 0 : i32
    return %arg0, %c0_i32, %arg1 : i32, i32, i32
  }
  func.func @transform_1(%arg0: i32, %arg1: i32) -> (i32, i32) {
    %c0_i32 = arith.constant 0 : i32
    %c0_i32_0 = arith.constant 0 : i32
    %c0_i32_1 = arith.constant 0 : i32
    return %c0_i32, %c0_i32_0 : i32, i32
  }
  func.func @transform_2(%arg0: i32, %arg1: i32) -> (i32, i32, i32) {
    %c0_i32 = arith.constant 0 : i32
    %c0_i32_0 = arith.constant 0 : i32
    %c0_i32_1 = arith.constant 0 : i32
    return %arg0, %c0_i32, %c0_i32_0 : i32, i32, i32
  }
}

</mosaic_0001>

<llo_original>
// kernel: tpu_custom_call.1
$region0: #{tpu_custom_call.1}
  #allocation0 [shape = 'u32[]', space=smem, size = 0x4, offset = 0x4, fixed_abs, tag = 'smem constant byte address 0x4 - core index']
  #allocation1 [shape = 'u32[144,128]{1,0:T(1,128)}', space=vmem, size = 0x12000, scoped, tag = 'internal scratch']
  %s0 = inlined_call_operand.vmem [shape: f32[2,2048,16], index: 0, kind: input, shape index: {}]
  %s1 = inlined_call_operand.vmem [shape: bf16[128,2048], index: 1, kind: input, shape index: {}]
  %s2 = inlined_call_operand.hbm [shape: f32[2,1,128], index: 2, kind: output, shape index: {}]
  %s3 = sld [smem:[#allocation0]]
  $region49: #{tpu_custom_call.1} parent=0
    _
  %s5 = ssub.s32 1, %s3
  %s6 = scalar_select 0, %s5, %s3
  $region1: #{tpu_custom_call.1} parent=0
    #allocation2 [shape = 'u8[1024]{0}', space=vmem, size = 0x400, scoped, tag = 'output window, operand 0']
    #allocation3 [shape = 's32[2]{0}', space=sflag, size = 0x8, scoped, tag = 'scoped memory for tpu_custom_call.1']
    %7 = vsyncpa [#allocation3], 0
    %s8 = scalar_lea.sflag [#allocation3], 1
    %9 = vsyncpa %s8, 0
    loop: start=0, step=1, limit=4
    $region2: #{tpu_custom_call.1} parent=1 // loop_pre_header
      _
    $region3: #{tpu_custom_call.1} parent=1 // loop_header
      %s11 = sphi 0, %s15
      %p12 = scmp.ge.s32.totalorder %s11, 4
      %s18 = sphi 0, %s30
      %s19 = sphi 0, %s26
      %s20 = sphi 0, %s18
      %s21 = sphi 0, %s19
      %s22 = sphi 0, %s20
      %s23 = sphi 0, %s21
      %s35 = sphi 0, %s37
      %s38 = sphi 0, %s35
      %s39 = sphi 0, %s38
      %s55 = sphi 0, %s39
      %s59 = sphi 0, %s59
      %s61 = sphi 0, %s59
      %s62 = sphi 0, %s61
      %s76 = sphi 0, %s62
      %s82 = sphi 0, %s84
      %s85 = sphi 0, %s82
      %s86 = sphi 0, %s85
      %s102 = sphi 0, %s86
    $region4: #{tpu_custom_call.1} parent=1 // loop_header_branch
      %14 = sbr.rel (%p12) target = $region8
    $region5: #{tpu_custom_call.1} parent=1 // loop_body
      %s16 = ssub.s32 %s11, 1
      %s17 = ssub.s32 %s11, 2
      %s24 = sadd.s32 1, %s19
      %p25 = scmp.ge.s32.totalorder %s24, 1
      %s26 = scalar_select %p25, 0, %s24
      %s27 = sadd.s32 1, %s18
      %s28 = scalar_select %p25, %s27, %s18
      %p29 = scmp.ge.s32.totalorder %s28, 2
      %s30 = scalar_select %p29, 0, %s28
      %s31 = ssub.s32 %s18, %s30
      %s32 = ssub.s32 %s19, %s26
      %s33 = sor.u32 %s31, %s32
      %p34 = scmp.eq.s32.totalorder %s33, 0
      %s36 = sadd.s32 %s35, 1
      %s37 = scalar_select %p34, %s35, %s36
      %p40 = pneg %p34
      %p41 = scmp.eq.s32.totalorder %s11, 1
      %p42 = por %p40, %p41
      %p43 = scmp.ne.s32.totalorder %s35, %s38
      %p44 = scmp.eq.s32.totalorder %s11, 0
      %p45 = por %p43, %p44
      %p46 = scmp.ne.s32.totalorder %s35, %s38
      %p47 = scmp.eq.s32.totalorder %s16, 1
      %p48 = por %p46, %p47
      %p49 = scmp.ne.s32.totalorder %s38, %s39
      %p50 = scmp.eq.s32.totalorder %s16, 0
      %p51 = por %p49, %p50
      %p52 = scmp.ne.s32.totalorder %s38, %s39
      %p53 = scmp.eq.s32.totalorder %s17, 1
      %p54 = por %p52, %p53
      %p56 = scmp.ne.s32.totalorder %s39, %s55
      %p57 = scmp.eq.s32.totalorder %s17, 0
      %p58 = por %p56, %p57
      %s60 = sadd.s32 %s59, 1
      %p63 = scmp.eq.s32.totalorder %s11, 1
      %p64 = scmp.ne.s32.totalorder %s59, %s61
      %p65 = scmp.eq.s32.totalorder %s11, 0
      %p66 = por %p64, %p65
      %p67 = scmp.ne.s32.totalorder %s59, %s61
      %p68 = scmp.eq.s32.totalorder %s16, 1
      %p69 = por %p67, %p68
      %p70 = scmp.ne.s32.totalorder %s61, %s62
      %p71 = scmp.eq.s32.totalorder %s16, 0
      %p72 = por %p70, %p71
      %p73 = scmp.ne.s32.totalorder %s61, %s62
      %p74 = scmp.eq.s32.totalorder %s17, 1
      %p75 = por %p73, %p74
      %p77 = scmp.ne.s32.totalorder %s62, %s76
      %p78 = scmp.eq.s32.totalorder %s17, 0
      %p79 = por %p77, %p78
      %s80 = ssub.s32 %s18, %s30
      %p81 = scmp.eq.s32.totalorder %s80, 0
      %s83 = sadd.s32 %s82, 1
      %s84 = scalar_select %p81, %s82, %s83
      %p87 = pneg %p81
      %p88 = scmp.eq.s32.totalorder %s11, 1
      %p89 = por %p87, %p88
      %p90 = scmp.ne.s32.totalorder %s82, %s85
      %p91 = scmp.eq.s32.totalorder %s11, 0
      %p92 = por %p90, %p91
      %p93 = scmp.ne.s32.totalorder %s82, %s85
      %p94 = scmp.eq.s32.totalorder %s16, 1
      %p95 = por %p93, %p94
      %p96 = scmp.ne.s32.totalorder %s85, %s86
      %p97 = scmp.eq.s32.totalorder %s16, 0
      %p98 = por %p96, %p97
      %p99 = scmp.ne.s32.totalorder %s85, %s86
      %p100 = scmp.eq.s32.totalorder %s17, 1
      %p101 = por %p99, %p100
      %p103 = scmp.ne.s32.totalorder %s86, %s102
      %p104 = scmp.eq.s32.totalorder %s17, 0
      %p105 = por %p103, %p104
      %p106 = scmp.le.s32.totalorder 1, %s11
      %p107 = scmp.lt.s32.totalorder %s11, 3
      %p108 = pnand %p106, %p107
      %p109 = pneg %p108
      // Predicated region
      $region9: #{tpu_custom_call.1} parent=5 // pred_check
        _
      $region10: #{tpu_custom_call.1} parent=5 // pred_check_branch
        %111 = sbr.rel (%p108) target = $region12
      $region11: #{tpu_custom_call.1} parent=5 // pred_region
        %s112 = ssub.s32 %s11, 1
        // Predicated region
        $region13: #{tpu_custom_call.1} parent=11 // pred_check
          %p113 = pneg %p72
        $region14: #{tpu_custom_call.1} parent=11 // pred_check_branch
          %115 = sbr.rel (%p113) target = $region16
        $region15: #{tpu_custom_call.1} parent=11 // pred_region
          _
        $region16: #{tpu_custom_call.1} parent=11 // pred_fallthru
          _
      $region12: #{tpu_custom_call.1} parent=5 // pred_fallthru
        _
      %p116 = scmp.lt.s32.totalorder %s11, 2
      // Predicated region
      $region17: #{tpu_custom_call.1} parent=5 // pred_check
        %p117 = pneg %p116
      $region18: #{tpu_custom_call.1} parent=5 // pred_check_branch
        %119 = sbr.rel (%p117) target = $region20
      $region19: #{tpu_custom_call.1} parent=5 // pred_region
        // Predicated region
        $region21: #{tpu_custom_call.1} parent=19 // pred_check
          %p120 = pneg %p45
        $region22: #{tpu_custom_call.1} parent=19 // pred_check_branch
          %122 = sbr.rel (%p120) target = $region24
        $region23: #{tpu_custom_call.1} parent=19 // pred_region
          %p123 = scmp.lt.s32.totalorder %s18, 1
          %s124 = scalar_select %p123, %s18, 1
          %p125 = scmp.lt.s32.totalorder %s19, 0
          %s126 = scalar_select %p125, %s19, 0
          %s127 = smul.addr %s124, 256
          %s128 = sadd.s32 %s126, %s127
          %s129 = smul.addr %s128, 8
          %s130 = scalar_lea.vmem %s0, %s129
        $region24: #{tpu_custom_call.1} parent=19 // pred_fallthru
          _
      $region20: #{tpu_custom_call.1} parent=5 // pred_fallthru
        _
      %p131 = scmp.le.s32.totalorder 1, %s11
      %p132 = scmp.lt.s32.totalorder %s11, 3
      %p133 = pnand %p131, %p132
      %p134 = pneg %p133
      // Predicated region
      $region25: #{tpu_custom_call.1} parent=5 // pred_check
        _
      $region26: #{tpu_custom_call.1} parent=5 // pred_check_branch
        %136 = sbr.rel (%p133) target = $region28
      $region27: #{tpu_custom_call.1} parent=5 // pred_region
        %s137 = ssub.s32 %s11, 1
        %p138 = scmp.lt.s32.totalorder %s20, 1
        %s139 = scalar_select %p138, %s20, 1
        %p140 = scmp.lt.s32.totalorder %s21, 0
        %s141 = scalar_select %p140, %s21, 0
        %s142 = smul.addr %s139, 256
        %s143 = sadd.s32 %s141, %s142
        %s144 = smul.addr %s143, 8
        %s145 = scalar_lea.vmem %s0, %s144
        %p146 = pneg %p51
        %p147 = pneg %p48
        %p148 = pneg %p72
        %p149 = pneg %p69
        %p150 = pneg %p98
        %p151 = pneg %p95
        %s152 = sand.u32 %s85, 1
        %s153 = scalar_lea.sflag [#allocation3], %s152
        %s154 = sand.u32 %s85, 1
        %s155 = scalar_lea.vmem [#allocation2], %s154
        %p156 = scmp.lt.s32.totalorder %s20, 1
        %s157 = scalar_select %p156, %s20, 1
        %p158 = scmp.lt.s32.totalorder %s21, 0
        %s159 = scalar_select %p158, %s21, 0
        %s160 = smul.addr %s157, 256
        %s161 = sadd.s32 %s159, %s160
        %s162 = smul.addr %s161, 8
        %s163 = scalar_lea.vmem %s0, %s162
        %p165 = scmp.eq.s32.totalorder %s21, 0
        // Predicated region
        $region29: #{tpu_custom_call.1} parent=27 // pred_check
          %p166 = pneg %p165
        $region30: #{tpu_custom_call.1} parent=27 // pred_check_branch
          %168 = sbr.rel (%p166) target = $region32
        $region31: #{tpu_custom_call.1} parent=27 // pred_region
          %169 = vst [vmem:[%s155] sm:$0x1] 0.0
        $region32: #{tpu_custom_call.1} parent=27 // pred_fallthru
          _
        %v170 = vld [vmem:[%s1] sm:$0xff]
        %v171 = vld [vmem:[%s1 + $0x8] sm:$0xff]
        %v172 = vld [vmem:[%s1 + $0x10] sm:$0xff]
        %v173 = vld [vmem:[%s1 + $0x18] sm:$0xff]
        %v174 = vld [vmem:[%s1 + $0x20] sm:$0xff]
        %v175 = vld [vmem:[%s1 + $0x28] sm:$0xff]
        %v176 = vld [vmem:[%s1 + $0x30] sm:$0xff]
        %v177 = vld [vmem:[%s1 + $0x38] sm:$0xff]
        %v178 = vld [vmem:[%s1 + $0x40] sm:$0xff]
        %v179 = vld [vmem:[%s1 + $0x48] sm:$0xff]
        %v180 = vld [vmem:[%s1 + $0x50] sm:$0xff]
        %v181 = vld [vmem:[%s1 + $0x58] sm:$0xff]
        %v182 = vld [vmem:[%s1 + $0x60] sm:$0xff]
        %v183 = vld [vmem:[%s1 + $0x68] sm:$0xff]
        %v184 = vld [vmem:[%s1 + $0x70] sm:$0xff]
        %v185 = vld [vmem:[%s1 + $0x78] sm:$0xff]
        %v186 = vld [vmem:[%s1 + $0x80] sm:$0xff]
        %v187 = vld [vmem:[%s1 + $0x88] sm:$0xff]
        %v188 = vld [vmem:[%s1 + $0x90] sm:$0xff]
        %v189 = vld [vmem:[%s1 + $0x98] sm:$0xff]
        %v190 = vld [vmem:[%s1 + $0xa0] sm:$0xff]
        %v191 = vld [vmem:[%s1 + $0xa8] sm:$0xff]
        %v192 = vld [vmem:[%s1 + $0xb0] sm:$0xff]
        %v193 = vld [vmem:[%s1 + $0xb8] sm:$0xff]
        %v194 = vld [vmem:[%s1 + $0xc0] sm:$0xff]
        %v195 = vld [vmem:[%s1 + $0xc8] sm:$0xff]
        %v196 = vld [vmem:[%s1 + $0xd0] sm:$0xff]
        %v197 = vld [vmem:[%s1 + $0xd8] sm:$0xff]
        %v198 = vld [vmem:[%s1 + $0xe0] sm:$0xff]
        %v199 = vld [vmem:[%s1 + $0xe8] sm:$0xff]
        %v200 = vld [vmem:[%s1 + $0xf0] sm:$0xff]
        %v201 = vld [vmem:[%s1 + $0xf8] sm:$0xff]
        %v202 = vld [vmem:[%s1 + $0x100] sm:$0xff]
        %v203 = vld [vmem:[%s1 + $0x108] sm:$0xff]
        %v204 = vld [vmem:[%s1 + $0x110] sm:$0xff]
        %v205 = vld [vmem:[%s1 + $0x118] sm:$0xff]
        %v206 = vld [vmem:[%s1 + $0x120] sm:$0xff]
        %v207 = vld [vmem:[%s1 + $0x128] sm:$0xff]
        %v208 = vld [vmem:[%s1 + $0x130] sm:$0xff]
        %v209 = vld [vmem:[%s1 + $0x138] sm:$0xff]
        %v210 = vld [vmem:[%s1 + $0x140] sm:$0xff]
        %v211 = vld [vmem:[%s1 + $0x148] sm:$0xff]
        %v212 = vld [vmem:[%s1 + $0x150] sm:$0xff]
        %v213 = vld [vmem:[%s1 + $0x158] sm:$0xff]
        %v214 = vld [vmem:[%s1 + $0x160] sm:$0xff]
        %v215 = vld [vmem:[%s1 + $0x168] sm:$0xff]
        %v216 = vld [vmem:[%s1 + $0x170] sm:$0xff]
        %v217 = vld [vmem:[%s1 + $0x178] sm:$0xff]
        %v218 = vld [vmem:[%s1 + $0x180] sm:$0xff]
        %v219 = vld [vmem:[%s1 + $0x188] sm:$0xff]
        %v220 = vld [vmem:[%s1 + $0x190] sm:$0xff]
        %v221 = vld [vmem:[%s1 + $0x198] sm:$0xff]
        %v222 = vld [vmem:[%s1 + $0x1a0] sm:$0xff]
        %v223 = vld [vmem:[%s1 + $0x1a8] sm:$0xff]
        %v224 = vld [vmem:[%s1 + $0x1b0] sm:$0xff]
        %v225 = vld [vmem:[%s1 + $0x1b8] sm:$0xff]
        %v226 = vld [vmem:[%s1 + $0x1c0] sm:$0xff]
        %v227 = vld [vmem:[%s1 + $0x1c8] sm:$0xff]
        %v228 = vld [vmem:[%s1 + $0x1d0] sm:$0xff]
        %v229 = vld [vmem:[%s1 + $0x1d8] sm:$0xff]
        %v230 = vld [vmem:[%s1 + $0x1e0] sm:$0xff]
        %v231 = vld [vmem:[%s1 + $0x1e8] sm:$0xff]
        %v232 = vld [vmem:[%s1 + $0x1f0] sm:$0xff]
        %v233 = vld [vmem:[%s1 + $0x1f8] sm:$0xff]
        %v234 = vld [vmem:[%s1 + $0x200] sm:$0xff]
        %v235 = vld [vmem:[%s1 + $0x208] sm:$0xff]
        %v236 = vld [vmem:[%s1 + $0x210] sm:$0xff]
        %v237 = vld [vmem:[%s1 + $0x218] sm:$0xff]
        %v238 = vld [vmem:[%s1 + $0x220] sm:$0xff]
        %v239 = vld [vmem:[%s1 + $0x228] sm:$0xff]
        %v240 = vld [vmem:[%s1 + $0x230] sm:$0xff]
        %v241 = vld [vmem:[%s1 + $0x238] sm:$0xff]
        %v242 = vld [vmem:[%s1 + $0x240] sm:$0xff]
        %v243 = vld [vmem:[%s1 + $0x248] sm:$0xff]
        %v244 = vld [vmem:[%s1 + $0x250] sm:$0xff]
        %v245 = vld [vmem:[%s1 + $0x258] sm:$0xff]
        %v246 = vld [vmem:[%s1 + $0x260] sm:$0xff]
        %v247 = vld [vmem:[%s1 + $0x268] sm:$0xff]
        %v248 = vld [vmem:[%s1 + $0x270] sm:$0xff]
        %v249 = vld [vmem:[%s1 + $0x278] sm:$0xff]
        %v250 = vld [vmem:[%s1 + $0x280] sm:$0xff]
        %v251 = vld [vmem:[%s1 + $0x288] sm:$0xff]
        %v252 = vld [vmem:[%s1 + $0x290] sm:$0xff]
        %v253 = vld [vmem:[%s1 + $0x298] sm:$0xff]
        %v254 = vld [vmem:[%s1 + $0x2a0] sm:$0xff]
        %v255 = vld [vmem:[%s1 + $0x2a8] sm:$0xff]
        %v256 = vld [vmem:[%s1 + $0x2b0] sm:$0xff]
        %v257 = vld [vmem:[%s1 + $0x2b8] sm:$0xff]
        %v258 = vld [vmem:[%s1 + $0x2c0] sm:$0xff]
        %v259 = vld [vmem:[%s1 + $0x2c8] sm:$0xff]
        %v260 = vld [vmem:[%s1 + $0x2d0] sm:$0xff]
        %v261 = vld [vmem:[%s1 + $0x2d8] sm:$0xff]
        %v262 = vld [vmem:[%s1 + $0x2e0] sm:$0xff]
        %v263 = vld [vmem:[%s1 + $0x2e8] sm:$0xff]
        %v264 = vld [vmem:[%s1 + $0x2f0] sm:$0xff]
        %v265 = vld [vmem:[%s1 + $0x2f8] sm:$0xff]
        %v266 = vld [vmem:[%s1 + $0x300] sm:$0xff]
        %v267 = vld [vmem:[%s1 + $0x308] sm:$0xff]
        %v268 = vld [vmem:[%s1 + $0x310] sm:$0xff]
        %v269 = vld [vmem:[%s1 + $0x318] sm:$0xff]
        %v270 = vld [vmem:[%s1 + $0x320] sm:$0xff]
        %v271 = vld [vmem:[%s1 + $0x328] sm:$0xff]
        %v272 = vld [vmem:[%s1 + $0x330] sm:$0xff]
        %v273 = vld [vmem:[%s1 + $0x338] sm:$0xff]
        %v274 = vld [vmem:[%s1 + $0x340] sm:$0xff]
        %v275 = vld [vmem:[%s1 + $0x348] sm:$0xff]
        %v276 = vld [vmem:[%s1 + $0x350] sm:$0xff]
        %v277 = vld [vmem:[%s1 + $0x358] sm:$0xff]
        %v278 = vld [vmem:[%s1 + $0x360] sm:$0xff]
        %v279 = vld [vmem:[%s1 + $0x368] sm:$0xff]
        %v280 = vld [vmem:[%s1 + $0x370] sm:$0xff]
        %v281 = vld [vmem:[%s1 + $0x378] sm:$0xff]
        %v282 = vld [vmem:[%s1 + $0x380] sm:$0xff]
        %v283 = vld [vmem:[%s1 + $0x388] sm:$0xff]
        %v284 = vld [vmem:[%s1 + $0x390] sm:$0xff]
        %v285 = vld [vmem:[%s1 + $0x398] sm:$0xff]
        %v286 = vld [vmem:[%s1 + $0x3a0] sm:$0xff]
        %v287 = vld [vmem:[%s1 + $0x3a8] sm:$0xff]
        %v288 = vld [vmem:[%s1 + $0x3b0] sm:$0xff]
        %v289 = vld [vmem:[%s1 + $0x3b8] sm:$0xff]
        %v290 = vld [vmem:[%s1 + $0x3c0] sm:$0xff]
        %v291 = vld [vmem:[%s1 + $0x3c8] sm:$0xff]
        %v292 = vld [vmem:[%s1 + $0x3d0] sm:$0xff]
        %v293 = vld [vmem:[%s1 + $0x3d8] sm:$0xff]
        %v294 = vld [vmem:[%s1 + $0x3e0] sm:$0xff]
        %v295 = vld [vmem:[%s1 + $0x3e8] sm:$0xff]
        %v296 = vld [vmem:[%s1 + $0x3f0] sm:$0xff]
        %v297 = vld [vmem:[%s1 + $0x3f8] sm:$0xff]
        %v298 = vld [vmem:[%s163] sm:$0xff]
        %v299 = vld [vmem:[%s163 + $0x8] sm:$0xff]
        %v300 = vld [vmem:[%s163 + $0x10] sm:$0xff]
        %v301 = vld [vmem:[%s163 + $0x18] sm:$0xff]
        %v302 = vld [vmem:[%s163 + $0x20] sm:$0xff]
        %v303 = vld [vmem:[%s163 + $0x28] sm:$0xff]
        %v304 = vld [vmem:[%s163 + $0x30] sm:$0xff]
        %v305 = vld [vmem:[%s163 + $0x38] sm:$0xff]
        %v306 = vld [vmem:[%s163 + $0x40] sm:$0xff]
        %v307 = vld [vmem:[%s163 + $0x48] sm:$0xff]
        %v308 = vld [vmem:[%s163 + $0x50] sm:$0xff]
        %v309 = vld [vmem:[%s163 + $0x58] sm:$0xff]
        %v310 = vld [vmem:[%s163 + $0x60] sm:$0xff]
        %v311 = vld [vmem:[%s163 + $0x68] sm:$0xff]
        %v312 = vld [vmem:[%s163 + $0x70] sm:$0xff]
        %v313 = vld [vmem:[%s163 + $0x78] sm:$0xff]
        %v314 = vld [vmem:[%s163 + $0x80] sm:$0xff]
        %v315 = vld [vmem:[%s163 + $0x88] sm:$0xff]
        %v316 = vld [vmem:[%s163 + $0x90] sm:$0xff]
        %v317 = vld [vmem:[%s163 + $0x98] sm:$0xff]
        %v318 = vld [vmem:[%s163 + $0xa0] sm:$0xff]
        %v319 = vld [vmem:[%s163 + $0xa8] sm:$0xff]
        %v320 = vld [vmem:[%s163 + $0xb0] sm:$0xff]
        %v321 = vld [vmem:[%s163 + $0xb8] sm:$0xff]
        %v322 = vld [vmem:[%s163 + $0xc0] sm:$0xff]
        %v323 = vld [vmem:[%s163 + $0xc8] sm:$0xff]
        %v324 = vld [vmem:[%s163 + $0xd0] sm:$0xff]
        %v325 = vld [vmem:[%s163 + $0xd8] sm:$0xff]
        %v326 = vld [vmem:[%s163 + $0xe0] sm:$0xff]
        %v327 = vld [vmem:[%s163 + $0xe8] sm:$0xff]
        %v328 = vld [vmem:[%s163 + $0xf0] sm:$0xff]
        %v329 = vld [vmem:[%s163 + $0xf8] sm:$0xff]
        %v330 = vld [vmem:[%s163 + $0x100] sm:$0xff]
        %v331 = vld [vmem:[%s163 + $0x108] sm:$0xff]
        %v332 = vld [vmem:[%s163 + $0x110] sm:$0xff]
        %v333 = vld [vmem:[%s163 + $0x118] sm:$0xff]
        %v334 = vld [vmem:[%s163 + $0x120] sm:$0xff]
        %v335 = vld [vmem:[%s163 + $0x128] sm:$0xff]
        %v336 = vld [vmem:[%s163 + $0x130] sm:$0xff]
        %v337 = vld [vmem:[%s163 + $0x138] sm:$0xff]
        %v338 = vld [vmem:[%s163 + $0x140] sm:$0xff]
        %v339 = vld [vmem:[%s163 + $0x148] sm:$0xff]
        %v340 = vld [vmem:[%s163 + $0x150] sm:$0xff]
        %v341 = vld [vmem:[%s163 + $0x158] sm:$0xff]
        %v342 = vld [vmem:[%s163 + $0x160] sm:$0xff]
        %v343 = vld [vmem:[%s163 + $0x168] sm:$0xff]
        %v344 = vld [vmem:[%s163 + $0x170] sm:$0xff]
        %v345 = vld [vmem:[%s163 + $0x178] sm:$0xff]
        %v346 = vld [vmem:[%s163 + $0x180] sm:$0xff]
        %v347 = vld [vmem:[%s163 + $0x188] sm:$0xff]
        %v348 = vld [vmem:[%s163 + $0x190] sm:$0xff]
        %v349 = vld [vmem:[%s163 + $0x198] sm:$0xff]
        %v350 = vld [vmem:[%s163 + $0x1a0] sm:$0xff]
        %v351 = vld [vmem:[%s163 + $0x1a8] sm:$0xff]
        %v352 = vld [vmem:[%s163 + $0x1b0] sm:$0xff]
        %v353 = vld [vmem:[%s163 + $0x1b8] sm:$0xff]
        %v354 = vld [vmem:[%s163 + $0x1c0] sm:$0xff]
        %v355 = vld [vmem:[%s163 + $0x1c8] sm:$0xff]
        %v356 = vld [vmem:[%s163 + $0x1d0] sm:$0xff]
        %v357 = vld [vmem:[%s163 + $0x1d8] sm:$0xff]
        %v358 = vld [vmem:[%s163 + $0x1e0] sm:$0xff]
        %v359 = vld [vmem:[%s163 + $0x1e8] sm:$0xff]
        %v360 = vld [vmem:[%s163 + $0x1f0] sm:$0xff]
        %v361 = vld [vmem:[%s163 + $0x1f8] sm:$0xff]
        %v362 = vld [vmem:[%s163 + $0x200] sm:$0xff]
        %v363 = vld [vmem:[%s163 + $0x208] sm:$0xff]
        %v364 = vld [vmem:[%s163 + $0x210] sm:$0xff]
        %v365 = vld [vmem:[%s163 + $0x218] sm:$0xff]
        %v366 = vld [vmem:[%s163 + $0x220] sm:$0xff]
        %v367 = vld [vmem:[%s163 + $0x228] sm:$0xff]
        %v368 = vld [vmem:[%s163 + $0x230] sm:$0xff]
        %v369 = vld [vmem:[%s163 + $0x238] sm:$0xff]
        %v370 = vld [vmem:[%s163 + $0x240] sm:$0xff]
        %v371 = vld [vmem:[%s163 + $0x248] sm:$0xff]
        %v372 = vld [vmem:[%s163 + $0x250] sm:$0xff]
        %v373 = vld [vmem:[%s163 + $0x258] sm:$0xff]
        %v374 = vld [vmem:[%s163 + $0x260] sm:$0xff]
        %v375 = vld [vmem:[%s163 + $0x268] sm:$0xff]
        %v376 = vld [vmem:[%s163 + $0x270] sm:$0xff]
        %v377 = vld [vmem:[%s163 + $0x278] sm:$0xff]
        %v378 = vld [vmem:[%s163 + $0x280] sm:$0xff]
        %v379 = vld [vmem:[%s163 + $0x288] sm:$0xff]
        %v380 = vld [vmem:[%s163 + $0x290] sm:$0xff]
        %v381 = vld [vmem:[%s163 + $0x298] sm:$0xff]
        %v382 = vld [vmem:[%s163 + $0x2a0] sm:$0xff]
        %v383 = vld [vmem:[%s163 + $0x2a8] sm:$0xff]
        %v384 = vld [vmem:[%s163 + $0x2b0] sm:$0xff]
        %v385 = vld [vmem:[%s163 + $0x2b8] sm:$0xff]
        %v386 = vld [vmem:[%s163 + $0x2c0] sm:$0xff]
        %v387 = vld [vmem:[%s163 + $0x2c8] sm:$0xff]
        %v388 = vld [vmem:[%s163 + $0x2d0] sm:$0xff]
        %v389 = vld [vmem:[%s163 + $0x2d8] sm:$0xff]
        %v390 = vld [vmem:[%s163 + $0x2e0] sm:$0xff]
        %v391 = vld [vmem:[%s163 + $0x2e8] sm:$0xff]
        %v392 = vld [vmem:[%s163 + $0x2f0] sm:$0xff]
        %v393 = vld [vmem:[%s163 + $0x2f8] sm:$0xff]
        %v394 = vld [vmem:[%s163 + $0x300] sm:$0xff]
        %v395 = vld [vmem:[%s163 + $0x308] sm:$0xff]
        %v396 = vld [vmem:[%s163 + $0x310] sm:$0xff]
        %v397 = vld [vmem:[%s163 + $0x318] sm:$0xff]
        %v398 = vld [vmem:[%s163 + $0x320] sm:$0xff]
        %v399 = vld [vmem:[%s163 + $0x328] sm:$0xff]
        %v400 = vld [vmem:[%s163 + $0x330] sm:$0xff]
        %v401 = vld [vmem:[%s163 + $0x338] sm:$0xff]
        %v402 = vld [vmem:[%s163 + $0x340] sm:$0xff]
        %v403 = vld [vmem:[%s163 + $0x348] sm:$0xff]
        %v404 = vld [vmem:[%s163 + $0x350] sm:$0xff]
        %v405 = vld [vmem:[%s163 + $0x358] sm:$0xff]
        %v406 = vld [vmem:[%s163 + $0x360] sm:$0xff]
        %v407 = vld [vmem:[%s163 + $0x368] sm:$0xff]
        %v408 = vld [vmem:[%s163 + $0x370] sm:$0xff]
        %v409 = vld [vmem:[%s163 + $0x378] sm:$0xff]
        %v410 = vld [vmem:[%s163 + $0x380] sm:$0xff]
        %v411 = vld [vmem:[%s163 + $0x388] sm:$0xff]
        %v412 = vld [vmem:[%s163 + $0x390] sm:$0xff]
        %v413 = vld [vmem:[%s163 + $0x398] sm:$0xff]
        %v414 = vld [vmem:[%s163 + $0x3a0] sm:$0xff]
        %v415 = vld [vmem:[%s163 + $0x3a8] sm:$0xff]
        %v416 = vld [vmem:[%s163 + $0x3b0] sm:$0xff]
        %v417 = vld [vmem:[%s163 + $0x3b8] sm:$0xff]
        %v418 = vld [vmem:[%s163 + $0x3c0] sm:$0xff]
        %v419 = vld [vmem:[%s163 + $0x3c8] sm:$0xff]
        %v420 = vld [vmem:[%s163 + $0x3d0] sm:$0xff]
        %v421 = vld [vmem:[%s163 + $0x3d8] sm:$0xff]
        %v422 = vld [vmem:[%s163 + $0x3e0] sm:$0xff]
        %v423 = vld [vmem:[%s163 + $0x3e8] sm:$0xff]
        %v424 = vld [vmem:[%s163 + $0x3f0] sm:$0xff]
        %v425 = vld [vmem:[%s163 + $0x3f8] sm:$0xff]
        %v426 = vld [vmem:[%s163 + $0x400] sm:$0xff]
        %v427 = vld [vmem:[%s163 + $0x408] sm:$0xff]
        %v428 = vld [vmem:[%s163 + $0x410] sm:$0xff]
        %v429 = vld [vmem:[%s163 + $0x418] sm:$0xff]
        %v430 = vld [vmem:[%s163 + $0x420] sm:$0xff]
        %v431 = vld [vmem:[%s163 + $0x428] sm:$0xff]
        %v432 = vld [vmem:[%s163 + $0x430] sm:$0xff]
        %v433 = vld [vmem:[%s163 + $0x438] sm:$0xff]
        %v434 = vld [vmem:[%s163 + $0x440] sm:$0xff]
        %v435 = vld [vmem:[%s163 + $0x448] sm:$0xff]
        %v436 = vld [vmem:[%s163 + $0x450] sm:$0xff]
        %v437 = vld [vmem:[%s163 + $0x458] sm:$0xff]
        %v438 = vld [vmem:[%s163 + $0x460] sm:$0xff]
        %v439 = vld [vmem:[%s163 + $0x468] sm:$0xff]
        %v440 = vld [vmem:[%s163 + $0x470] sm:$0xff]
        %v441 = vld [vmem:[%s163 + $0x478] sm:$0xff]
        %v442 = vld [vmem:[%s163 + $0x480] sm:$0xff]
        %v443 = vld [vmem:[%s163 + $0x488] sm:$0xff]
        %v444 = vld [vmem:[%s163 + $0x490] sm:$0xff]
        %v445 = vld [vmem:[%s163 + $0x498] sm:$0xff]
        %v446 = vld [vmem:[%s163 + $0x4a0] sm:$0xff]
        %v447 = vld [vmem:[%s163 + $0x4a8] sm:$0xff]
        %v448 = vld [vmem:[%s163 + $0x4b0] sm:$0xff]
        %v449 = vld [vmem:[%s163 + $0x4b8] sm:$0xff]
        %v450 = vld [vmem:[%s163 + $0x4c0] sm:$0xff]
        %v451 = vld [vmem:[%s163 + $0x4c8] sm:$0xff]
        %v452 = vld [vmem:[%s163 + $0x4d0] sm:$0xff]
        %v453 = vld [vmem:[%s163 + $0x4d8] sm:$0xff]
        %v454 = vld [vmem:[%s163 + $0x4e0] sm:$0xff]
        %v455 = vld [vmem:[%s163 + $0x4e8] sm:$0xff]
        %v456 = vld [vmem:[%s163 + $0x4f0] sm:$0xff]
        %v457 = vld [vmem:[%s163 + $0x4f8] sm:$0xff]
        %v458 = vld [vmem:[%s163 + $0x500] sm:$0xff]
        %v459 = vld [vmem:[%s163 + $0x508] sm:$0xff]
        %v460 = vld [vmem:[%s163 + $0x510] sm:$0xff]
        %v461 = vld [vmem:[%s163 + $0x518] sm:$0xff]
        %v462 = vld [vmem:[%s163 + $0x520] sm:$0xff]
        %v463 = vld [vmem:[%s163 + $0x528] sm:$0xff]
        %v464 = vld [vmem:[%s163 + $0x530] sm:$0xff]
        %v465 = vld [vmem:[%s163 + $0x538] sm:$0xff]
        %v466 = vld [vmem:[%s163 + $0x540] sm:$0xff]
        %v467 = vld [vmem:[%s163 + $0x548] sm:$0xff]
        %v468 = vld [vmem:[%s163 + $0x550] sm:$0xff]
        %v469 = vld [vmem:[%s163 + $0x558] sm:$0xff]
        %v470 = vld [vmem:[%s163 + $0x560] sm:$0xff]
        %v471 = vld [vmem:[%s163 + $0x568] sm:$0xff]
        %v472 = vld [vmem:[%s163 + $0x570] sm:$0xff]
        %v473 = vld [vmem:[%s163 + $0x578] sm:$0xff]
        %v474 = vld [vmem:[%s163 + $0x580] sm:$0xff]
        %v475 = vld [vmem:[%s163 + $0x588] sm:$0xff]
        %v476 = vld [vmem:[%s163 + $0x590] sm:$0xff]
        %v477 = vld [vmem:[%s163 + $0x598] sm:$0xff]
        %v478 = vld [vmem:[%s163 + $0x5a0] sm:$0xff]
        %v479 = vld [vmem:[%s163 + $0x5a8] sm:$0xff]
        %v480 = vld [vmem:[%s163 + $0x5b0] sm:$0xff]
        %v481 = vld [vmem:[%s163 + $0x5b8] sm:$0xff]
        %v482 = vld [vmem:[%s163 + $0x5c0] sm:$0xff]
        %v483 = vld [vmem:[%s163 + $0x5c8] sm:$0xff]
        %v484 = vld [vmem:[%s163 + $0x5d0] sm:$0xff]
        %v485 = vld [vmem:[%s163 + $0x5d8] sm:$0xff]
        %v486 = vld [vmem:[%s163 + $0x5e0] sm:$0xff]
        %v487 = vld [vmem:[%s163 + $0x5e8] sm:$0xff]
        %v488 = vld [vmem:[%s163 + $0x5f0] sm:$0xff]
        %v489 = vld [vmem:[%s163 + $0x5f8] sm:$0xff]
        %v490 = vld [vmem:[%s163 + $0x600] sm:$0xff]
        %v491 = vld [vmem:[%s163 + $0x608] sm:$0xff]
        %v492 = vld [vmem:[%s163 + $0x610] sm:$0xff]
        %v493 = vld [vmem:[%s163 + $0x618] sm:$0xff]
        %v494 = vld [vmem:[%s163 + $0x620] sm:$0xff]
        %v495 = vld [vmem:[%s163 + $0x628] sm:$0xff]
        %v496 = vld [vmem:[%s163 + $0x630] sm:$0xff]
        %v497 = vld [vmem:[%s163 + $0x638] sm:$0xff]
        %v498 = vld [vmem:[%s163 + $0x640] sm:$0xff]
        %v499 = vld [vmem:[%s163 + $0x648] sm:$0xff]
        %v500 = vld [vmem:[%s163 + $0x650] sm:$0xff]
        %v501 = vld [vmem:[%s163 + $0x658] sm:$0xff]
        %v502 = vld [vmem:[%s163 + $0x660] sm:$0xff]
        %v503 = vld [vmem:[%s163 + $0x668] sm:$0xff]
        %v504 = vld [vmem:[%s163 + $0x670] sm:$0xff]
        %v505 = vld [vmem:[%s163 + $0x678] sm:$0xff]
        %v506 = vld [vmem:[%s163 + $0x680] sm:$0xff]
        %v507 = vld [vmem:[%s163 + $0x688] sm:$0xff]
        %v508 = vld [vmem:[%s163 + $0x690] sm:$0xff]
        %v509 = vld [vmem:[%s163 + $0x698] sm:$0xff]
        %v510 = vld [vmem:[%s163 + $0x6a0] sm:$0xff]
        %v511 = vld [vmem:[%s163 + $0x6a8] sm:$0xff]
        %v512 = vld [vmem:[%s163 + $0x6b0] sm:$0xff]
        %v513 = vld [vmem:[%s163 + $0x6b8] sm:$0xff]
        %v514 = vld [vmem:[%s163 + $0x6c0] sm:$0xff]
        %v515 = vld [vmem:[%s163 + $0x6c8] sm:$0xff]
        %v516 = vld [vmem:[%s163 + $0x6d0] sm:$0xff]
        %v517 = vld [vmem:[%s163 + $0x6d8] sm:$0xff]
        %v518 = vld [vmem:[%s163 + $0x6e0] sm:$0xff]
        %v519 = vld [vmem:[%s163 + $0x6e8] sm:$0xff]
        %v520 = vld [vmem:[%s163 + $0x6f0] sm:$0xff]
        %v521 = vld [vmem:[%s163 + $0x6f8] sm:$0xff]
        %v522 = vld [vmem:[%s163 + $0x700] sm:$0xff]
        %v523 = vld [vmem:[%s163 + $0x708] sm:$0xff]
        %v524 = vld [vmem:[%s163 + $0x710] sm:$0xff]
        %v525 = vld [vmem:[%s163 + $0x718] sm:$0xff]
        %v526 = vld [vmem:[%s163 + $0x720] sm:$0xff]
        %v527 = vld [vmem:[%s163 + $0x728] sm:$0xff]
        %v528 = vld [vmem:[%s163 + $0x730] sm:$0xff]
        %v529 = vld [vmem:[%s163 + $0x738] sm:$0xff]
        %v530 = vld [vmem:[%s163 + $0x740] sm:$0xff]
        %v531 = vld [vmem:[%s163 + $0x748] sm:$0xff]
        %v532 = vld [vmem:[%s163 + $0x750] sm:$0xff]
        %v533 = vld [vmem:[%s163 + $0x758] sm:$0xff]
        %v534 = vld [vmem:[%s163 + $0x760] sm:$0xff]
        %v535 = vld [vmem:[%s163 + $0x768] sm:$0xff]
        %v536 = vld [vmem:[%s163 + $0x770] sm:$0xff]
        %v537 = vld [vmem:[%s163 + $0x778] sm:$0xff]
        %v538 = vld [vmem:[%s163 + $0x780] sm:$0xff]
        %v539 = vld [vmem:[%s163 + $0x788] sm:$0xff]
        %v540 = vld [vmem:[%s163 + $0x790] sm:$0xff]
        %v541 = vld [vmem:[%s163 + $0x798] sm:$0xff]
        %v542 = vld [vmem:[%s163 + $0x7a0] sm:$0xff]
        %v543 = vld [vmem:[%s163 + $0x7a8] sm:$0xff]
        %v544 = vld [vmem:[%s163 + $0x7b0] sm:$0xff]
        %v545 = vld [vmem:[%s163 + $0x7b8] sm:$0xff]
        %v546 = vld [vmem:[%s163 + $0x7c0] sm:$0xff]
        %v547 = vld [vmem:[%s163 + $0x7c8] sm:$0xff]
        %v548 = vld [vmem:[%s163 + $0x7d0] sm:$0xff]
        %v549 = vld [vmem:[%s163 + $0x7d8] sm:$0xff]
        %v550 = vld [vmem:[%s163 + $0x7e0] sm:$0xff]
        %v551 = vld [vmem:[%s163 + $0x7e8] sm:$0xff]
        %v552 = vld [vmem:[%s163 + $0x7f0] sm:$0xff]
        %v553 = vld [vmem:[%s163 + $0x7f8] sm:$0xff]
        %v554 = vpack.c.bf16 %v299, %v298
        %v555 = vpack.c.bf16 %v301, %v300
        %v556 = vpack.c.bf16 %v303, %v302
        %v557 = vpack.c.bf16 %v305, %v304
        %v558 = vpack.c.bf16 %v307, %v306
        %v559 = vpack.c.bf16 %v309, %v308
        %v560 = vpack.c.bf16 %v311, %v310
        %v561 = vpack.c.bf16 %v313, %v312
        %v562 = vpack.c.bf16 %v315, %v314
        %v563 = vpack.c.bf16 %v317, %v316
        %v564 = vpack.c.bf16 %v319, %v318
        %v565 = vpack.c.bf16 %v321, %v320
        %v566 = vpack.c.bf16 %v323, %v322
        %v567 = vpack.c.bf16 %v325, %v324
        %v568 = vpack.c.bf16 %v327, %v326
        %v569 = vpack.c.bf16 %v329, %v328
        %v570 = vpack.c.bf16 %v331, %v330
        %v571 = vpack.c.bf16 %v333, %v332
        %v572 = vpack.c.bf16 %v335, %v334
        %v573 = vpack.c.bf16 %v337, %v336
        %v574 = vpack.c.bf16 %v339, %v338
        %v575 = vpack.c.bf16 %v341, %v340
        %v576 = vpack.c.bf16 %v343, %v342
        %v577 = vpack.c.bf16 %v345, %v344
        %v578 = vpack.c.bf16 %v347, %v346
        %v579 = vpack.c.bf16 %v349, %v348
        %v580 = vpack.c.bf16 %v351, %v350
        %v581 = vpack.c.bf16 %v353, %v352
        %v582 = vpack.c.bf16 %v355, %v354
        %v583 = vpack.c.bf16 %v357, %v356
        %v584 = vpack.c.bf16 %v359, %v358
        %v585 = vpack.c.bf16 %v361, %v360
        %v586 = vpack.c.bf16 %v363, %v362
        %v587 = vpack.c.bf16 %v365, %v364
        %v588 = vpack.c.bf16 %v367, %v366
        %v589 = vpack.c.bf16 %v369, %v368
        %v590 = vpack.c.bf16 %v371, %v370
        %v591 = vpack.c.bf16 %v373, %v372
        %v592 = vpack.c.bf16 %v375, %v374
        %v593 = vpack.c.bf16 %v377, %v376
        %v594 = vpack.c.bf16 %v379, %v378
        %v595 = vpack.c.bf16 %v381, %v380
        %v596 = vpack.c.bf16 %v383, %v382
        %v597 = vpack.c.bf16 %v385, %v384
        %v598 = vpack.c.bf16 %v387, %v386
        %v599 = vpack.c.bf16 %v389, %v388
        %v600 = vpack.c.bf16 %v391, %v390
        %v601 = vpack.c.bf16 %v393, %v392
        %v602 = vpack.c.bf16 %v395, %v394
        %v603 = vpack.c.bf16 %v397, %v396
        %v604 = vpack.c.bf16 %v399, %v398
        %v605 = vpack.c.bf16 %v401, %v400
        %v606 = vpack.c.bf16 %v403, %v402
        %v607 = vpack.c.bf16 %v405, %v404
        %v608 = vpack.c.bf16 %v407, %v406
        %v609 = vpack.c.bf16 %v409, %v408
        %v610 = vpack.c.bf16 %v411, %v410
        %v611 = vpack.c.bf16 %v413, %v412
        %v612 = vpack.c.bf16 %v415, %v414
        %v613 = vpack.c.bf16 %v417, %v416
        %v614 = vpack.c.bf16 %v419, %v418
        %v615 = vpack.c.bf16 %v421, %v420
        %v616 = vpack.c.bf16 %v423, %v422
        %v617 = vpack.c.bf16 %v425, %v424
        %v618 = vpack.c.bf16 %v427, %v426
        %v619 = vpack.c.bf16 %v429, %v428
        %v620 = vpack.c.bf16 %v431, %v430
        %v621 = vpack.c.bf16 %v433, %v432
        %v622 = vpack.c.bf16 %v435, %v434
        %v623 = vpack.c.bf16 %v437, %v436
        %v624 = vpack.c.bf16 %v439, %v438
        %v625 = vpack.c.bf16 %v441, %v440
        %v626 = vpack.c.bf16 %v443, %v442
        %v627 = vpack.c.bf16 %v445, %v444
        %v628 = vpack.c.bf16 %v447, %v446
        %v629 = vpack.c.bf16 %v449, %v448
        %v630 = vpack.c.bf16 %v451, %v450
        %v631 = vpack.c.bf16 %v453, %v452
        %v632 = vpack.c.bf16 %v455, %v454
        %v633 = vpack.c.bf16 %v457, %v456
        %v634 = vpack.c.bf16 %v459, %v458
        %v635 = vpack.c.bf16 %v461, %v460
        %v636 = vpack.c.bf16 %v463, %v462
        %v637 = vpack.c.bf16 %v465, %v464
        %v638 = vpack.c.bf16 %v467, %v466
        %v639 = vpack.c.bf16 %v469, %v468
        %v640 = vpack.c.bf16 %v471, %v470
        %v641 = vpack.c.bf16 %v473, %v472
        %v642 = vpack.c.bf16 %v475, %v474
        %v643 = vpack.c.bf16 %v477, %v476
        %v644 = vpack.c.bf16 %v479, %v478
        %v645 = vpack.c.bf16 %v481, %v480
        %v646 = vpack.c.bf16 %v483, %v482
        %v647 = vpack.c.bf16 %v485, %v484
        %v648 = vpack.c.bf16 %v487, %v486
        %v649 = vpack.c.bf16 %v489, %v488
        %v650 = vpack.c.bf16 %v491, %v490
        %v651 = vpack.c.bf16 %v493, %v492
        %v652 = vpack.c.bf16 %v495, %v494
        %v653 = vpack.c.bf16 %v497, %v496
        %v654 = vpack.c.bf16 %v499, %v498
        %v655 = vpack.c.bf16 %v501, %v500
        %v656 = vpack.c.bf16 %v503, %v502
        %v657 = vpack.c.bf16 %v505, %v504
        %v658 = vpack.c.bf16 %v507, %v506
        %v659 = vpack.c.bf16 %v509, %v508
        %v660 = vpack.c.bf16 %v511, %v510
        %v661 = vpack.c.bf16 %v513, %v512
        %v662 = vpack.c.bf16 %v515, %v514
        %v663 = vpack.c.bf16 %v517, %v516
        %v664 = vpack.c.bf16 %v519, %v518
        %v665 = vpack.c.bf16 %v521, %v520
        %v666 = vpack.c.bf16 %v523, %v522
        %v667 = vpack.c.bf16 %v525, %v524
        %v668 = vpack.c.bf16 %v527, %v526
        %v669 = vpack.c.bf16 %v529, %v528
        %v670 = vpack.c.bf16 %v531, %v530
        %v671 = vpack.c.bf16 %v533, %v532
        %v672 = vpack.c.bf16 %v535, %v534
        %v673 = vpack.c.bf16 %v537, %v536
        %v674 = vpack.c.bf16 %v539, %v538
        %v675 = vpack.c.bf16 %v541, %v540
        %v676 = vpack.c.bf16 %v543, %v542
        %v677 = vpack.c.bf16 %v545, %v544
        %v678 = vpack.c.bf16 %v547, %v546
        %v679 = vpack.c.bf16 %v549, %v548
        %v680 = vpack.c.bf16 %v551, %v550
        %v681 = vpack.c.bf16 %v553, %v552
        %v810 = vunpack.c.l.b16 %v170
        %v811 = vunpack.c.h.b16 %v170
        %v812 = vunpack.c.l.b16 %v171
        %v813 = vunpack.c.h.b16 %v171
        %v814 = vunpack.c.l.b16 %v172
        %v815 = vunpack.c.h.b16 %v172
        %v816 = vunpack.c.l.b16 %v173
        %v817 = vunpack.c.h.b16 %v173
        %v818 = vunpack.c.l.b16 %v174
        %v819 = vunpack.c.h.b16 %v174
        %v820 = vunpack.c.l.b16 %v175
        %v821 = vunpack.c.h.b16 %v175
        %v822 = vunpack.c.l.b16 %v176
        %v823 = vunpack.c.h.b16 %v176
        %v824 = vunpack.c.l.b16 %v177
        %v825 = vunpack.c.h.b16 %v177
        %v826 = vunpack.c.l.b16 %v178
        %v827 = vunpack.c.h.b16 %v178
        %v828 = vunpack.c.l.b16 %v179
        %v829 = vunpack.c.h.b16 %v179
        %v830 = vunpack.c.l.b16 %v180
        %v831 = vunpack.c.h.b16 %v180
        %v832 = vunpack.c.l.b16 %v181
        %v833 = vunpack.c.h.b16 %v181
        %v834 = vunpack.c.l.b16 %v182
        %v835 = vunpack.c.h.b16 %v182
        %v836 = vunpack.c.l.b16 %v183
        %v837 = vunpack.c.h.b16 %v183
        %v838 = vunpack.c.l.b16 %v184
        %v839 = vunpack.c.h.b16 %v184
        %v840 = vunpack.c.l.b16 %v185
        %v841 = vunpack.c.h.b16 %v185
        %v842 = vunpack.c.l.b16 %v186
        %v843 = vunpack.c.h.b16 %v186
        %v844 = vunpack.c.l.b16 %v187
        %v845 = vunpack.c.h.b16 %v187
        %v846 = vunpack.c.l.b16 %v188
        %v847 = vunpack.c.h.b16 %v188
        %v848 = vunpack.c.l.b16 %v189
        %v849 = vunpack.c.h.b16 %v189
        %v850 = vunpack.c.l.b16 %v190
        %v851 = vunpack.c.h.b16 %v190
        %v852 = vunpack.c.l.b16 %v191
        %v853 = vunpack.c.h.b16 %v191
        %v854 = vunpack.c.l.b16 %v192
        %v855 = vunpack.c.h.b16 %v192
        %v856 = vunpack.c.l.b16 %v193
        %v857 = vunpack.c.h.b16 %v193
        %v858 = vunpack.c.l.b16 %v194
        %v859 = vunpack.c.h.b16 %v194
        %v860 = vunpack.c.l.b16 %v195
        %v861 = vunpack.c.h.b16 %v195
        %v862 = vunpack.c.l.b16 %v196
        %v863 = vunpack.c.h.b16 %v196
        %v864 = vunpack.c.l.b16 %v197
        %v865 = vunpack.c.h.b16 %v197
        %v866 = vunpack.c.l.b16 %v198
        %v867 = vunpack.c.h.b16 %v198
        %v868 = vunpack.c.l.b16 %v199
        %v869 = vunpack.c.h.b16 %v199
        %v870 = vunpack.c.l.b16 %v200
        %v871 = vunpack.c.h.b16 %v200
        %v872 = vunpack.c.l.b16 %v201
        %v873 = vunpack.c.h.b16 %v201
        %v874 = vunpack.c.l.b16 %v202
        %v875 = vunpack.c.h.b16 %v202
        %v876 = vunpack.c.l.b16 %v203
        %v877 = vunpack.c.h.b16 %v203
        %v878 = vunpack.c.l.b16 %v204
        %v879 = vunpack.c.h.b16 %v204
        %v880 = vunpack.c.l.b16 %v205
        %v881 = vunpack.c.h.b16 %v205
        %v882 = vunpack.c.l.b16 %v206
        %v883 = vunpack.c.h.b16 %v206
        %v884 = vunpack.c.l.b16 %v207
        %v885 = vunpack.c.h.b16 %v207
        %v886 = vunpack.c.l.b16 %v208
        %v887 = vunpack.c.h.b16 %v208
        %v888 = vunpack.c.l.b16 %v209
        %v889 = vunpack.c.h.b16 %v209
        %v890 = vunpack.c.l.b16 %v210
        %v891 = vunpack.c.h.b16 %v210
        %v892 = vunpack.c.l.b16 %v211
        %v893 = vunpack.c.h.b16 %v211
        %v894 = vunpack.c.l.b16 %v212
        %v895 = vunpack.c.h.b16 %v212
        %v896 = vunpack.c.l.b16 %v213
        %v897 = vunpack.c.h.b16 %v213
        %v898 = vunpack.c.l.b16 %v214
        %v899 = vunpack.c.h.b16 %v214
        %v900 = vunpack.c.l.b16 %v215
        %v901 = vunpack.c.h.b16 %v215
        %v902 = vunpack.c.l.b16 %v216
        %v903 = vunpack.c.h.b16 %v216
        %v904 = vunpack.c.l.b16 %v217
        %v905 = vunpack.c.h.b16 %v217
        %v906 = vunpack.c.l.b16 %v218
        %v907 = vunpack.c.h.b16 %v218
        %v908 = vunpack.c.l.b16 %v219
        %v909 = vunpack.c.h.b16 %v219
        %v910 = vunpack.c.l.b16 %v220
        %v911 = vunpack.c.h.b16 %v220
        %v912 = vunpack.c.l.b16 %v221
        %v913 = vunpack.c.h.b16 %v221
        %v914 = vunpack.c.l.b16 %v222
        %v915 = vunpack.c.h.b16 %v222
        %v916 = vunpack.c.l.b16 %v223
        %v917 = vunpack.c.h.b16 %v223
        %v918 = vunpack.c.l.b16 %v224
        %v919 = vunpack.c.h.b16 %v224
        %v920 = vunpack.c.l.b16 %v225
        %v921 = vunpack.c.h.b16 %v225
        %v922 = vunpack.c.l.b16 %v226
        %v923 = vunpack.c.h.b16 %v226
        %v924 = vunpack.c.l.b16 %v227
        %v925 = vunpack.c.h.b16 %v227
        %v926 = vunpack.c.l.b16 %v228
        %v927 = vunpack.c.h.b16 %v228
        %v928 = vunpack.c.l.b16 %v229
        %v929 = vunpack.c.h.b16 %v229
        %v930 = vunpack.c.l.b16 %v230
        %v931 = vunpack.c.h.b16 %v230
        %v932 = vunpack.c.l.b16 %v231
        %v933 = vunpack.c.h.b16 %v231
        %v934 = vunpack.c.l.b16 %v232
        %v935 = vunpack.c.h.b16 %v232
        %v936 = vunpack.c.l.b16 %v233
        %v937 = vunpack.c.h.b16 %v233
        %v938 = vunpack.c.l.b16 %v234
        %v939 = vunpack.c.h.b16 %v234
        %v940 = vunpack.c.l.b16 %v235
        %v941 = vunpack.c.h.b16 %v235
        %v942 = vunpack.c.l.b16 %v236
        %v943 = vunpack.c.h.b16 %v236
        %v944 = vunpack.c.l.b16 %v237
        %v945 = vunpack.c.h.b16 %v237
        %v946 = vunpack.c.l.b16 %v238
        %v947 = vunpack.c.h.b16 %v238
        %v948 = vunpack.c.l.b16 %v239
        %v949 = vunpack.c.h.b16 %v239
        %v950 = vunpack.c.l.b16 %v240
        %v951 = vunpack.c.h.b16 %v240
        %v952 = vunpack.c.l.b16 %v241
        %v953 = vunpack.c.h.b16 %v241
        %v954 = vunpack.c.l.b16 %v242
        %v955 = vunpack.c.h.b16 %v242
        %v956 = vunpack.c.l.b16 %v243
        %v957 = vunpack.c.h.b16 %v243
        %v958 = vunpack.c.l.b16 %v244
        %v959 = vunpack.c.h.b16 %v244
        %v960 = vunpack.c.l.b16 %v245
        %v961 = vunpack.c.h.b16 %v245
        %v962 = vunpack.c.l.b16 %v246
        %v963 = vunpack.c.h.b16 %v246
        %v964 = vunpack.c.l.b16 %v247
        %v965 = vunpack.c.h.b16 %v247
        %v966 = vunpack.c.l.b16 %v248
        %v967 = vunpack.c.h.b16 %v248
        %v968 = vunpack.c.l.b16 %v249
        %v969 = vunpack.c.h.b16 %v249
        %v970 = vunpack.c.l.b16 %v250
        %v971 = vunpack.c.h.b16 %v250
        %v972 = vunpack.c.l.b16 %v251
        %v973 = vunpack.c.h.b16 %v251
        %v974 = vunpack.c.l.b16 %v252
        %v975 = vunpack.c.h.b16 %v252
        %v976 = vunpack.c.l.b16 %v253
        %v977 = vunpack.c.h.b16 %v253
        %v978 = vunpack.c.l.b16 %v254
        %v979 = vunpack.c.h.b16 %v254
        %v980 = vunpack.c.l.b16 %v255
        %v981 = vunpack.c.h.b16 %v255
        %v982 = vunpack.c.l.b16 %v256
        %v983 = vunpack.c.h.b16 %v256
        %v984 = vunpack.c.l.b16 %v257
        %v985 = vunpack.c.h.b16 %v257
        %v986 = vunpack.c.l.b16 %v258
        %v987 = vunpack.c.h.b16 %v258
        %v988 = vunpack.c.l.b16 %v259
        %v989 = vunpack.c.h.b16 %v259
        %v990 = vunpack.c.l.b16 %v260
        %v991 = vunpack.c.h.b16 %v260
        %v992 = vunpack.c.l.b16 %v261
        %v993 = vunpack.c.h.b16 %v261
        %v994 = vunpack.c.l.b16 %v262
        %v995 = vunpack.c.h.b16 %v262
        %v996 = vunpack.c.l.b16 %v263
        %v997 = vunpack.c.h.b16 %v263
        %v998 = vunpack.c.l.b16 %v264
        %v999 = vunpack.c.h.b16 %v264
        %v1000 = vunpack.c.l.b16 %v265
        %v1001 = vunpack.c.h.b16 %v265
        %v1002 = vunpack.c.l.b16 %v266
        %v1003 = vunpack.c.h.b16 %v266
        %v1004 = vunpack.c.l.b16 %v267
        %v1005 = vunpack.c.h.b16 %v267
        %v1006 = vunpack.c.l.b16 %v268
        %v1007 = vunpack.c.h.b16 %v268
        %v1008 = vunpack.c.l.b16 %v269
        %v1009 = vunpack.c.h.b16 %v269
        %v1010 = vunpack.c.l.b16 %v270
        %v1011 = vunpack.c.h.b16 %v270
        %v1012 = vunpack.c.l.b16 %v271
        %v1013 = vunpack.c.h.b16 %v271
        %v1014 = vunpack.c.l.b16 %v272
        %v1015 = vunpack.c.h.b16 %v272
        %v1016 = vunpack.c.l.b16 %v273
        %v1017 = vunpack.c.h.b16 %v273
        %v1018 = vunpack.c.l.b16 %v274
        %v1019 = vunpack.c.h.b16 %v274
        %v1020 = vunpack.c.l.b16 %v275
        %v1021 = vunpack.c.h.b16 %v275
        %v1022 = vunpack.c.l.b16 %v276
        %v1023 = vunpack.c.h.b16 %v276
        %v1024 = vunpack.c.l.b16 %v277
        %v1025 = vunpack.c.h.b16 %v277
        %v1026 = vunpack.c.l.b16 %v278
        %v1027 = vunpack.c.h.b16 %v278
        %v1028 = vunpack.c.l.b16 %v279
        %v1029 = vunpack.c.h.b16 %v279
        %v1030 = vunpack.c.l.b16 %v280
        %v1031 = vunpack.c.h.b16 %v280
        %v1032 = vunpack.c.l.b16 %v281
        %v1033 = vunpack.c.h.b16 %v281
        %v1034 = vunpack.c.l.b16 %v282
        %v1035 = vunpack.c.h.b16 %v282
        %v1036 = vunpack.c.l.b16 %v283
        %v1037 = vunpack.c.h.b16 %v283
        %v1038 = vunpack.c.l.b16 %v284
        %v1039 = vunpack.c.h.b16 %v284
        %v1040 = vunpack.c.l.b16 %v285
        %v1041 = vunpack.c.h.b16 %v285
        %v1042 = vunpack.c.l.b16 %v286
        %v1043 = vunpack.c.h.b16 %v286
        %v1044 = vunpack.c.l.b16 %v287
        %v1045 = vunpack.c.h.b16 %v287
        %v1046 = vunpack.c.l.b16 %v288
        %v1047 = vunpack.c.h.b16 %v288
        %v1048 = vunpack.c.l.b16 %v289
        %v1049 = vunpack.c.h.b16 %v289
        %v1050 = vunpack.c.l.b16 %v290
        %v1051 = vunpack.c.h.b16 %v290
        %v1052 = vunpack.c.l.b16 %v291
        %v1053 = vunpack.c.h.b16 %v291
        %v1054 = vunpack.c.l.b16 %v292
        %v1055 = vunpack.c.h.b16 %v292
        %v1056 = vunpack.c.l.b16 %v293
        %v1057 = vunpack.c.h.b16 %v293
        %v1058 = vunpack.c.l.b16 %v294
        %v1059 = vunpack.c.h.b16 %v294
        %v1060 = vunpack.c.l.b16 %v295
        %v1061 = vunpack.c.h.b16 %v295
        %v1062 = vunpack.c.l.b16 %v296
        %v1063 = vunpack.c.h.b16 %v296
        %v1064 = vunpack.c.l.b16 %v297
        %v1065 = vunpack.c.h.b16 %v297
        %v1066 = vpack.c.b16 %v826, %v810
        %v1067 = vpack.c.b16 %v827, %v811
        %v1068 = vpack.c.b16 %v828, %v812
        %v1069 = vpack.c.b16 %v829, %v813
        %v1070 = vpack.c.b16 %v830, %v814
        %v1071 = vpack.c.b16 %v831, %v815
        %v1072 = vpack.c.b16 %v832, %v816
        %v1073 = vpack.c.b16 %v833, %v817
        %v1074 = vpack.c.b16 %v834, %v818
        %v1075 = vpack.c.b16 %v835, %v819
        %v1076 = vpack.c.b16 %v836, %v820
        %v1077 = vpack.c.b16 %v837, %v821
        %v1078 = vpack.c.b16 %v838, %v822
        %v1079 = vpack.c.b16 %v839, %v823
        %v1080 = vpack.c.b16 %v840, %v824
        %v1081 = vpack.c.b16 %v841, %v825
        %v1082 = vpack.c.b16 %v858, %v842
        %v1083 = vpack.c.b16 %v859, %v843
        %v1084 = vpack.c.b16 %v860, %v844
        %v1085 = vpack.c.b16 %v861, %v845
        %v1086 = vpack.c.b16 %v862, %v846
        %v1087 = vpack.c.b16 %v863, %v847
        %v1088 = vpack.c.b16 %v864, %v848
        %v1089 = vpack.c.b16 %v865, %v849
        %v1090 = vpack.c.b16 %v866, %v850
        %v1091 = vpack.c.b16 %v867, %v851
        %v1092 = vpack.c.b16 %v868, %v852
        %v1093 = vpack.c.b16 %v869, %v853
        %v1094 = vpack.c.b16 %v870, %v854
        %v1095 = vpack.c.b16 %v871, %v855
        %v1096 = vpack.c.b16 %v872, %v856
        %v1097 = vpack.c.b16 %v873, %v857
        %v1098 = vpack.c.b16 %v890, %v874
        %v1099 = vpack.c.b16 %v891, %v875
        %v1100 = vpack.c.b16 %v892, %v876
        %v1101 = vpack.c.b16 %v893, %v877
        %v1102 = vpack.c.b16 %v894, %v878
        %v1103 = vpack.c.b16 %v895, %v879
        %v1104 = vpack.c.b16 %v896, %v880
        %v1105 = vpack.c.b16 %v897, %v881
        %v1106 = vpack.c.b16 %v898, %v882
        %v1107 = vpack.c.b16 %v899, %v883
        %v1108 = vpack.c.b16 %v900, %v884
        %v1109 = vpack.c.b16 %v901, %v885
        %v1110 = vpack.c.b16 %v902, %v886
        %v1111 = vpack.c.b16 %v903, %v887
        %v1112 = vpack.c.b16 %v904, %v888
        %v1113 = vpack.c.b16 %v905, %v889
        %v1114 = vpack.c.b16 %v922, %v906
        %v1115 = vpack.c.b16 %v923, %v907
        %v1116 = vpack.c.b16 %v924, %v908
        %v1117 = vpack.c.b16 %v925, %v909
        %v1118 = vpack.c.b16 %v926, %v910
        %v1119 = vpack.c.b16 %v927, %v911
        %v1120 = vpack.c.b16 %v928, %v912
        %v1121 = vpack.c.b16 %v929, %v913
        %v1122 = vpack.c.b16 %v930, %v914
        %v1123 = vpack.c.b16 %v931, %v915
        %v1124 = vpack.c.b16 %v932, %v916
        %v1125 = vpack.c.b16 %v933, %v917
        %v1126 = vpack.c.b16 %v934, %v918
        %v1127 = vpack.c.b16 %v935, %v919
        %v1128 = vpack.c.b16 %v936, %v920
        %v1129 = vpack.c.b16 %v937, %v921
        %v1130 = vpack.c.b16 %v954, %v938
        %v1131 = vpack.c.b16 %v955, %v939
        %v1132 = vpack.c.b16 %v956, %v940
        %v1133 = vpack.c.b16 %v957, %v941
        %v1134 = vpack.c.b16 %v958, %v942
        %v1135 = vpack.c.b16 %v959, %v943
        %v1136 = vpack.c.b16 %v960, %v944
        %v1137 = vpack.c.b16 %v961, %v945
        %v1138 = vpack.c.b16 %v962, %v946
        %v1139 = vpack.c.b16 %v963, %v947
        %v1140 = vpack.c.b16 %v964, %v948
        %v1141 = vpack.c.b16 %v965, %v949
        %v1142 = vpack.c.b16 %v966, %v950
        %v1143 = vpack.c.b16 %v967, %v951
        %v1144 = vpack.c.b16 %v968, %v952
        %v1145 = vpack.c.b16 %v969, %v953
        %v1146 = vpack.c.b16 %v986, %v970
        %v1147 = vpack.c.b16 %v987, %v971
        %v1148 = vpack.c.b16 %v988, %v972
        %v1149 = vpack.c.b16 %v989, %v973
        %v1150 = vpack.c.b16 %v990, %v974
        %v1151 = vpack.c.b16 %v991, %v975
        %v1152 = vpack.c.b16 %v992, %v976
        %v1153 = vpack.c.b16 %v993, %v977
        %v1154 = vpack.c.b16 %v994, %v978
        %v1155 = vpack.c.b16 %v995, %v979
        %v1156 = vpack.c.b16 %v996, %v980
        %v1157 = vpack.c.b16 %v997, %v981
        %v1158 = vpack.c.b16 %v998, %v982
        %v1159 = vpack.c.b16 %v999, %v983
        %v1160 = vpack.c.b16 %v1000, %v984
        %v1161 = vpack.c.b16 %v1001, %v985
        %v1162 = vpack.c.b16 %v1018, %v1002
        %v1163 = vpack.c.b16 %v1019, %v1003
        %v1164 = vpack.c.b16 %v1020, %v1004
        %v1165 = vpack.c.b16 %v1021, %v1005
        %v1166 = vpack.c.b16 %v1022, %v1006
        %v1167 = vpack.c.b16 %v1023, %v1007
        %v1168 = vpack.c.b16 %v1024, %v1008
        %v1169 = vpack.c.b16 %v1025, %v1009
        %v1170 = vpack.c.b16 %v1026, %v1010
        %v1171 = vpack.c.b16 %v1027, %v1011
        %v1172 = vpack.c.b16 %v1028, %v1012
        %v1173 = vpack.c.b16 %v1029, %v1013
        %v1174 = vpack.c.b16 %v1030, %v1014
        %v1175 = vpack.c.b16 %v1031, %v1015
        %v1176 = vpack.c.b16 %v1032, %v1016
        %v1177 = vpack.c.b16 %v1033, %v1017
        %v1178 = vpack.c.b16 %v1050, %v1034
        %v1179 = vpack.c.b16 %v1051, %v1035
        %v1180 = vpack.c.b16 %v1052, %v1036
        %v1181 = vpack.c.b16 %v1053, %v1037
        %v1182 = vpack.c.b16 %v1054, %v1038
        %v1183 = vpack.c.b16 %v1055, %v1039
        %v1184 = vpack.c.b16 %v1056, %v1040
        %v1185 = vpack.c.b16 %v1057, %v1041
        %v1186 = vpack.c.b16 %v1058, %v1042
        %v1187 = vpack.c.b16 %v1059, %v1043
        %v1188 = vpack.c.b16 %v1060, %v1044
        %v1189 = vpack.c.b16 %v1061, %v1045
        %v1190 = vpack.c.b16 %v1062, %v1046
        %v1191 = vpack.c.b16 %v1063, %v1047
        %v1192 = vpack.c.b16 %v1064, %v1048
        %v1193 = vpack.c.b16 %v1065, %v1049
        %1322 = vmatprep.subr.bf16.mxu0 0
        %1323 = vmatpush1.bf16.msra.mxu0 %v554
        %1324 = vmatprep.subr.bf16.mxu0 0
        %1325 = vmatpush1.bf16.msra.mxu0 %v555
        %1326 = vmatprep.subr.bf16.mxu0 0
        %1327 = vmatpush1.bf16.msra.mxu0 %v556
        %1328 = vmatprep.subr.bf16.mxu0 0
        %1329 = vmatpush1.bf16.msra.mxu0 %v557
        %1330 = vmatprep.subr.bf16.mxu0 0
        %1331 = vmatpush1.bf16.msra.mxu0 %v558
        %1332 = vmatprep.subr.bf16.mxu0 0
        %1333 = vmatpush1.bf16.msra.mxu0 %v559
        %1334 = vmatprep.subr.bf16.mxu0 0
        %1335 = vmatpush1.bf16.msra.mxu0 %v560
        %1336 = vmatprep.subr.bf16.mxu0 0
        %1337 = vmatpush1.bf16.msra.mxu0 %v561
        %1338 = vmatprep.subr.bf16.mxu0 0
        %1339 = vmatpush1.bf16.msra.mxu0 %v562
        %1340 = vmatprep.subr.bf16.mxu0 0
        %1341 = vmatpush1.bf16.msra.mxu0 %v563
        %1342 = vmatprep.subr.bf16.mxu0 0
        %1343 = vmatpush1.bf16.msra.mxu0 %v564
        %1344 = vmatprep.subr.bf16.mxu0 0
        %1345 = vmatpush1.bf16.msra.mxu0 %v565
        %1346 = vmatprep.subr.bf16.mxu0 0
        %1347 = vmatpush1.bf16.msra.mxu0 %v566
        %1348 = vmatprep.subr.bf16.mxu0 0
        %1349 = vmatpush1.bf16.msra.mxu0 %v567
        %1350 = vmatprep.subr.bf16.mxu0 0
        %1351 = vmatpush1.bf16.msra.mxu0 %v568
        %1352 = vmatprep.subr.bf16.mxu0 0
        %1353 = vmatpush1.bf16.msra.mxu0 %v569
        %1354 = vmatprep.mubr.bf16.mxu0 %v1067
        %1355 = vmatmul.mubr.bf16.gmra.mrb[0].mxu0 %v1066
        %v1356 = vpop.f32.mrb[0].mxu0
        %v1357 = vadd.f32 0.0, %v1356
        %v1358 = vpop.f32.mrb[0].mxu0
        %v1359 = vpop.f32.mrb[0].mxu0
        %v1360 = vadd.f32 0.0, %v1359
        %v1361 = vpop.f32.mrb[0].mxu0
        %1362 = vmatprep.mubr.bf16.mxu0 %v1083
        %1363 = vmatmul.mubr.bf16.gmra.mrb[0].mxu0 %v1082
        %v1364 = vpop.f32.mrb[0].mxu0
        %v1365 = vadd.f32 0.0, %v1364
        %v1366 = vpop.f32.mrb[0].mxu0
        %v1367 = vpop.f32.mrb[0].mxu0
        %v1368 = vadd.f32 0.0, %v1367
        %v1369 = vpop.f32.mrb[0].mxu0
        %1370 = vmatprep.mubr.bf16.mxu0 %v1099
        %1371 = vmatmul.mubr.bf16.gmra.mrb[0].mxu0 %v1098
        %v1372 = vpop.f32.mrb[0].mxu0
        %v1373 = vadd.f32 0.0, %v1372
        %v1374 = vpop.f32.mrb[0].mxu0
        %v1375 = vpop.f32.mrb[0].mxu0
        %v1376 = vadd.f32 0.0, %v1375
        %v1377 = vpop.f32.mrb[0].mxu0
        %1378 = vmatprep.mubr.bf16.mxu0 %v1115
        %1379 = vmatmul.mubr.bf16.gmra.mrb[0].mxu0 %v1114
        %v1380 = vpop.f32.mrb[0].mxu0
        %v1381 = vadd.f32 0.0, %v1380
        %v1382 = vpop.f32.mrb[0].mxu0
        %v1383 = vpop.f32.mrb[0].mxu0
        %v1384 = vadd.f32 0.0, %v1383
        %v1385 = vpop.f32.mrb[0].mxu0
        %1386 = vmatprep.mubr.bf16.mxu0 %v1131
        %1387 = vmatmul.mubr.bf16.gmra.mrb[0].mxu0 %v1130
        %v1388 = vpop.f32.mrb[0].mxu0
        %v1389 = vadd.f32 0.0, %v1388
        %v1390 = vpop.f32.mrb[0].mxu0
        %v1391 = vpop.f32.mrb[0].mxu0
        %v1392 = vadd.f32 0.0, %v1391
        %v1393 = vpop.f32.mrb[0].mxu0
        %1394 = vmatprep.mubr.bf16.mxu0 %v1147
        %1395 = vmatmul.mubr.bf16.gmra.mrb[0].mxu0 %v1146
        %v1396 = vpop.f32.mrb[0].mxu0
        %v1397 = vadd.f32 0.0, %v1396
        %v1398 = vpop.f32.mrb[0].mxu0
        %v1399 = vpop.f32.mrb[0].mxu0
        %v1400 = vadd.f32 0.0, %v1399
        %v1401 = vpop.f32.mrb[0].mxu0
        %1402 = vmatprep.mubr.bf16.mxu0 %v1163
        %1403 = vmatmul.mubr.bf16.gmra.mrb[0].mxu0 %v1162
        %v1404 = vpop.f32.mrb[0].mxu0
        %v1405 = vadd.f32 0.0, %v1404
        %v1406 = vpop.f32.mrb[0].mxu0
        %v1407 = vpop.f32.mrb[0].mxu0
        %v1408 = vadd.f32 0.0, %v1407
        %v1409 = vpop.f32.mrb[0].mxu0
        %1410 = vmatprep.mubr.bf16.mxu0 %v1179
        %1411 = vmatmul.mubr.bf16.gmra.mrb[0].mxu0 %v1178
        %v1412 = vpop.f32.mrb[0].mxu0
        %v1413 = vadd.f32 0.0, %v1412
        %v1414 = vpop.f32.mrb[0].mxu0
        %v1415 = vpop.f32.mrb[0].mxu0
        %v1416 = vadd.f32 0.0, %v1415
        %v1417 = vpop.f32.mrb[0].mxu0
        %1418 = vdwg.mxu0
        %1419 = vmatprep.subr.bf16.mxu0 0
        %1420 = vmatpush1.bf16.msra.mxu0 %v570
        %1421 = vmatprep.subr.bf16.mxu0 0
        %1422 = vmatpush1.bf16.msra.mxu0 %v571
        %1423 = vmatprep.subr.bf16.mxu0 0
        %1424 = vmatpush1.bf16.msra.mxu0 %v572
        %1425 = vmatprep.subr.bf16.mxu0 0
        %1426 = vmatpush1.bf16.msra.mxu0 %v573
        %1427 = vmatprep.subr.bf16.mxu0 0
        %1428 = vmatpush1.bf16.msra.mxu0 %v574
        %1429 = vmatprep.subr.bf16.mxu0 0
        %1430 = vmatpush1.bf16.msra.mxu0 %v575
        %1431 = vmatprep.subr.bf16.mxu0 0
        %1432 = vmatpush1.bf16.msra.mxu0 %v576
        %1433 = vmatprep.subr.bf16.mxu0 0
        %1434 = vmatpush1.bf16.msra.mxu0 %v577
        %1435 = vmatprep.subr.bf16.mxu0 0
        %1436 = vmatpush1.bf16.msra.mxu0 %v578
        %1437 = vmatprep.subr.bf16.mxu0 0
        %1438 = vmatpush1.bf16.msra.mxu0 %v579
        %1439 = vmatprep.subr.bf16.mxu0 0
        %1440 = vmatpush1.bf16.msra.mxu0 %v580
        %1441 = vmatprep.subr.bf16.mxu0 0
        %1442 = vmatpush1.bf16.msra.mxu0 %v581
        %1443 = vmatprep.subr.bf16.mxu0 0
        %1444 = vmatpush1.bf16.msra.mxu0 %v582
        %1445 = vmatprep.subr.bf16.mxu0 0
        %1446 = vmatpush1.bf16.msra.mxu0 %v583
        %1447 = vmatprep.subr.bf16.mxu0 0
        %1448 = vmatpush1.bf16.msra.mxu0 %v584
        %1449 = vmatprep.subr.bf16.mxu0 0
        %1450 = vmatpush1.bf16.msra.mxu0 %v585
        %1451 = vmatprep.mubr.bf16.mxu0 %v1069
        %1452 = vmatmul.mubr.bf16.gmra.mrb[0].mxu0 %v1068
        %v1453 = vpop.f32.mrb[0].mxu0
        %v1454 = vadd.f32 %v1357, %v1453
        %v1455 = vpop.f32.mrb[0].mxu0
        %v1456 = vpop.f32.mrb[0].mxu0
        %v1457 = vadd.f32 %v1360, %v1456
        %v1458 = vpop.f32.mrb[0].mxu0
        %1459 = vmatprep.mubr.bf16.mxu0 %v1085
        %1460 = vmatmul.mubr.bf16.gmra.mrb[0].mxu0 %v1084
        %v1461 = vpop.f32.mrb[0].mxu0
        %v1462 = vadd.f32 %v1365, %v1461
        %v1463 = vpop.f32.mrb[0].mxu0
        %v1464 = vpop.f32.mrb[0].mxu0
        %v1465 = vadd.f32 %v1368, %v1464
        %v1466 = vpop.f32.mrb[0].mxu0
        %1467 = vmatprep.mubr.bf16.mxu0 %v1101
        %1468 = vmatmul.mubr.bf16.gmra.mrb[0].mxu0 %v1100
        %v1469 = vpop.f32.mrb[0].mxu0
        %v1470 = vadd.f32 %v1373, %v1469
        %v1471 = vpop.f32.mrb[0].mxu0
        %v1472 = vpop.f32.mrb[0].mxu0
        %v1473 = vadd.f32 %v1376, %v1472
        %v1474 = vpop.f32.mrb[0].mxu0
        %1475 = vmatprep.mubr.bf16.mxu0 %v1117
        %1476 = vmatmul.mubr.bf16.gmra.mrb[0].mxu0 %v1116
        %v1477 = vpop.f32.mrb[0].mxu0
        %v1478 = vadd.f32 %v1381, %v1477
        %v1479 = vpop.f32.mrb[0].mxu0
        %v1480 = vpop.f32.mrb[0].mxu0
        %v1481 = vadd.f32 %v1384, %v1480
        %v1482 = vpop.f32.mrb[0].mxu0
        %1483 = vmatprep.mubr.bf16.mxu0 %v1133
        %1484 = vmatmul.mubr.bf16.gmra.mrb[0].mxu0 %v1132
        %v1485 = vpop.f32.mrb[0].mxu0
        %v1486 = vadd.f32 %v1389, %v1485
        %v1487 = vpop.f32.mrb[0].mxu0
        %v1488 = vpop.f32.mrb[0].mxu0
        %v1489 = vadd.f32 %v1392, %v1488
        %v1490 = vpop.f32.mrb[0].mxu0
        %1491 = vmatprep.mubr.bf16.mxu0 %v1149
        %1492 = vmatmul.mubr.bf16.gmra.mrb[0].mxu0 %v1148
        %v1493 = vpop.f32.mrb[0].mxu0
        %v1494 = vadd.f32 %v1397, %v1493
        %v1495 = vpop.f32.mrb[0].mxu0
        %v1496 = vpop.f32.mrb[0].mxu0
        %v1497 = vadd.f32 %v1400, %v1496
        %v1498 = vpop.f32.mrb[0].mxu0
        %1499 = vmatprep.mubr.bf16.mxu0 %v1165
        %1500 = vmatmul.mubr.bf16.gmra.mrb[0].mxu0 %v1164
        %v1501 = vpop.f32.mrb[0].mxu0
        %v1502 = vadd.f32 %v1405, %v1501
        %v1503 = vpop.f32.mrb[0].mxu0
        %v1504 = vpop.f32.mrb[0].mxu0
        %v1505 = vadd.f32 %v1408, %v1504
        %v1506 = vpop.f32.mrb[0].mxu0
        %1507 = vmatprep.mubr.bf16.mxu0 %v1181
        %1508 = vmatmul.mubr.bf16.gmra.mrb[0].mxu0 %v1180
        %v1509 = vpop.f32.mrb[0].mxu0
        %v1510 = vadd.f32 %v1413, %v1509
        %v1511 = vpop.f32.mrb[0].mxu0
        %v1512 = vpop.f32.mrb[0].mxu0
        %v1513 = vadd.f32 %v1416, %v1512
        %v1514 = vpop.f32.mrb[0].mxu0
        %1515 = vdwg.mxu0
        %1516 = vmatprep.subr.bf16.mxu0 0
        %1517 = vmatpush1.bf16.msra.mxu0 %v586
        %1518 = vmatprep.subr.bf16.mxu0 0
        %1519 = vmatpush1.bf16.msra.mxu0 %v587
        %1520 = vmatprep.subr.bf16.mxu0 0
        %1521 = vmatpush1.bf16.msra.mxu0 %v588
        %1522 = vmatprep.subr.bf16.mxu0 0
        %1523 = vmatpush1.bf16.msra.mxu0 %v589
        %1524 = vmatprep.subr.bf16.mxu0 0
        %1525 = vmatpush1.bf16.msra.mxu0 %v590
        %1526 = vmatprep.subr.bf16.mxu0 0
        %1527 = vmatpush1.bf16.msra.mxu0 %v591
        %1528 = vmatprep.subr.bf16.mxu0 0
        %1529 = vmatpush1.bf16.msra.mxu0 %v592
        %1530 = vmatprep.subr.bf16.mxu0 0
        %1531 = vmatpush1.bf16.msra.mxu0 %v593
        %1532 = vmatprep.subr.bf16.mxu0 0
        %1533 = vmatpush1.bf16.msra.mxu0 %v594
        %1534 = vmatprep.subr.bf16.mxu0 0
        %1535 = vmatpush1.bf16.msra.mxu0 %v595
        %1536 = vmatprep.subr.bf16.mxu0 0
        %1537 = vmatpush1.bf16.msra.mxu0 %v596
        %1538 = vmatprep.subr.bf16.mxu0 0
        %1539 = vmatpush1.bf16.msra.mxu0 %v597
        %1540 = vmatprep.subr.bf16.mxu0 0
        %1541 = vmatpush1.bf16.msra.mxu0 %v598
        %1542 = vmatprep.subr.bf16.mxu0 0
        %1543 = vmatpush1.bf16.msra.mxu0 %v599
        %1544 = vmatprep.subr.bf16.mxu0 0
        %1545 = vmatpush1.bf16.msra.mxu0 %v600
        %1546 = vmatprep.subr.bf16.mxu0 0
        %1547 = vmatpush1.bf16.msra.mxu0 %v601
        %1548 = vmatprep.mubr.bf16.mxu0 %v1071
        %1549 = vmatmul.mubr.bf16.gmra.mrb[0].mxu0 %v1070
        %v1550 = vpop.f32.mrb[0].mxu0
        %v1551 = vadd.f32 %v1454, %v1550
        %v1552 = vpop.f32.mrb[0].mxu0
        %v1553 = vpop.f32.mrb[0].mxu0
        %v1554 = vadd.f32 %v1457, %v1553
        %v1555 = vpop.f32.mrb[0].mxu0
        %1556 = vmatprep.mubr.bf16.mxu0 %v1087
        %1557 = vmatmul.mubr.bf16.gmra.mrb[0].mxu0 %v1086
        %v1558 = vpop.f32.mrb[0].mxu0
        %v1559 = vadd.f32 %v1462, %v1558
        %v1560 = vpop.f32.mrb[0].mxu0
        %v1561 = vpop.f32.mrb[0].mxu0
        %v1562 = vadd.f32 %v1465, %v1561
        %v1563 = vpop.f32.mrb[0].mxu0
        %1564 = vmatprep.mubr.bf16.mxu0 %v1103
        %1565 = vmatmul.mubr.bf16.gmra.mrb[0].mxu0 %v1102
        %v1566 = vpop.f32.mrb[0].mxu0
        %v1567 = vadd.f32 %v1470, %v1566
        %v1568 = vpop.f32.mrb[0].mxu0
        %v1569 = vpop.f32.mrb[0].mxu0
        %v1570 = vadd.f32 %v1473, %v1569
        %v1571 = vpop.f32.mrb[0].mxu0
        %1572 = vmatprep.mubr.bf16.mxu0 %v1119
        %1573 = vmatmul.mubr.bf16.gmra.mrb[0].mxu0 %v1118
        %v1574 = vpop.f32.mrb[0].mxu0
        %v1575 = vadd.f32 %v1478, %v1574
        %v1576 = vpop.f32.mrb[0].mxu0
        %v1577 = vpop.f32.mrb[0].mxu0
        %v1578 = vadd.f32 %v1481, %v1577
        %v1579 = vpop.f32.mrb[0].mxu0
        %1580 = vmatprep.mubr.bf16.mxu0 %v1135
        %1581 = vmatmul.mubr.bf16.gmra.mrb[0].mxu0 %v1134
        %v1582 = vpop.f32.mrb[0].mxu0
        %v1583 = vadd.f32 %v1486, %v1582
        %v1584 = vpop.f32.mrb[0].mxu0
        %v1585 = vpop.f32.mrb[0].mxu0
        %v1586 = vadd.f32 %v1489, %v1585
        %v1587 = vpop.f32.mrb[0].mxu0
        %1588 = vmatprep.mubr.bf16.mxu0 %v1151
        %1589 = vmatmul.mubr.bf16.gmra.mrb[0].mxu0 %v1150
        %v1590 = vpop.f32.mrb[0].mxu0
        %v1591 = vadd.f32 %v1494, %v1590
        %v1592 = vpop.f32.mrb[0].mxu0
        %v1593 = vpop.f32.mrb[0].mxu0
        %v1594 = vadd.f32 %v1497, %v1593
        %v1595 = vpop.f32.mrb[0].mxu0
        %1596 = vmatprep.mubr.bf16.mxu0 %v1167
        %1597 = vmatmul.mubr.bf16.gmra.mrb[0].mxu0 %v1166
        %v1598 = vpop.f32.mrb[0].mxu0
        %v1599 = vadd.f32 %v1502, %v1598
        %v1600 = vpop.f32.mrb[0].mxu0
        %v1601 = vpop.f32.mrb[0].mxu0
        %v1602 = vadd.f32 %v1505, %v1601
        %v1603 = vpop.f32.mrb[0].mxu0
        %1604 = vmatprep.mubr.bf16.mxu0 %v1183
        %1605 = vmatmul.mubr.bf16.gmra.mrb[0].mxu0 %v1182
        %v1606 = vpop.f32.mrb[0].mxu0
        %v1607 = vadd.f32 %v1510, %v1606
        %v1608 = vpop.f32.mrb[0].mxu0
        %v1609 = vpop.f32.mrb[0].mxu0
        %v1610 = vadd.f32 %v1513, %v1609
        %v1611 = vpop.f32.mrb[0].mxu0
        %1612 = vdwg.mxu0
        %1613 = vmatprep.subr.bf16.mxu0 0
        %1614 = vmatpush1.bf16.msra.mxu0 %v602
        %1615 = vmatprep.subr.bf16.mxu0 0
        %1616 = vmatpush1.bf16.msra.mxu0 %v603
        %1617 = vmatprep.subr.bf16.mxu0 0
        %1618 = vmatpush1.bf16.msra.mxu0 %v604
        %1619 = vmatprep.subr.bf16.mxu0 0
        %1620 = vmatpush1.bf16.msra.mxu0 %v605
        %1621 = vmatprep.subr.bf16.mxu0 0
        %1622 = vmatpush1.bf16.msra.mxu0 %v606
        %1623 = vmatprep.subr.bf16.mxu0 0
        %1624 = vmatpush1.bf16.msra.mxu0 %v607
        %1625 = vmatprep.subr.bf16.mxu0 0
        %1626 = vmatpush1.bf16.msra.mxu0 %v608
        %1627 = vmatprep.subr.bf16.mxu0 0
        %1628 = vmatpush1.bf16.msra.mxu0 %v609
        %1629 = vmatprep.subr.bf16.mxu0 0
        %1630 = vmatpush1.bf16.msra.mxu0 %v610
        %1631 = vmatprep.subr.bf16.mxu0 0
        %1632 = vmatpush1.bf16.msra.mxu0 %v611
        %1633 = vmatprep.subr.bf16.mxu0 0
        %1634 = vmatpush1.bf16.msra.mxu0 %v612
        %1635 = vmatprep.subr.bf16.mxu0 0
        %1636 = vmatpush1.bf16.msra.mxu0 %v613
        %1637 = vmatprep.subr.bf16.mxu0 0
        %1638 = vmatpush1.bf16.msra.mxu0 %v614
        %1639 = vmatprep.subr.bf16.mxu0 0
        %1640 = vmatpush1.bf16.msra.mxu0 %v615
        %1641 = vmatprep.subr.bf16.mxu0 0
        %1642 = vmatpush1.bf16.msra.mxu0 %v616
        %1643 = vmatprep.subr.bf16.mxu0 0
        %1644 = vmatpush1.bf16.msra.mxu0 %v617
        %1645 = vmatprep.mubr.bf16.mxu0 %v1073
        %1646 = vmatmul.mubr.bf16.gmra.mrb[0].mxu0 %v1072
        %v1647 = vpop.f32.mrb[0].mxu0
        %v1648 = vadd.f32 %v1551, %v1647
        %v1649 = vpop.f32.mrb[0].mxu0
        %v1650 = vpop.f32.mrb[0].mxu0
        %v1651 = vadd.f32 %v1554, %v1650
        %v1652 = vpop.f32.mrb[0].mxu0
        %1653 = vmatprep.mubr.bf16.mxu0 %v1089
        %1654 = vmatmul.mubr.bf16.gmra.mrb[0].mxu0 %v1088
        %v1655 = vpop.f32.mrb[0].mxu0
        %v1656 = vadd.f32 %v1559, %v1655
        %v1657 = vpop.f32.mrb[0].mxu0
        %v1658 = vpop.f32.mrb[0].mxu0
        %v1659 = vadd.f32 %v1562, %v1658
        %v1660 = vpop.f32.mrb[0].mxu0
        %1661 = vmatprep.mubr.bf16.mxu0 %v1105
        %1662 = vmatmul.mubr.bf16.gmra.mrb[0].mxu0 %v1104
        %v1663 = vpop.f32.mrb[0].mxu0
        %v1664 = vadd.f32 %v1567, %v1663
        %v1665 = vpop.f32.mrb[0].mxu0
        %v1666 = vpop.f32.mrb[0].mxu0
        %v1667 = vadd.f32 %v1570, %v1666
        %v1668 = vpop.f32.mrb[0].mxu0
        %1669 = vmatprep.mubr.bf16.mxu0 %v1121
        %1670 = vmatmul.mubr.bf16.gmra.mrb[0].mxu0 %v1120
        %v1671 = vpop.f32.mrb[0].mxu0
        %v1672 = vadd.f32 %v1575, %v1671
        %v1673 = vpop.f32.mrb[0].mxu0
        %v1674 = vpop.f32.mrb[0].mxu0
        %v1675 = vadd.f32 %v1578, %v1674
        %v1676 = vpop.f32.mrb[0].mxu0
        %1677 = vmatprep.mubr.bf16.mxu0 %v1137
        %1678 = vmatmul.mubr.bf16.gmra.mrb[0].mxu0 %v1136
        %v1679 = vpop.f32.mrb[0].mxu0
        %v1680 = vadd.f32 %v1583, %v1679
        %v1681 = vpop.f32.mrb[0].mxu0
        %v1682 = vpop.f32.mrb[0].mxu0
        %v1683 = vadd.f32 %v1586, %v1682
        %v1684 = vpop.f32.mrb[0].mxu0
        %1685 = vmatprep.mubr.bf16.mxu0 %v1153
        %1686 = vmatmul.mubr.bf16.gmra.mrb[0].mxu0 %v1152
        %v1687 = vpop.f32.mrb[0].mxu0
        %v1688 = vadd.f32 %v1591, %v1687
        %v1689 = vpop.f32.mrb[0].mxu0
        %v1690 = vpop.f32.mrb[0].mxu0
        %v1691 = vadd.f32 %v1594, %v1690
        %v1692 = vpop.f32.mrb[0].mxu0
        %1693 = vmatprep.mubr.bf16.mxu0 %v1169
        %1694 = vmatmul.mubr.bf16.gmra.mrb[0].mxu0 %v1168
        %v1695 = vpop.f32.mrb[0].mxu0
        %v1696 = vadd.f32 %v1599, %v1695
        %v1697 = vpop.f32.mrb[0].mxu0
        %v1698 = vpop.f32.mrb[0].mxu0
        %v1699 = vadd.f32 %v1602, %v1698
        %v1700 = vpop.f32.mrb[0].mxu0
        %1701 = vmatprep.mubr.bf16.mxu0 %v1185
        %1702 = vmatmul.mubr.bf16.gmra.mrb[0].mxu0 %v1184
        %v1703 = vpop.f32.mrb[0].mxu0
        %v1704 = vadd.f32 %v1607, %v1703
        %v1705 = vpop.f32.mrb[0].mxu0
        %v1706 = vpop.f32.mrb[0].mxu0
        %v1707 = vadd.f32 %v1610, %v1706
        %v1708 = vpop.f32.mrb[0].mxu0
        %1709 = vdwg.mxu0
        %1710 = vmatprep.subr.bf16.mxu0 0
        %1711 = vmatpush1.bf16.msra.mxu0 %v618
        %1712 = vmatprep.subr.bf16.mxu0 0
        %1713 = vmatpush1.bf16.msra.mxu0 %v619
        %1714 = vmatprep.subr.bf16.mxu0 0
        %1715 = vmatpush1.bf16.msra.mxu0 %v620
        %1716 = vmatprep.subr.bf16.mxu0 0
        %1717 = vmatpush1.bf16.msra.mxu0 %v621
        %1718 = vmatprep.subr.bf16.mxu0 0
        %1719 = vmatpush1.bf16.msra.mxu0 %v622
        %1720 = vmatprep.subr.bf16.mxu0 0
        %1721 = vmatpush1.bf16.msra.mxu0 %v623
        %1722 = vmatprep.subr.bf16.mxu0 0
        %1723 = vmatpush1.bf16.msra.mxu0 %v624
        %1724 = vmatprep.subr.bf16.mxu0 0
        %1725 = vmatpush1.bf16.msra.mxu0 %v625
        %1726 = vmatprep.subr.bf16.mxu0 0
        %1727 = vmatpush1.bf16.msra.mxu0 %v626
        %1728 = vmatprep.subr.bf16.mxu0 0
        %1729 = vmatpush1.bf16.msra.mxu0 %v627
        %1730 = vmatprep.subr.bf16.mxu0 0
        %1731 = vmatpush1.bf16.msra.mxu0 %v628
        %1732 = vmatprep.subr.bf16.mxu0 0
        %1733 = vmatpush1.bf16.msra.mxu0 %v629
        %1734 = vmatprep.subr.bf16.mxu0 0
        %1735 = vmatpush1.bf16.msra.mxu0 %v630
        %1736 = vmatprep.subr.bf16.mxu0 0
        %1737 = vmatpush1.bf16.msra.mxu0 %v631
        %1738 = vmatprep.subr.bf16.mxu0 0
        %1739 = vmatpush1.bf16.msra.mxu0 %v632
        %1740 = vmatprep.subr.bf16.mxu0 0
        %1741 = vmatpush1.bf16.msra.mxu0 %v633
        %1742 = vmatprep.mubr.bf16.mxu0 %v1075
        %1743 = vmatmul.mubr.bf16.gmra.mrb[0].mxu0 %v1074
        %v1744 = vpop.f32.mrb[0].mxu0
        %v1745 = vadd.f32 %v1648, %v1744
        %v1746 = vpop.f32.mrb[0].mxu0
        %v1747 = vpop.f32.mrb[0].mxu0
        %v1748 = vadd.f32 %v1651, %v1747
        %v1749 = vpop.f32.mrb[0].mxu0
        %1750 = vmatprep.mubr.bf16.mxu0 %v1091
        %1751 = vmatmul.mubr.bf16.gmra.mrb[0].mxu0 %v1090
        %v1752 = vpop.f32.mrb[0].mxu0
        %v1753 = vadd.f32 %v1656, %v1752
        %v1754 = vpop.f32.mrb[0].mxu0
        %v1755 = vpop.f32.mrb[0].mxu0
        %v1756 = vadd.f32 %v1659, %v1755
        %v1757 = vpop.f32.mrb[0].mxu0
        %1758 = vmatprep.mubr.bf16.mxu0 %v1107
        %1759 = vmatmul.mubr.bf16.gmra.mrb[0].mxu0 %v1106
        %v1760 = vpop.f32.mrb[0].mxu0
        %v1761 = vadd.f32 %v1664, %v1760
        %v1762 = vpop.f32.mrb[0].mxu0
        %v1763 = vpop.f32.mrb[0].mxu0
        %v1764 = vadd.f32 %v1667, %v1763
        %v1765 = vpop.f32.mrb[0].mxu0
        %1766 = vmatprep.mubr.bf16.mxu0 %v1123
        %1767 = vmatmul.mubr.bf16.gmra.mrb[0].mxu0 %v1122
        %v1768 = vpop.f32.mrb[0].mxu0
        %v1769 = vadd.f32 %v1672, %v1768
        %v1770 = vpop.f32.mrb[0].mxu0
        %v1771 = vpop.f32.mrb[0].mxu0
        %v1772 = vadd.f32 %v1675, %v1771
        %v1773 = vpop.f32.mrb[0].mxu0
        %1774 = vmatprep.mubr.bf16.mxu0 %v1139
        %1775 = vmatmul.mubr.bf16.gmra.mrb[0].mxu0 %v1138
        %v1776 = vpop.f32.mrb[0].mxu0
        %v1777 = vadd.f32 %v1680, %v1776
        %v1778 = vpop.f32.mrb[0].mxu0
        %v1779 = vpop.f32.mrb[0].mxu0
        %v1780 = vadd.f32 %v1683, %v1779
        %v1781 = vpop.f32.mrb[0].mxu0
        %1782 = vmatprep.mubr.bf16.mxu0 %v1155
        %1783 = vmatmul.mubr.bf16.gmra.mrb[0].mxu0 %v1154
        %v1784 = vpop.f32.mrb[0].mxu0
        %v1785 = vadd.f32 %v1688, %v1784
        %v1786 = vpop.f32.mrb[0].mxu0
        %v1787 = vpop.f32.mrb[0].mxu0
        %v1788 = vadd.f32 %v1691, %v1787
        %v1789 = vpop.f32.mrb[0].mxu0
        %1790 = vmatprep.mubr.bf16.mxu0 %v1171
        %1791 = vmatmul.mubr.bf16.gmra.mrb[0].mxu0 %v1170
        %v1792 = vpop.f32.mrb[0].mxu0
        %v1793 = vadd.f32 %v1696, %v1792
        %v1794 = vpop.f32.mrb[0].mxu0
        %v1795 = vpop.f32.mrb[0].mxu0
        %v1796 = vadd.f32 %v1699, %v1795
        %v1797 = vpop.f32.mrb[0].mxu0
        %1798 = vmatprep.mubr.bf16.mxu0 %v1187
        %1799 = vmatmul.mubr.bf16.gmra.mrb[0].mxu0 %v1186
        %v1800 = vpop.f32.mrb[0].mxu0
        %v1801 = vadd.f32 %v1704, %v1800
        %v1802 = vpop.f32.mrb[0].mxu0
        %v1803 = vpop.f32.mrb[0].mxu0
        %v1804 = vadd.f32 %v1707, %v1803
        %v1805 = vpop.f32.mrb[0].mxu0
        %1806 = vdwg.mxu0
        %1807 = vmatprep.subr.bf16.mxu0 0
        %1808 = vmatpush1.bf16.msra.mxu0 %v634
        %1809 = vmatprep.subr.bf16.mxu0 0
        %1810 = vmatpush1.bf16.msra.mxu0 %v635
        %1811 = vmatprep.subr.bf16.mxu0 0
        %1812 = vmatpush1.bf16.msra.mxu0 %v636
        %1813 = vmatprep.subr.bf16.mxu0 0
        %1814 = vmatpush1.bf16.msra.mxu0 %v637
        %1815 = vmatprep.subr.bf16.mxu0 0
        %1816 = vmatpush1.bf16.msra.mxu0 %v638
        %1817 = vmatprep.subr.bf16.mxu0 0
        %1818 = vmatpush1.bf16.msra.mxu0 %v639
        %1819 = vmatprep.subr.bf16.mxu0 0
        %1820 = vmatpush1.bf16.msra.mxu0 %v640
        %1821 = vmatprep.subr.bf16.mxu0 0
        %1822 = vmatpush1.bf16.msra.mxu0 %v641
        %1823 = vmatprep.subr.bf16.mxu0 0
        %1824 = vmatpush1.bf16.msra.mxu0 %v642
        %1825 = vmatprep.subr.bf16.mxu0 0
        %1826 = vmatpush1.bf16.msra.mxu0 %v643
        %1827 = vmatprep.subr.bf16.mxu0 0
        %1828 = vmatpush1.bf16.msra.mxu0 %v644
        %1829 = vmatprep.subr.bf16.mxu0 0
        %1830 = vmatpush1.bf16.msra.mxu0 %v645
        %1831 = vmatprep.subr.bf16.mxu0 0
        %1832 = vmatpush1.bf16.msra.mxu0 %v646
        %1833 = vmatprep.subr.bf16.mxu0 0
        %1834 = vmatpush1.bf16.msra.mxu0 %v647
        %1835 = vmatprep.subr.bf16.mxu0 0
        %1836 = vmatpush1.bf16.msra.mxu0 %v648
        %1837 = vmatprep.subr.bf16.mxu0 0
        %1838 = vmatpush1.bf16.msra.mxu0 %v649
        %1839 = vmatprep.mubr.bf16.mxu0 %v1077
        %1840 = vmatmul.mubr.bf16.gmra.mrb[0].mxu0 %v1076
        %v1841 = vpop.f32.mrb[0].mxu0
        %v1842 = vadd.f32 %v1745, %v1841
        %v1843 = vpop.f32.mrb[0].mxu0
        %v1844 = vpop.f32.mrb[0].mxu0
        %v1845 = vadd.f32 %v1748, %v1844
        %v1846 = vpop.f32.mrb[0].mxu0
        %1847 = vmatprep.mubr.bf16.mxu0 %v1093
        %1848 = vmatmul.mubr.bf16.gmra.mrb[0].mxu0 %v1092
        %v1849 = vpop.f32.mrb[0].mxu0
        %v1850 = vadd.f32 %v1753, %v1849
        %v1851 = vpop.f32.mrb[0].mxu0
        %v1852 = vpop.f32.mrb[0].mxu0
        %v1853 = vadd.f32 %v1756, %v1852
        %v1854 = vpop.f32.mrb[0].mxu0
        %1855 = vmatprep.mubr.bf16.mxu0 %v1109
        %1856 = vmatmul.mubr.bf16.gmra.mrb[0].mxu0 %v1108
        %v1857 = vpop.f32.mrb[0].mxu0
        %v1858 = vadd.f32 %v1761, %v1857
        %v1859 = vpop.f32.mrb[0].mxu0
        %v1860 = vpop.f32.mrb[0].mxu0
        %v1861 = vadd.f32 %v1764, %v1860
        %v1862 = vpop.f32.mrb[0].mxu0
        %1863 = vmatprep.mubr.bf16.mxu0 %v1125
        %1864 = vmatmul.mubr.bf16.gmra.mrb[0].mxu0 %v1124
        %v1865 = vpop.f32.mrb[0].mxu0
        %v1866 = vadd.f32 %v1769, %v1865
        %v1867 = vpop.f32.mrb[0].mxu0
        %v1868 = vpop.f32.mrb[0].mxu0
        %v1869 = vadd.f32 %v1772, %v1868
        %v1870 = vpop.f32.mrb[0].mxu0
        %1871 = vmatprep.mubr.bf16.mxu0 %v1141
        %1872 = vmatmul.mubr.bf16.gmra.mrb[0].mxu0 %v1140
        %v1873 = vpop.f32.mrb[0].mxu0
        %v1874 = vadd.f32 %v1777, %v1873
        %v1875 = vpop.f32.mrb[0].mxu0
        %v1876 = vpop.f32.mrb[0].mxu0
        %v1877 = vadd.f32 %v1780, %v1876
        %v1878 = vpop.f32.mrb[0].mxu0
        %1879 = vmatprep.mubr.bf16.mxu0 %v1157
        %1880 = vmatmul.mubr.bf16.gmra.mrb[0].mxu0 %v1156
        %v1881 = vpop.f32.mrb[0].mxu0
        %v1882 = vadd.f32 %v1785, %v1881
        %v1883 = vpop.f32.mrb[0].mxu0
        %v1884 = vpop.f32.mrb[0].mxu0
        %v1885 = vadd.f32 %v1788, %v1884
        %v1886 = vpop.f32.mrb[0].mxu0
        %1887 = vmatprep.mubr.bf16.mxu0 %v1173
        %1888 = vmatmul.mubr.bf16.gmra.mrb[0].mxu0 %v1172
        %v1889 = vpop.f32.mrb[0].mxu0
        %v1890 = vadd.f32 %v1793, %v1889
        %v1891 = vpop.f32.mrb[0].mxu0
        %v1892 = vpop.f32.mrb[0].mxu0
        %v1893 = vadd.f32 %v1796, %v1892
        %v1894 = vpop.f32.mrb[0].mxu0
        %1895 = vmatprep.mubr.bf16.mxu0 %v1189
        %1896 = vmatmul.mubr.bf16.gmra.mrb[0].mxu0 %v1188
        %v1897 = vpop.f32.mrb[0].mxu0
        %v1898 = vadd.f32 %v1801, %v1897
        %v1899 = vpop.f32.mrb[0].mxu0
        %v1900 = vpop.f32.mrb[0].mxu0
        %v1901 = vadd.f32 %v1804, %v1900
        %v1902 = vpop.f32.mrb[0].mxu0
        %1903 = vdwg.mxu0
        %1904 = vmatprep.subr.bf16.mxu0 0
        %1905 = vmatpush1.bf16.msra.mxu0 %v650
        %1906 = vmatprep.subr.bf16.mxu0 0
        %1907 = vmatpush1.bf16.msra.mxu0 %v651
        %1908 = vmatprep.subr.bf16.mxu0 0
        %1909 = vmatpush1.bf16.msra.mxu0 %v652
        %1910 = vmatprep.subr.bf16.mxu0 0
        %1911 = vmatpush1.bf16.msra.mxu0 %v653
        %1912 = vmatprep.subr.bf16.mxu0 0
        %1913 = vmatpush1.bf16.msra.mxu0 %v654
        %1914 = vmatprep.subr.bf16.mxu0 0
        %1915 = vmatpush1.bf16.msra.mxu0 %v655
        %1916 = vmatprep.subr.bf16.mxu0 0
        %1917 = vmatpush1.bf16.msra.mxu0 %v656
        %1918 = vmatprep.subr.bf16.mxu0 0
        %1919 = vmatpush1.bf16.msra.mxu0 %v657
        %1920 = vmatprep.subr.bf16.mxu0 0
        %1921 = vmatpush1.bf16.msra.mxu0 %v658
        %1922 = vmatprep.subr.bf16.mxu0 0
        %1923 = vmatpush1.bf16.msra.mxu0 %v659
        %1924 = vmatprep.subr.bf16.mxu0 0
        %1925 = vmatpush1.bf16.msra.mxu0 %v660
        %1926 = vmatprep.subr.bf16.mxu0 0
        %1927 = vmatpush1.bf16.msra.mxu0 %v661
        %1928 = vmatprep.subr.bf16.mxu0 0
        %1929 = vmatpush1.bf16.msra.mxu0 %v662
        %1930 = vmatprep.subr.bf16.mxu0 0
        %1931 = vmatpush1.bf16.msra.mxu0 %v663
        %1932 = vmatprep.subr.bf16.mxu0 0
        %1933 = vmatpush1.bf16.msra.mxu0 %v664
        %1934 = vmatprep.subr.bf16.mxu0 0
        %1935 = vmatpush1.bf16.msra.mxu0 %v665
        %1936 = vmatprep.mubr.bf16.mxu0 %v1079
        %1937 = vmatmul.mubr.bf16.gmra.mrb[0].mxu0 %v1078
        %v1938 = vpop.f32.mrb[0].mxu0
        %v1939 = vadd.f32 %v1842, %v1938
        %v1940 = vpop.f32.mrb[0].mxu0
        %v1941 = vpop.f32.mrb[0].mxu0
        %v1942 = vadd.f32 %v1845, %v1941
        %v1943 = vpop.f32.mrb[0].mxu0
        %1944 = vmatprep.mubr.bf16.mxu0 %v1095
        %1945 = vmatmul.mubr.bf16.gmra.mrb[0].mxu0 %v1094
        %v1946 = vpop.f32.mrb[0].mxu0
        %v1947 = vadd.f32 %v1850, %v1946
        %v1948 = vpop.f32.mrb[0].mxu0
        %v1949 = vpop.f32.mrb[0].mxu0
        %v1950 = vadd.f32 %v1853, %v1949
        %v1951 = vpop.f32.mrb[0].mxu0
        %1952 = vmatprep.mubr.bf16.mxu0 %v1111
        %1953 = vmatmul.mubr.bf16.gmra.mrb[0].mxu0 %v1110
        %v1954 = vpop.f32.mrb[0].mxu0
        %v1955 = vadd.f32 %v1858, %v1954
        %v1956 = vpop.f32.mrb[0].mxu0
        %v1957 = vpop.f32.mrb[0].mxu0
        %v1958 = vadd.f32 %v1861, %v1957
        %v1959 = vpop.f32.mrb[0].mxu0
        %1960 = vmatprep.mubr.bf16.mxu0 %v1127
        %1961 = vmatmul.mubr.bf16.gmra.mrb[0].mxu0 %v1126
        %v1962 = vpop.f32.mrb[0].mxu0
        %v1963 = vadd.f32 %v1866, %v1962
        %v1964 = vpop.f32.mrb[0].mxu0
        %v1965 = vpop.f32.mrb[0].mxu0
        %v1966 = vadd.f32 %v1869, %v1965
        %v1967 = vpop.f32.mrb[0].mxu0
        %1968 = vmatprep.mubr.bf16.mxu0 %v1143
        %1969 = vmatmul.mubr.bf16.gmra.mrb[0].mxu0 %v1142
        %v1970 = vpop.f32.mrb[0].mxu0
        %v1971 = vadd.f32 %v1874, %v1970
        %v1972 = vpop.f32.mrb[0].mxu0
        %v1973 = vpop.f32.mrb[0].mxu0
        %v1974 = vadd.f32 %v1877, %v1973
        %v1975 = vpop.f32.mrb[0].mxu0
        %1976 = vmatprep.mubr.bf16.mxu0 %v1159
        %1977 = vmatmul.mubr.bf16.gmra.mrb[0].mxu0 %v1158
        %v1978 = vpop.f32.mrb[0].mxu0
        %v1979 = vadd.f32 %v1882, %v1978
        %v1980 = vpop.f32.mrb[0].mxu0
        %v1981 = vpop.f32.mrb[0].mxu0
        %v1982 = vadd.f32 %v1885, %v1981
        %v1983 = vpop.f32.mrb[0].mxu0
        %1984 = vmatprep.mubr.bf16.mxu0 %v1175
        %1985 = vmatmul.mubr.bf16.gmra.mrb[0].mxu0 %v1174
        %v1986 = vpop.f32.mrb[0].mxu0
        %v1987 = vadd.f32 %v1890, %v1986
        %v1988 = vpop.f32.mrb[0].mxu0
        %v1989 = vpop.f32.mrb[0].mxu0
        %v1990 = vadd.f32 %v1893, %v1989
        %v1991 = vpop.f32.mrb[0].mxu0
        %1992 = vmatprep.mubr.bf16.mxu0 %v1191
        %1993 = vmatmul.mubr.bf16.gmra.mrb[0].mxu0 %v1190
        %v1994 = vpop.f32.mrb[0].mxu0
        %v1995 = vadd.f32 %v1898, %v1994
        %v1996 = vpop.f32.mrb[0].mxu0
        %v1997 = vpop.f32.mrb[0].mxu0
        %v1998 = vadd.f32 %v1901, %v1997
        %v1999 = vpop.f32.mrb[0].mxu0
        %2000 = vdwg.mxu0
        %2001 = vmatprep.subr.bf16.mxu0 0
        %2002 = vmatpush1.bf16.msra.mxu0 %v666
        %2003 = vmatprep.subr.bf16.mxu0 0
        %2004 = vmatpush1.bf16.msra.mxu0 %v667
        %2005 = vmatprep.subr.bf16.mxu0 0
        %2006 = vmatpush1.bf16.msra.mxu0 %v668
        %2007 = vmatprep.subr.bf16.mxu0 0
        %2008 = vmatpush1.bf16.msra.mxu0 %v669
        %2009 = vmatprep.subr.bf16.mxu0 0
        %2010 = vmatpush1.bf16.msra.mxu0 %v670
        %2011 = vmatprep.subr.bf16.mxu0 0
        %2012 = vmatpush1.bf16.msra.mxu0 %v671
        %2013 = vmatprep.subr.bf16.mxu0 0
        %2014 = vmatpush1.bf16.msra.mxu0 %v672
        %2015 = vmatprep.subr.bf16.mxu0 0
        %2016 = vmatpush1.bf16.msra.mxu0 %v673
        %2017 = vmatprep.subr.bf16.mxu0 0
        %2018 = vmatpush1.bf16.msra.mxu0 %v674
        %2019 = vmatprep.subr.bf16.mxu0 0
        %2020 = vmatpush1.bf16.msra.mxu0 %v675
        %2021 = vmatprep.subr.bf16.mxu0 0
        %2022 = vmatpush1.bf16.msra.mxu0 %v676
        %2023 = vmatprep.subr.bf16.mxu0 0
        %2024 = vmatpush1.bf16.msra.mxu0 %v677
        %2025 = vmatprep.subr.bf16.mxu0 0
        %2026 = vmatpush1.bf16.msra.mxu0 %v678
        %2027 = vmatprep.subr.bf16.mxu0 0
        %2028 = vmatpush1.bf16.msra.mxu0 %v679
        %2029 = vmatprep.subr.bf16.mxu0 0
        %2030 = vmatpush1.bf16.msra.mxu0 %v680
        %2031 = vmatprep.subr.bf16.mxu0 0
        %2032 = vmatpush1.bf16.msra.mxu0 %v681
        %2033 = vmatprep.mubr.bf16.mxu0 %v1081
        %2034 = vmatmul.mubr.bf16.gmra.mrb[0].mxu0 %v1080
        %v2035 = vpop.f32.mrb[0].mxu0
        %v2036 = vadd.f32 %v1939, %v2035
        %v2037 = vpop.f32.mrb[0].mxu0
        %v2038 = vpop.f32.mrb[0].mxu0
        %v2039 = vadd.f32 %v1942, %v2038
        %v2040 = vpop.f32.mrb[0].mxu0
        %2041 = vmatprep.mubr.bf16.mxu0 %v1097
        %2042 = vmatmul.mubr.bf16.gmra.mrb[0].mxu0 %v1096
        %v2043 = vpop.f32.mrb[0].mxu0
        %v2044 = vadd.f32 %v1947, %v2043
        %v2045 = vpop.f32.mrb[0].mxu0
        %v2046 = vpop.f32.mrb[0].mxu0
        %v2047 = vadd.f32 %v1950, %v2046
        %v2048 = vpop.f32.mrb[0].mxu0
        %2049 = vmatprep.mubr.bf16.mxu0 %v1113
        %2050 = vmatmul.mubr.bf16.gmra.mrb[0].mxu0 %v1112
        %v2051 = vpop.f32.mrb[0].mxu0
        %v2052 = vadd.f32 %v1955, %v2051
        %v2053 = vpop.f32.mrb[0].mxu0
        %v2054 = vpop.f32.mrb[0].mxu0
        %v2055 = vadd.f32 %v1958, %v2054
        %v2056 = vpop.f32.mrb[0].mxu0
        %2057 = vmatprep.mubr.bf16.mxu0 %v1129
        %2058 = vmatmul.mubr.bf16.gmra.mrb[0].mxu0 %v1128
        %v2059 = vpop.f32.mrb[0].mxu0
        %v2060 = vadd.f32 %v1963, %v2059
        %v2061 = vpop.f32.mrb[0].mxu0
        %v2062 = vpop.f32.mrb[0].mxu0
        %v2063 = vadd.f32 %v1966, %v2062
        %v2064 = vpop.f32.mrb[0].mxu0
        %2065 = vmatprep.mubr.bf16.mxu0 %v1145
        %2066 = vmatmul.mubr.bf16.gmra.mrb[0].mxu0 %v1144
        %v2067 = vpop.f32.mrb[0].mxu0
        %v2068 = vadd.f32 %v1971, %v2067
        %v2069 = vpop.f32.mrb[0].mxu0
        %v2070 = vpop.f32.mrb[0].mxu0
        %v2071 = vadd.f32 %v1974, %v2070
        %v2072 = vpop.f32.mrb[0].mxu0
        %2073 = vmatprep.mubr.bf16.mxu0 %v1161
        %2074 = vmatmul.mubr.bf16.gmra.mrb[0].mxu0 %v1160
        %v2075 = vpop.f32.mrb[0].mxu0
        %v2076 = vadd.f32 %v1979, %v2075
        %v2077 = vpop.f32.mrb[0].mxu0
        %v2078 = vpop.f32.mrb[0].mxu0
        %v2079 = vadd.f32 %v1982, %v2078
        %v2080 = vpop.f32.mrb[0].mxu0
        %2081 = vmatprep.mubr.bf16.mxu0 %v1177
        %2082 = vmatmul.mubr.bf16.gmra.mrb[0].mxu0 %v1176
        %v2083 = vpop.f32.mrb[0].mxu0
        %v2084 = vadd.f32 %v1987, %v2083
        %v2085 = vpop.f32.mrb[0].mxu0
        %v2086 = vpop.f32.mrb[0].mxu0
        %v2087 = vadd.f32 %v1990, %v2086
        %v2088 = vpop.f32.mrb[0].mxu0
        %2089 = vmatprep.mubr.bf16.mxu0 %v1193
        %2090 = vmatmul.mubr.bf16.gmra.mrb[0].mxu0 %v1192
        %v2091 = vpop.f32.mrb[0].mxu0
        %v2092 = vadd.f32 %v1995, %v2091
        %v2093 = vpop.f32.mrb[0].mxu0
        %v2094 = vpop.f32.mrb[0].mxu0
        %v2095 = vadd.f32 %v1998, %v2094
        %v2096 = vpop.f32.mrb[0].mxu0
        %2097 = vdwg.mxu0
        %v2098 = vxor.u32 %v2036, 2147483648
        %v2099 = vxor.u32 %v2039, 2147483648
        %v2100 = vxor.u32 %v2044, 2147483648
        %v2101 = vxor.u32 %v2047, 2147483648
        %v2102 = vxor.u32 %v2052, 2147483648
        %v2103 = vxor.u32 %v2055, 2147483648
        %v2104 = vxor.u32 %v2060, 2147483648
        %v2105 = vxor.u32 %v2063, 2147483648
        %v2106 = vxor.u32 %v2068, 2147483648
        %v2107 = vxor.u32 %v2071, 2147483648
        %v2108 = vxor.u32 %v2076, 2147483648
        %v2109 = vxor.u32 %v2079, 2147483648
        %v2110 = vxor.u32 %v2084, 2147483648
        %v2111 = vxor.u32 %v2087, 2147483648
        %v2112 = vxor.u32 %v2092, 2147483648
        %v2113 = vxor.u32 %v2095, 2147483648
        %v2114 = vmul.f32 %v2098, 1.442695
        %v2115 = vpow.pop %v2114
        %v2116 = vmul.f32 %v2099, 1.442695
        %v2117 = vpow.pop %v2116
        %v2118 = vmul.f32 %v2100, 1.442695
        %v2119 = vpow.pop %v2118
        %v2120 = vmul.f32 %v2101, 1.442695
        %v2121 = vpow.pop %v2120
        %v2122 = vmul.f32 %v2102, 1.442695
        %v2123 = vpow.pop %v2122
        %v2124 = vmul.f32 %v2103, 1.442695
        %v2125 = vpow.pop %v2124
        %v2126 = vmul.f32 %v2104, 1.442695
        %v2127 = vpow.pop %v2126
        %v2128 = vmul.f32 %v2105, 1.442695
        %v2129 = vpow.pop %v2128
        %v2130 = vmul.f32 %v2106, 1.442695
        %v2131 = vpow.pop %v2130
        %v2132 = vmul.f32 %v2107, 1.442695
        %v2133 = vpow.pop %v2132
        %v2134 = vmul.f32 %v2108, 1.442695
        %v2135 = vpow.pop %v2134
        %v2136 = vmul.f32 %v2109, 1.442695
        %v2137 = vpow.pop %v2136
        %v2138 = vmul.f32 %v2110, 1.442695
        %v2139 = vpow.pop %v2138
        %v2140 = vmul.f32 %v2111, 1.442695
        %v2141 = vpow.pop %v2140
        %v2142 = vmul.f32 %v2112, 1.442695
        %v2143 = vpow.pop %v2142
        %v2144 = vmul.f32 %v2113, 1.442695
        %v2145 = vpow.pop %v2144
        %v2146 = vadd.f32 %v2115, 1.0
        %v2147 = vadd.f32 %v2117, 1.0
        %v2148 = vadd.f32 %v2119, 1.0
        %v2149 = vadd.f32 %v2121, 1.0
        %v2150 = vadd.f32 %v2123, 1.0
        %v2151 = vadd.f32 %v2125, 1.0
        %v2152 = vadd.f32 %v2127, 1.0
        %v2153 = vadd.f32 %v2129, 1.0
        %v2154 = vadd.f32 %v2131, 1.0
        %v2155 = vadd.f32 %v2133, 1.0
        %v2156 = vadd.f32 %v2135, 1.0
        %v2157 = vadd.f32 %v2137, 1.0
        %v2158 = vadd.f32 %v2139, 1.0
        %v2159 = vadd.f32 %v2141, 1.0
        %v2160 = vadd.f32 %v2143, 1.0
        %v2161 = vadd.f32 %v2145, 1.0
        %v2162 = vrcp.pop %v2146
        %v2163 = vmul.f32 1.0, %v2162
        %v2164 = vrcp.pop %v2147
        %v2165 = vmul.f32 1.0, %v2164
        %v2166 = vrcp.pop %v2148
        %v2167 = vmul.f32 1.0, %v2166
        %v2168 = vrcp.pop %v2149
        %v2169 = vmul.f32 1.0, %v2168
        %v2170 = vrcp.pop %v2150
        %v2171 = vmul.f32 1.0, %v2170
        %v2172 = vrcp.pop %v2151
        %v2173 = vmul.f32 1.0, %v2172
        %v2174 = vrcp.pop %v2152
        %v2175 = vmul.f32 1.0, %v2174
        %v2176 = vrcp.pop %v2153
        %v2177 = vmul.f32 1.0, %v2176
        %v2178 = vrcp.pop %v2154
        %v2179 = vmul.f32 1.0, %v2178
        %v2180 = vrcp.pop %v2155
        %v2181 = vmul.f32 1.0, %v2180
        %v2182 = vrcp.pop %v2156
        %v2183 = vmul.f32 1.0, %v2182
        %v2184 = vrcp.pop %v2157
        %v2185 = vmul.f32 1.0, %v2184
        %v2186 = vrcp.pop %v2158
        %v2187 = vmul.f32 1.0, %v2186
        %v2188 = vrcp.pop %v2159
        %v2189 = vmul.f32 1.0, %v2188
        %v2190 = vrcp.pop %v2160
        %v2191 = vmul.f32 1.0, %v2190
        %v2192 = vrcp.pop %v2161
        %v2193 = vmul.f32 1.0, %v2192
        %v2194 = vmul.f32 %v2036, %v2163
        %v2195 = vmul.f32 %v2039, %v2165
        %v2196 = vmul.f32 %v2044, %v2167
        %v2197 = vmul.f32 %v2047, %v2169
        %v2198 = vmul.f32 %v2052, %v2171
        %v2199 = vmul.f32 %v2055, %v2173
        %v2200 = vmul.f32 %v2060, %v2175
        %v2201 = vmul.f32 %v2063, %v2177
        %v2202 = vmul.f32 %v2068, %v2179
        %v2203 = vmul.f32 %v2071, %v2181
        %v2204 = vmul.f32 %v2076, %v2183
        %v2205 = vmul.f32 %v2079, %v2185
        %v2206 = vmul.f32 %v2084, %v2187
        %v2207 = vmul.f32 %v2087, %v2189
        %v2208 = vmul.f32 %v2092, %v2191
        %v2209 = vmul.f32 %v2095, %v2193
        %vm2210 = vcmask 130048
        %v2211 = vsel %vm2210, %v2194, 0.0
        %2212 = vadd.xlane.f32.xlu0 %v2211
        %v2213 = vpop.xlane.xlu0 %2212
        %v2214 = vsel %vm2210, %v2195, 0.0
        %2215 = vadd.xlane.f32.xlu0 %v2214
        %v2216 = vpop.xlane.xlu0 %2215
        %v2217 = vsel %vm2210, %v2196, 0.0
        %2218 = vadd.xlane.f32.xlu0 %v2217
        %v2219 = vpop.xlane.xlu0 %2218
        %v2220 = vsel %vm2210, %v2197, 0.0
        %2221 = vadd.xlane.f32.xlu0 %v2220
        %v2222 = vpop.xlane.xlu0 %2221
        %v2223 = vsel %vm2210, %v2198, 0.0
        %2224 = vadd.xlane.f32.xlu0 %v2223
        %v2225 = vpop.xlane.xlu0 %2224
        %v2226 = vsel %vm2210, %v2199, 0.0
        %2227 = vadd.xlane.f32.xlu0 %v2226
        %v2228 = vpop.xlane.xlu0 %2227
        %v2229 = vsel %vm2210, %v2200, 0.0
        %2230 = vadd.xlane.f32.xlu0 %v2229
        %v2231 = vpop.xlane.xlu0 %2230
        %v2232 = vsel %vm2210, %v2201, 0.0
        %2233 = vadd.xlane.f32.xlu0 %v2232
        %v2234 = vpop.xlane.xlu0 %2233
        %v2235 = vsel %vm2210, %v2202, 0.0
        %2236 = vadd.xlane.f32.xlu0 %v2235
        %v2237 = vpop.xlane.xlu0 %2236
        %v2238 = vsel %vm2210, %v2203, 0.0
        %2239 = vadd.xlane.f32.xlu0 %v2238
        %v2240 = vpop.xlane.xlu0 %2239
        %v2241 = vsel %vm2210, %v2204, 0.0
        %2242 = vadd.xlane.f32.xlu0 %v2241
        %v2243 = vpop.xlane.xlu0 %2242
        %v2244 = vsel %vm2210, %v2205, 0.0
        %2245 = vadd.xlane.f32.xlu0 %v2244
        %v2246 = vpop.xlane.xlu0 %2245
        %v2247 = vsel %vm2210, %v2206, 0.0
        %2248 = vadd.xlane.f32.xlu0 %v2247
        %v2249 = vpop.xlane.xlu0 %2248
        %v2250 = vsel %vm2210, %v2207, 0.0
        %2251 = vadd.xlane.f32.xlu0 %v2250
        %v2252 = vpop.xlane.xlu0 %2251
        %v2253 = vsel %vm2210, %v2208, 0.0
        %2254 = vadd.xlane.f32.xlu0 %v2253
        %v2255 = vpop.xlane.xlu0 %2254
        %v2256 = vsel %vm2210, %v2209, 0.0
        %2257 = vadd.xlane.f32.xlu0 %v2256
        %v2258 = vpop.xlane.xlu0 %2257
        %v2259 = vld [vmem:[%s155] sm:$0x1]
        %v2276 = vlaneseq
        %v2277 = vshrl.u32 %v2276, 7
        %v2278 = vsub.s32 0, %v2277
        %v2279 = vrot.slane %v2213, %v2278
        %v2280 = vlaneseq
        %v2281 = vshrl.u32 %v2280, 7
        %v2282 = vsub.s32 1, %v2281
        %v2283 = vrot.slane %v2213, %v2282
        %v2284 = vlaneseq
        %v2285 = vshrl.u32 %v2284, 7
        %v2286 = vsub.s32 2, %v2285
        %v2287 = vrot.slane %v2213, %v2286
        %v2288 = vlaneseq
        %v2289 = vshrl.u32 %v2288, 7
        %v2290 = vsub.s32 3, %v2289
        %v2291 = vrot.slane %v2213, %v2290
        %v2292 = vlaneseq
        %v2293 = vshrl.u32 %v2292, 7
        %v2294 = vsub.s32 4, %v2293
        %v2295 = vrot.slane %v2213, %v2294
        %v2296 = vlaneseq
        %v2297 = vshrl.u32 %v2296, 7
        %v2298 = vsub.s32 5, %v2297
        %v2299 = vrot.slane %v2213, %v2298
        %v2300 = vlaneseq
        %v2301 = vshrl.u32 %v2300, 7
        %v2302 = vsub.s32 6, %v2301
        %v2303 = vrot.slane %v2213, %v2302
        %v2304 = vlaneseq
        %v2305 = vshrl.u32 %v2304, 7
        %v2306 = vsub.s32 7, %v2305
        %v2307 = vrot.slane %v2213, %v2306
        %v2308 = vlaneseq
        %v2309 = vshrl.u32 %v2308, 7
        %v2310 = vsub.s32 0, %v2309
        %v2311 = vrot.slane %v2216, %v2310
        %v2312 = vlaneseq
        %v2313 = vshrl.u32 %v2312, 7
        %v2314 = vsub.s32 1, %v2313
        %v2315 = vrot.slane %v2216, %v2314
        %v2316 = vlaneseq
        %v2317 = vshrl.u32 %v2316, 7
        %v2318 = vsub.s32 2, %v2317
        %v2319 = vrot.slane %v2216, %v2318
        %v2320 = vlaneseq
        %v2321 = vshrl.u32 %v2320, 7
        %v2322 = vsub.s32 3, %v2321
        %v2323 = vrot.slane %v2216, %v2322
        %v2324 = vlaneseq
        %v2325 = vshrl.u32 %v2324, 7
        %v2326 = vsub.s32 4, %v2325
        %v2327 = vrot.slane %v2216, %v2326
        %v2328 = vlaneseq
        %v2329 = vshrl.u32 %v2328, 7
        %v2330 = vsub.s32 5, %v2329
        %v2331 = vrot.slane %v2216, %v2330
        %v2332 = vlaneseq
        %v2333 = vshrl.u32 %v2332, 7
        %v2334 = vsub.s32 6, %v2333
        %v2335 = vrot.slane %v2216, %v2334
        %v2336 = vlaneseq
        %v2337 = vshrl.u32 %v2336, 7
        %v2338 = vsub.s32 7, %v2337
        %v2339 = vrot.slane %v2216, %v2338
        %v2340 = vlaneseq
        %v2341 = vshrl.u32 %v2340, 7
        %v2342 = vsub.s32 0, %v2341
        %v2343 = vrot.slane %v2219, %v2342
        %v2344 = vlaneseq
        %v2345 = vshrl.u32 %v2344, 7
        %v2346 = vsub.s32 1, %v2345
        %v2347 = vrot.slane %v2219, %v2346
        %v2348 = vlaneseq
        %v2349 = vshrl.u32 %v2348, 7
        %v2350 = vsub.s32 2, %v2349
        %v2351 = vrot.slane %v2219, %v2350
        %v2352 = vlaneseq
        %v2353 = vshrl.u32 %v2352, 7
        %v2354 = vsub.s32 3, %v2353
        %v2355 = vrot.slane %v2219, %v2354
        %v2356 = vlaneseq
        %v2357 = vshrl.u32 %v2356, 7
        %v2358 = vsub.s32 4, %v2357
        %v2359 = vrot.slane %v2219, %v2358
        %v2360 = vlaneseq
        %v2361 = vshrl.u32 %v2360, 7
        %v2362 = vsub.s32 5, %v2361
        %v2363 = vrot.slane %v2219, %v2362
        %v2364 = vlaneseq
        %v2365 = vshrl.u32 %v2364, 7
        %v2366 = vsub.s32 6, %v2365
        %v2367 = vrot.slane %v2219, %v2366
        %v2368 = vlaneseq
        %v2369 = vshrl.u32 %v2368, 7
        %v2370 = vsub.s32 7, %v2369
        %v2371 = vrot.slane %v2219, %v2370
        %v2372 = vlaneseq
        %v2373 = vshrl.u32 %v2372, 7
        %v2374 = vsub.s32 0, %v2373
        %v2375 = vrot.slane %v2222, %v2374
        %v2376 = vlaneseq
        %v2377 = vshrl.u32 %v2376, 7
        %v2378 = vsub.s32 1, %v2377
        %v2379 = vrot.slane %v2222, %v2378
        %v2380 = vlaneseq
        %v2381 = vshrl.u32 %v2380, 7
        %v2382 = vsub.s32 2, %v2381
        %v2383 = vrot.slane %v2222, %v2382
        %v2384 = vlaneseq
        %v2385 = vshrl.u32 %v2384, 7
        %v2386 = vsub.s32 3, %v2385
        %v2387 = vrot.slane %v2222, %v2386
        %v2388 = vlaneseq
        %v2389 = vshrl.u32 %v2388, 7
        %v2390 = vsub.s32 4, %v2389
        %v2391 = vrot.slane %v2222, %v2390
        %v2392 = vlaneseq
        %v2393 = vshrl.u32 %v2392, 7
        %v2394 = vsub.s32 5, %v2393
        %v2395 = vrot.slane %v2222, %v2394
        %v2396 = vlaneseq
        %v2397 = vshrl.u32 %v2396, 7
        %v2398 = vsub.s32 6, %v2397
        %v2399 = vrot.slane %v2222, %v2398
        %v2400 = vlaneseq
        %v2401 = vshrl.u32 %v2400, 7
        %v2402 = vsub.s32 7, %v2401
        %v2403 = vrot.slane %v2222, %v2402
        %v2404 = vlaneseq
        %v2405 = vshrl.u32 %v2404, 7
        %v2406 = vsub.s32 0, %v2405
        %v2407 = vrot.slane %v2225, %v2406
        %v2408 = vlaneseq
        %v2409 = vshrl.u32 %v2408, 7
        %v2410 = vsub.s32 1, %v2409
        %v2411 = vrot.slane %v2225, %v2410
        %v2412 = vlaneseq
        %v2413 = vshrl.u32 %v2412, 7
        %v2414 = vsub.s32 2, %v2413
        %v2415 = vrot.slane %v2225, %v2414
        %v2416 = vlaneseq
        %v2417 = vshrl.u32 %v2416, 7
        %v2418 = vsub.s32 3, %v2417
        %v2419 = vrot.slane %v2225, %v2418
        %v2420 = vlaneseq
        %v2421 = vshrl.u32 %v2420, 7
        %v2422 = vsub.s32 4, %v2421
        %v2423 = vrot.slane %v2225, %v2422
        %v2424 = vlaneseq
        %v2425 = vshrl.u32 %v2424, 7
        %v2426 = vsub.s32 5, %v2425
        %v2427 = vrot.slane %v2225, %v2426
        %v2428 = vlaneseq
        %v2429 = vshrl.u32 %v2428, 7
        %v2430 = vsub.s32 6, %v2429
        %v2431 = vrot.slane %v2225, %v2430
        %v2432 = vlaneseq
        %v2433 = vshrl.u32 %v2432, 7
        %v2434 = vsub.s32 7, %v2433
        %v2435 = vrot.slane %v2225, %v2434
        %v2436 = vlaneseq
        %v2437 = vshrl.u32 %v2436, 7
        %v2438 = vsub.s32 0, %v2437
        %v2439 = vrot.slane %v2228, %v2438
        %v2440 = vlaneseq
        %v2441 = vshrl.u32 %v2440, 7
        %v2442 = vsub.s32 1, %v2441
        %v2443 = vrot.slane %v2228, %v2442
        %v2444 = vlaneseq
        %v2445 = vshrl.u32 %v2444, 7
        %v2446 = vsub.s32 2, %v2445
        %v2447 = vrot.slane %v2228, %v2446
        %v2448 = vlaneseq
        %v2449 = vshrl.u32 %v2448, 7
        %v2450 = vsub.s32 3, %v2449
        %v2451 = vrot.slane %v2228, %v2450
        %v2452 = vlaneseq
        %v2453 = vshrl.u32 %v2452, 7
        %v2454 = vsub.s32 4, %v2453
        %v2455 = vrot.slane %v2228, %v2454
        %v2456 = vlaneseq
        %v2457 = vshrl.u32 %v2456, 7
        %v2458 = vsub.s32 5, %v2457
        %v2459 = vrot.slane %v2228, %v2458
        %v2460 = vlaneseq
        %v2461 = vshrl.u32 %v2460, 7
        %v2462 = vsub.s32 6, %v2461
        %v2463 = vrot.slane %v2228, %v2462
        %v2464 = vlaneseq
        %v2465 = vshrl.u32 %v2464, 7
        %v2466 = vsub.s32 7, %v2465
        %v2467 = vrot.slane %v2228, %v2466
        %v2468 = vlaneseq
        %v2469 = vshrl.u32 %v2468, 7
        %v2470 = vsub.s32 0, %v2469
        %v2471 = vrot.slane %v2231, %v2470
        %v2472 = vlaneseq
        %v2473 = vshrl.u32 %v2472, 7
        %v2474 = vsub.s32 1, %v2473
        %v2475 = vrot.slane %v2231, %v2474
        %v2476 = vlaneseq
        %v2477 = vshrl.u32 %v2476, 7
        %v2478 = vsub.s32 2, %v2477
        %v2479 = vrot.slane %v2231, %v2478
        %v2480 = vlaneseq
        %v2481 = vshrl.u32 %v2480, 7
        %v2482 = vsub.s32 3, %v2481
        %v2483 = vrot.slane %v2231, %v2482
        %v2484 = vlaneseq
        %v2485 = vshrl.u32 %v2484, 7
        %v2486 = vsub.s32 4, %v2485
        %v2487 = vrot.slane %v2231, %v2486
        %v2488 = vlaneseq
        %v2489 = vshrl.u32 %v2488, 7
        %v2490 = vsub.s32 5, %v2489
        %v2491 = vrot.slane %v2231, %v2490
        %v2492 = vlaneseq
        %v2493 = vshrl.u32 %v2492, 7
        %v2494 = vsub.s32 6, %v2493
        %v2495 = vrot.slane %v2231, %v2494
        %v2496 = vlaneseq
        %v2497 = vshrl.u32 %v2496, 7
        %v2498 = vsub.s32 7, %v2497
        %v2499 = vrot.slane %v2231, %v2498
        %v2500 = vlaneseq
        %v2501 = vshrl.u32 %v2500, 7
        %v2502 = vsub.s32 0, %v2501
        %v2503 = vrot.slane %v2234, %v2502
        %v2504 = vlaneseq
        %v2505 = vshrl.u32 %v2504, 7
        %v2506 = vsub.s32 1, %v2505
        %v2507 = vrot.slane %v2234, %v2506
        %v2508 = vlaneseq
        %v2509 = vshrl.u32 %v2508, 7
        %v2510 = vsub.s32 2, %v2509
        %v2511 = vrot.slane %v2234, %v2510
        %v2512 = vlaneseq
        %v2513 = vshrl.u32 %v2512, 7
        %v2514 = vsub.s32 3, %v2513
        %v2515 = vrot.slane %v2234, %v2514
        %v2516 = vlaneseq
        %v2517 = vshrl.u32 %v2516, 7
        %v2518 = vsub.s32 4, %v2517
        %v2519 = vrot.slane %v2234, %v2518
        %v2520 = vlaneseq
        %v2521 = vshrl.u32 %v2520, 7
        %v2522 = vsub.s32 5, %v2521
        %v2523 = vrot.slane %v2234, %v2522
        %v2524 = vlaneseq
        %v2525 = vshrl.u32 %v2524, 7
        %v2526 = vsub.s32 6, %v2525
        %v2527 = vrot.slane %v2234, %v2526
        %v2528 = vlaneseq
        %v2529 = vshrl.u32 %v2528, 7
        %v2530 = vsub.s32 7, %v2529
        %v2531 = vrot.slane %v2234, %v2530
        %v2532 = vlaneseq
        %v2533 = vshrl.u32 %v2532, 7
        %v2534 = vsub.s32 0, %v2533
        %v2535 = vrot.slane %v2237, %v2534
        %v2536 = vlaneseq
        %v2537 = vshrl.u32 %v2536, 7
        %v2538 = vsub.s32 1, %v2537
        %v2539 = vrot.slane %v2237, %v2538
        %v2540 = vlaneseq
        %v2541 = vshrl.u32 %v2540, 7
        %v2542 = vsub.s32 2, %v2541
        %v2543 = vrot.slane %v2237, %v2542
        %v2544 = vlaneseq
        %v2545 = vshrl.u32 %v2544, 7
        %v2546 = vsub.s32 3, %v2545
        %v2547 = vrot.slane %v2237, %v2546
        %v2548 = vlaneseq
        %v2549 = vshrl.u32 %v2548, 7
        %v2550 = vsub.s32 4, %v2549
        %v2551 = vrot.slane %v2237, %v2550
        %v2552 = vlaneseq
        %v2553 = vshrl.u32 %v2552, 7
        %v2554 = vsub.s32 5, %v2553
        %v2555 = vrot.slane %v2237, %v2554
        %v2556 = vlaneseq
        %v2557 = vshrl.u32 %v2556, 7
        %v2558 = vsub.s32 6, %v2557
        %v2559 = vrot.slane %v2237, %v2558
        %v2560 = vlaneseq
        %v2561 = vshrl.u32 %v2560, 7
        %v2562 = vsub.s32 7, %v2561
        %v2563 = vrot.slane %v2237, %v2562
        %v2564 = vlaneseq
        %v2565 = vshrl.u32 %v2564, 7
        %v2566 = vsub.s32 0, %v2565
        %v2567 = vrot.slane %v2240, %v2566
        %v2568 = vlaneseq
        %v2569 = vshrl.u32 %v2568, 7
        %v2570 = vsub.s32 1, %v2569
        %v2571 = vrot.slane %v2240, %v2570
        %v2572 = vlaneseq
        %v2573 = vshrl.u32 %v2572, 7
        %v2574 = vsub.s32 2, %v2573
        %v2575 = vrot.slane %v2240, %v2574
        %v2576 = vlaneseq
        %v2577 = vshrl.u32 %v2576, 7
        %v2578 = vsub.s32 3, %v2577
        %v2579 = vrot.slane %v2240, %v2578
        %v2580 = vlaneseq
        %v2581 = vshrl.u32 %v2580, 7
        %v2582 = vsub.s32 4, %v2581
        %v2583 = vrot.slane %v2240, %v2582
        %v2584 = vlaneseq
        %v2585 = vshrl.u32 %v2584, 7
        %v2586 = vsub.s32 5, %v2585
        %v2587 = vrot.slane %v2240, %v2586
        %v2588 = vlaneseq
        %v2589 = vshrl.u32 %v2588, 7
        %v2590 = vsub.s32 6, %v2589
        %v2591 = vrot.slane %v2240, %v2590
        %v2592 = vlaneseq
        %v2593 = vshrl.u32 %v2592, 7
        %v2594 = vsub.s32 7, %v2593
        %v2595 = vrot.slane %v2240, %v2594
        %v2596 = vlaneseq
        %v2597 = vshrl.u32 %v2596, 7
        %v2598 = vsub.s32 0, %v2597
        %v2599 = vrot.slane %v2243, %v2598
        %v2600 = vlaneseq
        %v2601 = vshrl.u32 %v2600, 7
        %v2602 = vsub.s32 1, %v2601
        %v2603 = vrot.slane %v2243, %v2602
        %v2604 = vlaneseq
        %v2605 = vshrl.u32 %v2604, 7
        %v2606 = vsub.s32 2, %v2605
        %v2607 = vrot.slane %v2243, %v2606
        %v2608 = vlaneseq
        %v2609 = vshrl.u32 %v2608, 7
        %v2610 = vsub.s32 3, %v2609
        %v2611 = vrot.slane %v2243, %v2610
        %v2612 = vlaneseq
        %v2613 = vshrl.u32 %v2612, 7
        %v2614 = vsub.s32 4, %v2613
        %v2615 = vrot.slane %v2243, %v2614
        %v2616 = vlaneseq
        %v2617 = vshrl.u32 %v2616, 7
        %v2618 = vsub.s32 5, %v2617
        %v2619 = vrot.slane %v2243, %v2618
        %v2620 = vlaneseq
        %v2621 = vshrl.u32 %v2620, 7
        %v2622 = vsub.s32 6, %v2621
        %v2623 = vrot.slane %v2243, %v2622
        %v2624 = vlaneseq
        %v2625 = vshrl.u32 %v2624, 7
        %v2626 = vsub.s32 7, %v2625
        %v2627 = vrot.slane %v2243, %v2626
        %v2628 = vlaneseq
        %v2629 = vshrl.u32 %v2628, 7
        %v2630 = vsub.s32 0, %v2629
        %v2631 = vrot.slane %v2246, %v2630
        %v2632 = vlaneseq
        %v2633 = vshrl.u32 %v2632, 7
        %v2634 = vsub.s32 1, %v2633
        %v2635 = vrot.slane %v2246, %v2634
        %v2636 = vlaneseq
        %v2637 = vshrl.u32 %v2636, 7
        %v2638 = vsub.s32 2, %v2637
        %v2639 = vrot.slane %v2246, %v2638
        %v2640 = vlaneseq
        %v2641 = vshrl.u32 %v2640, 7
        %v2642 = vsub.s32 3, %v2641
        %v2643 = vrot.slane %v2246, %v2642
        %v2644 = vlaneseq
        %v2645 = vshrl.u32 %v2644, 7
        %v2646 = vsub.s32 4, %v2645
        %v2647 = vrot.slane %v2246, %v2646
        %v2648 = vlaneseq
        %v2649 = vshrl.u32 %v2648, 7
        %v2650 = vsub.s32 5, %v2649
        %v2651 = vrot.slane %v2246, %v2650
        %v2652 = vlaneseq
        %v2653 = vshrl.u32 %v2652, 7
        %v2654 = vsub.s32 6, %v2653
        %v2655 = vrot.slane %v2246, %v2654
        %v2656 = vlaneseq
        %v2657 = vshrl.u32 %v2656, 7
        %v2658 = vsub.s32 7, %v2657
        %v2659 = vrot.slane %v2246, %v2658
        %v2660 = vlaneseq
        %v2661 = vshrl.u32 %v2660, 7
        %v2662 = vsub.s32 0, %v2661
        %v2663 = vrot.slane %v2249, %v2662
        %v2664 = vlaneseq
        %v2665 = vshrl.u32 %v2664, 7
        %v2666 = vsub.s32 1, %v2665
        %v2667 = vrot.slane %v2249, %v2666
        %v2668 = vlaneseq
        %v2669 = vshrl.u32 %v2668, 7
        %v2670 = vsub.s32 2, %v2669
        %v2671 = vrot.slane %v2249, %v2670
        %v2672 = vlaneseq
        %v2673 = vshrl.u32 %v2672, 7
        %v2674 = vsub.s32 3, %v2673
        %v2675 = vrot.slane %v2249, %v2674
        %v2676 = vlaneseq
        %v2677 = vshrl.u32 %v2676, 7
        %v2678 = vsub.s32 4, %v2677
        %v2679 = vrot.slane %v2249, %v2678
        %v2680 = vlaneseq
        %v2681 = vshrl.u32 %v2680, 7
        %v2682 = vsub.s32 5, %v2681
        %v2683 = vrot.slane %v2249, %v2682
        %v2684 = vlaneseq
        %v2685 = vshrl.u32 %v2684, 7
        %v2686 = vsub.s32 6, %v2685
        %v2687 = vrot.slane %v2249, %v2686
        %v2688 = vlaneseq
        %v2689 = vshrl.u32 %v2688, 7
        %v2690 = vsub.s32 7, %v2689
        %v2691 = vrot.slane %v2249, %v2690
        %v2692 = vlaneseq
        %v2693 = vshrl.u32 %v2692, 7
        %v2694 = vsub.s32 0, %v2693
        %v2695 = vrot.slane %v2252, %v2694
        %v2696 = vlaneseq
        %v2697 = vshrl.u32 %v2696, 7
        %v2698 = vsub.s32 1, %v2697
        %v2699 = vrot.slane %v2252, %v2698
        %v2700 = vlaneseq
        %v2701 = vshrl.u32 %v2700, 7
        %v2702 = vsub.s32 2, %v2701
        %v2703 = vrot.slane %v2252, %v2702
        %v2704 = vlaneseq
        %v2705 = vshrl.u32 %v2704, 7
        %v2706 = vsub.s32 3, %v2705
        %v2707 = vrot.slane %v2252, %v2706
        %v2708 = vlaneseq
        %v2709 = vshrl.u32 %v2708, 7
        %v2710 = vsub.s32 4, %v2709
        %v2711 = vrot.slane %v2252, %v2710
        %v2712 = vlaneseq
        %v2713 = vshrl.u32 %v2712, 7
        %v2714 = vsub.s32 5, %v2713
        %v2715 = vrot.slane %v2252, %v2714
        %v2716 = vlaneseq
        %v2717 = vshrl.u32 %v2716, 7
        %v2718 = vsub.s32 6, %v2717
        %v2719 = vrot.slane %v2252, %v2718
        %v2720 = vlaneseq
        %v2721 = vshrl.u32 %v2720, 7
        %v2722 = vsub.s32 7, %v2721
        %v2723 = vrot.slane %v2252, %v2722
        %v2724 = vlaneseq
        %v2725 = vshrl.u32 %v2724, 7
        %v2726 = vsub.s32 0, %v2725
        %v2727 = vrot.slane %v2255, %v2726
        %v2728 = vlaneseq
        %v2729 = vshrl.u32 %v2728, 7
        %v2730 = vsub.s32 1, %v2729
        %v2731 = vrot.slane %v2255, %v2730
        %v2732 = vlaneseq
        %v2733 = vshrl.u32 %v2732, 7
        %v2734 = vsub.s32 2, %v2733
        %v2735 = vrot.slane %v2255, %v2734
        %v2736 = vlaneseq
        %v2737 = vshrl.u32 %v2736, 7
        %v2738 = vsub.s32 3, %v2737
        %v2739 = vrot.slane %v2255, %v2738
        %v2740 = vlaneseq
        %v2741 = vshrl.u32 %v2740, 7
        %v2742 = vsub.s32 4, %v2741
        %v2743 = vrot.slane %v2255, %v2742
        %v2744 = vlaneseq
        %v2745 = vshrl.u32 %v2744, 7
        %v2746 = vsub.s32 5, %v2745
        %v2747 = vrot.slane %v2255, %v2746
        %v2748 = vlaneseq
        %v2749 = vshrl.u32 %v2748, 7
        %v2750 = vsub.s32 6, %v2749
        %v2751 = vrot.slane %v2255, %v2750
        %v2752 = vlaneseq
        %v2753 = vshrl.u32 %v2752, 7
        %v2754 = vsub.s32 7, %v2753
        %v2755 = vrot.slane %v2255, %v2754
        %v2756 = vlaneseq
        %v2757 = vshrl.u32 %v2756, 7
        %v2758 = vsub.s32 0, %v2757
        %v2759 = vrot.slane %v2258, %v2758
        %v2760 = vlaneseq
        %v2761 = vshrl.u32 %v2760, 7
        %v2762 = vsub.s32 1, %v2761
        %v2763 = vrot.slane %v2258, %v2762
        %v2764 = vlaneseq
        %v2765 = vshrl.u32 %v2764, 7
        %v2766 = vsub.s32 2, %v2765
        %v2767 = vrot.slane %v2258, %v2766
        %v2768 = vlaneseq
        %v2769 = vshrl.u32 %v2768, 7
        %v2770 = vsub.s32 3, %v2769
        %v2771 = vrot.slane %v2258, %v2770
        %v2772 = vlaneseq
        %v2773 = vshrl.u32 %v2772, 7
        %v2774 = vsub.s32 4, %v2773
        %v2775 = vrot.slane %v2258, %v2774
        %v2776 = vlaneseq
        %v2777 = vshrl.u32 %v2776, 7
        %v2778 = vsub.s32 5, %v2777
        %v2779 = vrot.slane %v2258, %v2778
        %v2780 = vlaneseq
        %v2781 = vshrl.u32 %v2780, 7
        %v2782 = vsub.s32 6, %v2781
        %v2783 = vrot.slane %v2258, %v2782
        %v2784 = vlaneseq
        %v2785 = vshrl.u32 %v2784, 7
        %v2786 = vsub.s32 7, %v2785
        %v2787 = vrot.slane %v2258, %v2786
        %v2788 = vcombine.low %v2279, %v2283
        %v2789 = vcombine.low %v2287, %v2291
        %v2790 = vcombine.low %v2295, %v2299
        %v2791 = vcombine.low %v2303, %v2307
        %v2793 = vunpack.c.l.s4 1966171168
        %v2794 = vunpack.c.0.s8 %v2793
        %v2795 = vlaneseq
        %v2796 = vshrl.u32 %v2795, 7
        %v2797 = vsub.s32 %v2794, %v2796
        %v2798 = vrot.slane %v2788, %v2797
        %v2800 = vunpack.c.l.s4 1966171168
        %v2801 = vunpack.c.0.s8 %v2800
        %v2802 = vlaneseq
        %v2803 = vshrl.u32 %v2802, 7
        %v2804 = vsub.s32 %v2801, %v2803
        %v2805 = vrot.slane %v2789, %v2804
        %v2807 = vunpack.c.l.s4 1966171168
        %v2808 = vunpack.c.0.s8 %v2807
        %v2809 = vlaneseq
        %v2810 = vshrl.u32 %v2809, 7
        %v2811 = vsub.s32 %v2808, %v2810
        %v2812 = vrot.slane %v2790, %v2811
        %v2814 = vunpack.c.l.s4 1966171168
        %v2815 = vunpack.c.0.s8 %v2814
        %v2816 = vlaneseq
        %v2817 = vshrl.u32 %v2816, 7
        %v2818 = vsub.s32 %v2815, %v2817
        %v2819 = vrot.slane %v2791, %v2818
        %v2820 = vcombine.low %v2798, %v2805
        %v2821 = vcombine.low %v2812, %v2819
        %v2823 = vunpack.c.l.s4 1966171168
        %v2824 = vunpack.c.0.s8 %v2823
        %v2825 = vlaneseq
        %v2826 = vshrl.u32 %v2825, 7
        %v2827 = vsub.s32 %v2824, %v2826
        %v2828 = vrot.slane %v2820, %v2827
        %v2830 = vunpack.c.l.s4 1966171168
        %v2831 = vunpack.c.0.s8 %v2830
        %v2832 = vlaneseq
        %v2833 = vshrl.u32 %v2832, 7
        %v2834 = vsub.s32 %v2831, %v2833
        %v2835 = vrot.slane %v2821, %v2834
        %v2836 = vcombine.low %v2828, %v2835
        %v2837 = vcombine.low %v2311, %v2315
        %v2838 = vcombine.low %v2319, %v2323
        %v2839 = vcombine.low %v2327, %v2331
        %v2840 = vcombine.low %v2335, %v2339
        %v2842 = vunpack.c.l.s4 1966171168
        %v2843 = vunpack.c.0.s8 %v2842
        %v2844 = vlaneseq
        %v2845 = vshrl.u32 %v2844, 7
        %v2846 = vsub.s32 %v2843, %v2845
        %v2847 = vrot.slane %v2837, %v2846
        %v2849 = vunpack.c.l.s4 1966171168
        %v2850 = vunpack.c.0.s8 %v2849
        %v2851 = vlaneseq
        %v2852 = vshrl.u32 %v2851, 7
        %v2853 = vsub.s32 %v2850, %v2852
        %v2854 = vrot.slane %v2838, %v2853
        %v2856 = vunpack.c.l.s4 1966171168
        %v2857 = vunpack.c.0.s8 %v2856
        %v2858 = vlaneseq
        %v2859 = vshrl.u32 %v2858, 7
        %v2860 = vsub.s32 %v2857, %v2859
        %v2861 = vrot.slane %v2839, %v2860
        %v2863 = vunpack.c.l.s4 1966171168
        %v2864 = vunpack.c.0.s8 %v2863
        %v2865 = vlaneseq
        %v2866 = vshrl.u32 %v2865, 7
        %v2867 = vsub.s32 %v2864, %v2866
        %v2868 = vrot.slane %v2840, %v2867
        %v2869 = vcombine.low %v2847, %v2854
        %v2870 = vcombine.low %v2861, %v2868
        %v2872 = vunpack.c.l.s4 1966171168
        %v2873 = vunpack.c.0.s8 %v2872
        %v2874 = vlaneseq
        %v2875 = vshrl.u32 %v2874, 7
        %v2876 = vsub.s32 %v2873, %v2875
        %v2877 = vrot.slane %v2869, %v2876
        %v2879 = vunpack.c.l.s4 1966171168
        %v2880 = vunpack.c.0.s8 %v2879
        %v2881 = vlaneseq
        %v2882 = vshrl.u32 %v2881, 7
        %v2883 = vsub.s32 %v2880, %v2882
        %v2884 = vrot.slane %v2870, %v2883
        %v2885 = vcombine.low %v2877, %v2884
        %v2886 = vcombine.low %v2343, %v2347
        %v2887 = vcombine.low %v2351, %v2355
        %v2888 = vcombine.low %v2359, %v2363
        %v2889 = vcombine.low %v2367, %v2371
        %v2891 = vunpack.c.l.s4 1966171168
        %v2892 = vunpack.c.0.s8 %v2891
        %v2893 = vlaneseq
        %v2894 = vshrl.u32 %v2893, 7
        %v2895 = vsub.s32 %v2892, %v2894
        %v2896 = vrot.slane %v2886, %v2895
        %v2898 = vunpack.c.l.s4 1966171168
        %v2899 = vunpack.c.0.s8 %v2898
        %v2900 = vlaneseq
        %v2901 = vshrl.u32 %v2900, 7
        %v2902 = vsub.s32 %v2899, %v2901
        %v2903 = vrot.slane %v2887, %v2902
        %v2905 = vunpack.c.l.s4 1966171168
        %v2906 = vunpack.c.0.s8 %v2905
        %v2907 = vlaneseq
        %v2908 = vshrl.u32 %v2907, 7
        %v2909 = vsub.s32 %v2906, %v2908
        %v2910 = vrot.slane %v2888, %v2909
        %v2912 = vunpack.c.l.s4 1966171168
        %v2913 = vunpack.c.0.s8 %v2912
        %v2914 = vlaneseq
        %v2915 = vshrl.u32 %v2914, 7
        %v2916 = vsub.s32 %v2913, %v2915
        %v2917 = vrot.slane %v2889, %v2916
        %v2918 = vcombine.low %v2896, %v2903
        %v2919 = vcombine.low %v2910, %v2917
        %v2921 = vunpack.c.l.s4 1966171168
        %v2922 = vunpack.c.0.s8 %v2921
        %v2923 = vlaneseq
        %v2924 = vshrl.u32 %v2923, 7
        %v2925 = vsub.s32 %v2922, %v2924
        %v2926 = vrot.slane %v2918, %v2925
        %v2928 = vunpack.c.l.s4 1966171168
        %v2929 = vunpack.c.0.s8 %v2928
        %v2930 = vlaneseq
        %v2931 = vshrl.u32 %v2930, 7
        %v2932 = vsub.s32 %v2929, %v2931
        %v2933 = vrot.slane %v2919, %v2932
        %v2934 = vcombine.low %v2926, %v2933
        %v2935 = vcombine.low %v2375, %v2379
        %v2936 = vcombine.low %v2383, %v2387
        %v2937 = vcombine.low %v2391, %v2395
        %v2938 = vcombine.low %v2399, %v2403
        %v2940 = vunpack.c.l.s4 1966171168
        %v2941 = vunpack.c.0.s8 %v2940
        %v2942 = vlaneseq
        %v2943 = vshrl.u32 %v2942, 7
        %v2944 = vsub.s32 %v2941, %v2943
        %v2945 = vrot.slane %v2935, %v2944
        %v2947 = vunpack.c.l.s4 1966171168
        %v2948 = vunpack.c.0.s8 %v2947
        %v2949 = vlaneseq
        %v2950 = vshrl.u32 %v2949, 7
        %v2951 = vsub.s32 %v2948, %v2950
        %v2952 = vrot.slane %v2936, %v2951
        %v2954 = vunpack.c.l.s4 1966171168
        %v2955 = vunpack.c.0.s8 %v2954
        %v2956 = vlaneseq
        %v2957 = vshrl.u32 %v2956, 7
        %v2958 = vsub.s32 %v2955, %v2957
        %v2959 = vrot.slane %v2937, %v2958
        %v2961 = vunpack.c.l.s4 1966171168
        %v2962 = vunpack.c.0.s8 %v2961
        %v2963 = vlaneseq
        %v2964 = vshrl.u32 %v2963, 7
        %v2965 = vsub.s32 %v2962, %v2964
        %v2966 = vrot.slane %v2938, %v2965
        %v2967 = vcombine.low %v2945, %v2952
        %v2968 = vcombine.low %v2959, %v2966
        %v2970 = vunpack.c.l.s4 1966171168
        %v2971 = vunpack.c.0.s8 %v2970
        %v2972 = vlaneseq
        %v2973 = vshrl.u32 %v2972, 7
        %v2974 = vsub.s32 %v2971, %v2973
        %v2975 = vrot.slane %v2967, %v2974
        %v2977 = vunpack.c.l.s4 1966171168
        %v2978 = vunpack.c.0.s8 %v2977
        %v2979 = vlaneseq
        %v2980 = vshrl.u32 %v2979, 7
        %v2981 = vsub.s32 %v2978, %v2980
        %v2982 = vrot.slane %v2968, %v2981
        %v2983 = vcombine.low %v2975, %v2982
        %v2984 = vcombine.low %v2407, %v2411
        %v2985 = vcombine.low %v2415, %v2419
        %v2986 = vcombine.low %v2423, %v2427
        %v2987 = vcombine.low %v2431, %v2435
        %v2989 = vunpack.c.l.s4 1966171168
        %v2990 = vunpack.c.0.s8 %v2989
        %v2991 = vlaneseq
        %v2992 = vshrl.u32 %v2991, 7
        %v2993 = vsub.s32 %v2990, %v2992
        %v2994 = vrot.slane %v2984, %v2993
        %v2996 = vunpack.c.l.s4 1966171168
        %v2997 = vunpack.c.0.s8 %v2996
        %v2998 = vlaneseq
        %v2999 = vshrl.u32 %v2998, 7
        %v3000 = vsub.s32 %v2997, %v2999
        %v3001 = vrot.slane %v2985, %v3000
        %v3003 = vunpack.c.l.s4 1966171168
        %v3004 = vunpack.c.0.s8 %v3003
        %v3005 = vlaneseq
        %v3006 = vshrl.u32 %v3005, 7
        %v3007 = vsub.s32 %v3004, %v3006
        %v3008 = vrot.slane %v2986, %v3007
        %v3010 = vunpack.c.l.s4 1966171168
        %v3011 = vunpack.c.0.s8 %v3010
        %v3012 = vlaneseq
        %v3013 = vshrl.u32 %v3012, 7
        %v3014 = vsub.s32 %v3011, %v3013
        %v3015 = vrot.slane %v2987, %v3014
        %v3016 = vcombine.low %v2994, %v3001
        %v3017 = vcombine.low %v3008, %v3015
        %v3019 = vunpack.c.l.s4 1966171168
        %v3020 = vunpack.c.0.s8 %v3019
        %v3021 = vlaneseq
        %v3022 = vshrl.u32 %v3021, 7
        %v3023 = vsub.s32 %v3020, %v3022
        %v3024 = vrot.slane %v3016, %v3023
        %v3026 = vunpack.c.l.s4 1966171168
        %v3027 = vunpack.c.0.s8 %v3026
        %v3028 = vlaneseq
        %v3029 = vshrl.u32 %v3028, 7
        %v3030 = vsub.s32 %v3027, %v3029
        %v3031 = vrot.slane %v3017, %v3030
        %v3032 = vcombine.low %v3024, %v3031
        %v3033 = vcombine.low %v2439, %v2443
        %v3034 = vcombine.low %v2447, %v2451
        %v3035 = vcombine.low %v2455, %v2459
        %v3036 = vcombine.low %v2463, %v2467
        %v3038 = vunpack.c.l.s4 1966171168
        %v3039 = vunpack.c.0.s8 %v3038
        %v3040 = vlaneseq
        %v3041 = vshrl.u32 %v3040, 7
        %v3042 = vsub.s32 %v3039, %v3041
        %v3043 = vrot.slane %v3033, %v3042
        %v3045 = vunpack.c.l.s4 1966171168
        %v3046 = vunpack.c.0.s8 %v3045
        %v3047 = vlaneseq
        %v3048 = vshrl.u32 %v3047, 7
        %v3049 = vsub.s32 %v3046, %v3048
        %v3050 = vrot.slane %v3034, %v3049
        %v3052 = vunpack.c.l.s4 1966171168
        %v3053 = vunpack.c.0.s8 %v3052
        %v3054 = vlaneseq
        %v3055 = vshrl.u32 %v3054, 7
        %v3056 = vsub.s32 %v3053, %v3055
        %v3057 = vrot.slane %v3035, %v3056
        %v3059 = vunpack.c.l.s4 1966171168
        %v3060 = vunpack.c.0.s8 %v3059
        %v3061 = vlaneseq
        %v3062 = vshrl.u32 %v3061, 7
        %v3063 = vsub.s32 %v3060, %v3062
        %v3064 = vrot.slane %v3036, %v3063
        %v3065 = vcombine.low %v3043, %v3050
        %v3066 = vcombine.low %v3057, %v3064
        %v3068 = vunpack.c.l.s4 1966171168
        %v3069 = vunpack.c.0.s8 %v3068
        %v3070 = vlaneseq
        %v3071 = vshrl.u32 %v3070, 7
        %v3072 = vsub.s32 %v3069, %v3071
        %v3073 = vrot.slane %v3065, %v3072
        %v3075 = vunpack.c.l.s4 1966171168
        %v3076 = vunpack.c.0.s8 %v3075
        %v3077 = vlaneseq
        %v3078 = vshrl.u32 %v3077, 7
        %v3079 = vsub.s32 %v3076, %v3078
        %v3080 = vrot.slane %v3066, %v3079
        %v3081 = vcombine.low %v3073, %v3080
        %v3082 = vcombine.low %v2471, %v2475
        %v3083 = vcombine.low %v2479, %v2483
        %v3084 = vcombine.low %v2487, %v2491
        %v3085 = vcombine.low %v2495, %v2499
        %v3087 = vunpack.c.l.s4 1966171168
        %v3088 = vunpack.c.0.s8 %v3087
        %v3089 = vlaneseq
        %v3090 = vshrl.u32 %v3089, 7
        %v3091 = vsub.s32 %v3088, %v3090
        %v3092 = vrot.slane %v3082, %v3091
        %v3094 = vunpack.c.l.s4 1966171168
        %v3095 = vunpack.c.0.s8 %v3094
        %v3096 = vlaneseq
        %v3097 = vshrl.u32 %v3096, 7
        %v3098 = vsub.s32 %v3095, %v3097
        %v3099 = vrot.slane %v3083, %v3098
        %v3101 = vunpack.c.l.s4 1966171168
        %v3102 = vunpack.c.0.s8 %v3101
        %v3103 = vlaneseq
        %v3104 = vshrl.u32 %v3103, 7
        %v3105 = vsub.s32 %v3102, %v3104
        %v3106 = vrot.slane %v3084, %v3105
        %v3108 = vunpack.c.l.s4 1966171168
        %v3109 = vunpack.c.0.s8 %v3108
        %v3110 = vlaneseq
        %v3111 = vshrl.u32 %v3110, 7
        %v3112 = vsub.s32 %v3109, %v3111
        %v3113 = vrot.slane %v3085, %v3112
        %v3114 = vcombine.low %v3092, %v3099
        %v3115 = vcombine.low %v3106, %v3113
        %v3117 = vunpack.c.l.s4 1966171168
        %v3118 = vunpack.c.0.s8 %v3117
        %v3119 = vlaneseq
        %v3120 = vshrl.u32 %v3119, 7
        %v3121 = vsub.s32 %v3118, %v3120
        %v3122 = vrot.slane %v3114, %v3121
        %v3124 = vunpack.c.l.s4 1966171168
        %v3125 = vunpack.c.0.s8 %v3124
        %v3126 = vlaneseq
        %v3127 = vshrl.u32 %v3126, 7
        %v3128 = vsub.s32 %v3125, %v3127
        %v3129 = vrot.slane %v3115, %v3128
        %v3130 = vcombine.low %v3122, %v3129
        %v3131 = vcombine.low %v2503, %v2507
        %v3132 = vcombine.low %v2511, %v2515
        %v3133 = vcombine.low %v2519, %v2523
        %v3134 = vcombine.low %v2527, %v2531
        %v3136 = vunpack.c.l.s4 1966171168
        %v3137 = vunpack.c.0.s8 %v3136
        %v3138 = vlaneseq
        %v3139 = vshrl.u32 %v3138, 7
        %v3140 = vsub.s32 %v3137, %v3139
        %v3141 = vrot.slane %v3131, %v3140
        %v3143 = vunpack.c.l.s4 1966171168
        %v3144 = vunpack.c.0.s8 %v3143
        %v3145 = vlaneseq
        %v3146 = vshrl.u32 %v3145, 7
        %v3147 = vsub.s32 %v3144, %v3146
        %v3148 = vrot.slane %v3132, %v3147
        %v3150 = vunpack.c.l.s4 1966171168
        %v3151 = vunpack.c.0.s8 %v3150
        %v3152 = vlaneseq
        %v3153 = vshrl.u32 %v3152, 7
        %v3154 = vsub.s32 %v3151, %v3153
        %v3155 = vrot.slane %v3133, %v3154
        %v3157 = vunpack.c.l.s4 1966171168
        %v3158 = vunpack.c.0.s8 %v3157
        %v3159 = vlaneseq
        %v3160 = vshrl.u32 %v3159, 7
        %v3161 = vsub.s32 %v3158, %v3160
        %v3162 = vrot.slane %v3134, %v3161
        %v3163 = vcombine.low %v3141, %v3148
        %v3164 = vcombine.low %v3155, %v3162
        %v3166 = vunpack.c.l.s4 1966171168
        %v3167 = vunpack.c.0.s8 %v3166
        %v3168 = vlaneseq
        %v3169 = vshrl.u32 %v3168, 7
        %v3170 = vsub.s32 %v3167, %v3169
        %v3171 = vrot.slane %v3163, %v3170
        %v3173 = vunpack.c.l.s4 1966171168
        %v3174 = vunpack.c.0.s8 %v3173
        %v3175 = vlaneseq
        %v3176 = vshrl.u32 %v3175, 7
        %v3177 = vsub.s32 %v3174, %v3176
        %v3178 = vrot.slane %v3164, %v3177
        %v3179 = vcombine.low %v3171, %v3178
        %v3180 = vcombine.low %v2535, %v2539
        %v3181 = vcombine.low %v2543, %v2547
        %v3182 = vcombine.low %v2551, %v2555
        %v3183 = vcombine.low %v2559, %v2563
        %v3185 = vunpack.c.l.s4 1966171168
        %v3186 = vunpack.c.0.s8 %v3185
        %v3187 = vlaneseq
        %v3188 = vshrl.u32 %v3187, 7
        %v3189 = vsub.s32 %v3186, %v3188
        %v3190 = vrot.slane %v3180, %v3189
        %v3192 = vunpack.c.l.s4 1966171168
        %v3193 = vunpack.c.0.s8 %v3192
        %v3194 = vlaneseq
        %v3195 = vshrl.u32 %v3194, 7
        %v3196 = vsub.s32 %v3193, %v3195
        %v3197 = vrot.slane %v3181, %v3196
        %v3199 = vunpack.c.l.s4 1966171168
        %v3200 = vunpack.c.0.s8 %v3199
        %v3201 = vlaneseq
        %v3202 = vshrl.u32 %v3201, 7
        %v3203 = vsub.s32 %v3200, %v3202
        %v3204 = vrot.slane %v3182, %v3203
        %v3206 = vunpack.c.l.s4 1966171168
        %v3207 = vunpack.c.0.s8 %v3206
        %v3208 = vlaneseq
        %v3209 = vshrl.u32 %v3208, 7
        %v3210 = vsub.s32 %v3207, %v3209
        %v3211 = vrot.slane %v3183, %v3210
        %v3212 = vcombine.low %v3190, %v3197
        %v3213 = vcombine.low %v3204, %v3211
        %v3215 = vunpack.c.l.s4 1966171168
        %v3216 = vunpack.c.0.s8 %v3215
        %v3217 = vlaneseq
        %v3218 = vshrl.u32 %v3217, 7
        %v3219 = vsub.s32 %v3216, %v3218
        %v3220 = vrot.slane %v3212, %v3219
        %v3222 = vunpack.c.l.s4 1966171168
        %v3223 = vunpack.c.0.s8 %v3222
        %v3224 = vlaneseq
        %v3225 = vshrl.u32 %v3224, 7
        %v3226 = vsub.s32 %v3223, %v3225
        %v3227 = vrot.slane %v3213, %v3226
        %v3228 = vcombine.low %v3220, %v3227
        %v3229 = vcombine.low %v2567, %v2571
        %v3230 = vcombine.low %v2575, %v2579
        %v3231 = vcombine.low %v2583, %v2587
        %v3232 = vcombine.low %v2591, %v2595
        %v3234 = vunpack.c.l.s4 1966171168
        %v3235 = vunpack.c.0.s8 %v3234
        %v3236 = vlaneseq
        %v3237 = vshrl.u32 %v3236, 7
        %v3238 = vsub.s32 %v3235, %v3237
        %v3239 = vrot.slane %v3229, %v3238
        %v3241 = vunpack.c.l.s4 1966171168
        %v3242 = vunpack.c.0.s8 %v3241
        %v3243 = vlaneseq
        %v3244 = vshrl.u32 %v3243, 7
        %v3245 = vsub.s32 %v3242, %v3244
        %v3246 = vrot.slane %v3230, %v3245
        %v3248 = vunpack.c.l.s4 1966171168
        %v3249 = vunpack.c.0.s8 %v3248
        %v3250 = vlaneseq
        %v3251 = vshrl.u32 %v3250, 7
        %v3252 = vsub.s32 %v3249, %v3251
        %v3253 = vrot.slane %v3231, %v3252
        %v3255 = vunpack.c.l.s4 1966171168
        %v3256 = vunpack.c.0.s8 %v3255
        %v3257 = vlaneseq
        %v3258 = vshrl.u32 %v3257, 7
        %v3259 = vsub.s32 %v3256, %v3258
        %v3260 = vrot.slane %v3232, %v3259
        %v3261 = vcombine.low %v3239, %v3246
        %v3262 = vcombine.low %v3253, %v3260
        %v3264 = vunpack.c.l.s4 1966171168
        %v3265 = vunpack.c.0.s8 %v3264
        %v3266 = vlaneseq
        %v3267 = vshrl.u32 %v3266, 7
        %v3268 = vsub.s32 %v3265, %v3267
        %v3269 = vrot.slane %v3261, %v3268
        %v3271 = vunpack.c.l.s4 1966171168
        %v3272 = vunpack.c.0.s8 %v3271
        %v3273 = vlaneseq
        %v3274 = vshrl.u32 %v3273, 7
        %v3275 = vsub.s32 %v3272, %v3274
        %v3276 = vrot.slane %v3262, %v3275
        %v3277 = vcombine.low %v3269, %v3276
        %v3278 = vcombine.low %v2599, %v2603
        %v3279 = vcombine.low %v2607, %v2611
        %v3280 = vcombine.low %v2615, %v2619
        %v3281 = vcombine.low %v2623, %v2627
        %v3283 = vunpack.c.l.s4 1966171168
        %v3284 = vunpack.c.0.s8 %v3283
        %v3285 = vlaneseq
        %v3286 = vshrl.u32 %v3285, 7
        %v3287 = vsub.s32 %v3284, %v3286
        %v3288 = vrot.slane %v3278, %v3287
        %v3290 = vunpack.c.l.s4 1966171168
        %v3291 = vunpack.c.0.s8 %v3290
        %v3292 = vlaneseq
        %v3293 = vshrl.u32 %v3292, 7
        %v3294 = vsub.s32 %v3291, %v3293
        %v3295 = vrot.slane %v3279, %v3294
        %v3297 = vunpack.c.l.s4 1966171168
        %v3298 = vunpack.c.0.s8 %v3297
        %v3299 = vlaneseq
        %v3300 = vshrl.u32 %v3299, 7
        %v3301 = vsub.s32 %v3298, %v3300
        %v3302 = vrot.slane %v3280, %v3301
        %v3304 = vunpack.c.l.s4 1966171168
        %v3305 = vunpack.c.0.s8 %v3304
        %v3306 = vlaneseq
        %v3307 = vshrl.u32 %v3306, 7
        %v3308 = vsub.s32 %v3305, %v3307
        %v3309 = vrot.slane %v3281, %v3308
        %v3310 = vcombine.low %v3288, %v3295
        %v3311 = vcombine.low %v3302, %v3309
        %v3313 = vunpack.c.l.s4 1966171168
        %v3314 = vunpack.c.0.s8 %v3313
        %v3315 = vlaneseq
        %v3316 = vshrl.u32 %v3315, 7
        %v3317 = vsub.s32 %v3314, %v3316
        %v3318 = vrot.slane %v3310, %v3317
        %v3320 = vunpack.c.l.s4 1966171168
        %v3321 = vunpack.c.0.s8 %v3320
        %v3322 = vlaneseq
        %v3323 = vshrl.u32 %v3322, 7
        %v3324 = vsub.s32 %v3321, %v3323
        %v3325 = vrot.slane %v3311, %v3324
        %v3326 = vcombine.low %v3318, %v3325
        %v3327 = vcombine.low %v2631, %v2635
        %v3328 = vcombine.low %v2639, %v2643
        %v3329 = vcombine.low %v2647, %v2651
        %v3330 = vcombine.low %v2655, %v2659
        %v3332 = vunpack.c.l.s4 1966171168
        %v3333 = vunpack.c.0.s8 %v3332
        %v3334 = vlaneseq
        %v3335 = vshrl.u32 %v3334, 7
        %v3336 = vsub.s32 %v3333, %v3335
        %v3337 = vrot.slane %v3327, %v3336
        %v3339 = vunpack.c.l.s4 1966171168
        %v3340 = vunpack.c.0.s8 %v3339
        %v3341 = vlaneseq
        %v3342 = vshrl.u32 %v3341, 7
        %v3343 = vsub.s32 %v3340, %v3342
        %v3344 = vrot.slane %v3328, %v3343
        %v3346 = vunpack.c.l.s4 1966171168
        %v3347 = vunpack.c.0.s8 %v3346
        %v3348 = vlaneseq
        %v3349 = vshrl.u32 %v3348, 7
        %v3350 = vsub.s32 %v3347, %v3349
        %v3351 = vrot.slane %v3329, %v3350
        %v3353 = vunpack.c.l.s4 1966171168
        %v3354 = vunpack.c.0.s8 %v3353
        %v3355 = vlaneseq
        %v3356 = vshrl.u32 %v3355, 7
        %v3357 = vsub.s32 %v3354, %v3356
        %v3358 = vrot.slane %v3330, %v3357
        %v3359 = vcombine.low %v3337, %v3344
        %v3360 = vcombine.low %v3351, %v3358
        %v3362 = vunpack.c.l.s4 1966171168
        %v3363 = vunpack.c.0.s8 %v3362
        %v3364 = vlaneseq
        %v3365 = vshrl.u32 %v3364, 7
        %v3366 = vsub.s32 %v3363, %v3365
        %v3367 = vrot.slane %v3359, %v3366
        %v3369 = vunpack.c.l.s4 1966171168
        %v3370 = vunpack.c.0.s8 %v3369
        %v3371 = vlaneseq
        %v3372 = vshrl.u32 %v3371, 7
        %v3373 = vsub.s32 %v3370, %v3372
        %v3374 = vrot.slane %v3360, %v3373
        %v3375 = vcombine.low %v3367, %v3374
        %v3376 = vcombine.low %v2663, %v2667
        %v3377 = vcombine.low %v2671, %v2675
        %v3378 = vcombine.low %v2679, %v2683
        %v3379 = vcombine.low %v2687, %v2691
        %v3381 = vunpack.c.l.s4 1966171168
        %v3382 = vunpack.c.0.s8 %v3381
        %v3383 = vlaneseq
        %v3384 = vshrl.u32 %v3383, 7
        %v3385 = vsub.s32 %v3382, %v3384
        %v3386 = vrot.slane %v3376, %v3385
        %v3388 = vunpack.c.l.s4 1966171168
        %v3389 = vunpack.c.0.s8 %v3388
        %v3390 = vlaneseq
        %v3391 = vshrl.u32 %v3390, 7
        %v3392 = vsub.s32 %v3389, %v3391
        %v3393 = vrot.slane %v3377, %v3392
        %v3395 = vunpack.c.l.s4 1966171168
        %v3396 = vunpack.c.0.s8 %v3395
        %v3397 = vlaneseq
        %v3398 = vshrl.u32 %v3397, 7
        %v3399 = vsub.s32 %v3396, %v3398
        %v3400 = vrot.slane %v3378, %v3399
        %v3402 = vunpack.c.l.s4 1966171168
        %v3403 = vunpack.c.0.s8 %v3402
        %v3404 = vlaneseq
        %v3405 = vshrl.u32 %v3404, 7
        %v3406 = vsub.s32 %v3403, %v3405
        %v3407 = vrot.slane %v3379, %v3406
        %v3408 = vcombine.low %v3386, %v3393
        %v3409 = vcombine.low %v3400, %v3407
        %v3411 = vunpack.c.l.s4 1966171168
        %v3412 = vunpack.c.0.s8 %v3411
        %v3413 = vlaneseq
        %v3414 = vshrl.u32 %v3413, 7
        %v3415 = vsub.s32 %v3412, %v3414
        %v3416 = vrot.slane %v3408, %v3415
        %v3418 = vunpack.c.l.s4 1966171168
        %v3419 = vunpack.c.0.s8 %v3418
        %v3420 = vlaneseq
        %v3421 = vshrl.u32 %v3420, 7
        %v3422 = vsub.s32 %v3419, %v3421
        %v3423 = vrot.slane %v3409, %v3422
        %v3424 = vcombine.low %v3416, %v3423
        %v3425 = vcombine.low %v2695, %v2699
        %v3426 = vcombine.low %v2703, %v2707
        %v3427 = vcombine.low %v2711, %v2715
        %v3428 = vcombine.low %v2719, %v2723
        %v3430 = vunpack.c.l.s4 1966171168
        %v3431 = vunpack.c.0.s8 %v3430
        %v3432 = vlaneseq
        %v3433 = vshrl.u32 %v3432, 7
        %v3434 = vsub.s32 %v3431, %v3433
        %v3435 = vrot.slane %v3425, %v3434
        %v3437 = vunpack.c.l.s4 1966171168
        %v3438 = vunpack.c.0.s8 %v3437
        %v3439 = vlaneseq
        %v3440 = vshrl.u32 %v3439, 7
        %v3441 = vsub.s32 %v3438, %v3440
        %v3442 = vrot.slane %v3426, %v3441
        %v3444 = vunpack.c.l.s4 1966171168
        %v3445 = vunpack.c.0.s8 %v3444
        %v3446 = vlaneseq
        %v3447 = vshrl.u32 %v3446, 7
        %v3448 = vsub.s32 %v3445, %v3447
        %v3449 = vrot.slane %v3427, %v3448
        %v3451 = vunpack.c.l.s4 1966171168
        %v3452 = vunpack.c.0.s8 %v3451
        %v3453 = vlaneseq
        %v3454 = vshrl.u32 %v3453, 7
        %v3455 = vsub.s32 %v3452, %v3454
        %v3456 = vrot.slane %v3428, %v3455
        %v3457 = vcombine.low %v3435, %v3442
        %v3458 = vcombine.low %v3449, %v3456
        %v3460 = vunpack.c.l.s4 1966171168
        %v3461 = vunpack.c.0.s8 %v3460
        %v3462 = vlaneseq
        %v3463 = vshrl.u32 %v3462, 7
        %v3464 = vsub.s32 %v3461, %v3463
        %v3465 = vrot.slane %v3457, %v3464
        %v3467 = vunpack.c.l.s4 1966171168
        %v3468 = vunpack.c.0.s8 %v3467
        %v3469 = vlaneseq
        %v3470 = vshrl.u32 %v3469, 7
        %v3471 = vsub.s32 %v3468, %v3470
        %v3472 = vrot.slane %v3458, %v3471
        %v3473 = vcombine.low %v3465, %v3472
        %v3474 = vcombine.low %v2727, %v2731
        %v3475 = vcombine.low %v2735, %v2739
        %v3476 = vcombine.low %v2743, %v2747
        %v3477 = vcombine.low %v2751, %v2755
        %v3479 = vunpack.c.l.s4 1966171168
        %v3480 = vunpack.c.0.s8 %v3479
        %v3481 = vlaneseq
        %v3482 = vshrl.u32 %v3481, 7
        %v3483 = vsub.s32 %v3480, %v3482
        %v3484 = vrot.slane %v3474, %v3483
        %v3486 = vunpack.c.l.s4 1966171168
        %v3487 = vunpack.c.0.s8 %v3486
        %v3488 = vlaneseq
        %v3489 = vshrl.u32 %v3488, 7
        %v3490 = vsub.s32 %v3487, %v3489
        %v3491 = vrot.slane %v3475, %v3490
        %v3493 = vunpack.c.l.s4 1966171168
        %v3494 = vunpack.c.0.s8 %v3493
        %v3495 = vlaneseq
        %v3496 = vshrl.u32 %v3495, 7
        %v3497 = vsub.s32 %v3494, %v3496
        %v3498 = vrot.slane %v3476, %v3497
        %v3500 = vunpack.c.l.s4 1966171168
        %v3501 = vunpack.c.0.s8 %v3500
        %v3502 = vlaneseq
        %v3503 = vshrl.u32 %v3502, 7
        %v3504 = vsub.s32 %v3501, %v3503
        %v3505 = vrot.slane %v3477, %v3504
        %v3506 = vcombine.low %v3484, %v3491
        %v3507 = vcombine.low %v3498, %v3505
        %v3509 = vunpack.c.l.s4 1966171168
        %v3510 = vunpack.c.0.s8 %v3509
        %v3511 = vlaneseq
        %v3512 = vshrl.u32 %v3511, 7
        %v3513 = vsub.s32 %v3510, %v3512
        %v3514 = vrot.slane %v3506, %v3513
        %v3516 = vunpack.c.l.s4 1966171168
        %v3517 = vunpack.c.0.s8 %v3516
        %v3518 = vlaneseq
        %v3519 = vshrl.u32 %v3518, 7
        %v3520 = vsub.s32 %v3517, %v3519
        %v3521 = vrot.slane %v3507, %v3520
        %v3522 = vcombine.low %v3514, %v3521
        %v3523 = vcombine.low %v2759, %v2763
        %v3524 = vcombine.low %v2767, %v2771
        %v3525 = vcombine.low %v2775, %v2779
        %v3526 = vcombine.low %v2783, %v2787
        %v3528 = vunpack.c.l.s4 1966171168
        %v3529 = vunpack.c.0.s8 %v3528
        %v3530 = vlaneseq
        %v3531 = vshrl.u32 %v3530, 7
        %v3532 = vsub.s32 %v3529, %v3531
        %v3533 = vrot.slane %v3523, %v3532
        %v3535 = vunpack.c.l.s4 1966171168
        %v3536 = vunpack.c.0.s8 %v3535
        %v3537 = vlaneseq
        %v3538 = vshrl.u32 %v3537, 7
        %v3539 = vsub.s32 %v3536, %v3538
        %v3540 = vrot.slane %v3524, %v3539
        %v3542 = vunpack.c.l.s4 1966171168
        %v3543 = vunpack.c.0.s8 %v3542
        %v3544 = vlaneseq
        %v3545 = vshrl.u32 %v3544, 7
        %v3546 = vsub.s32 %v3543, %v3545
        %v3547 = vrot.slane %v3525, %v3546
        %v3549 = vunpack.c.l.s4 1966171168
        %v3550 = vunpack.c.0.s8 %v3549
        %v3551 = vlaneseq
        %v3552 = vshrl.u32 %v3551, 7
        %v3553 = vsub.s32 %v3550, %v3552
        %v3554 = vrot.slane %v3526, %v3553
        %v3555 = vcombine.low %v3533, %v3540
        %v3556 = vcombine.low %v3547, %v3554
        %v3558 = vunpack.c.l.s4 1966171168
        %v3559 = vunpack.c.0.s8 %v3558
        %v3560 = vlaneseq
        %v3561 = vshrl.u32 %v3560, 7
        %v3562 = vsub.s32 %v3559, %v3561
        %v3563 = vrot.slane %v3555, %v3562
        %v3565 = vunpack.c.l.s4 1966171168
        %v3566 = vunpack.c.0.s8 %v3565
        %v3567 = vlaneseq
        %v3568 = vshrl.u32 %v3567, 7
        %v3569 = vsub.s32 %v3566, %v3568
        %v3570 = vrot.slane %v3556, %v3569
        %v3571 = vcombine.low %v3563, %v3570
        %3572 = vset.pattern.permute.xlu0 0
        %3573 = vperm.xlu0 %3572, %v2836
        %v3574 = vpop.permute.xlu0 %3573
        %3575 = vset.pattern.permute.xlu0 0
        %3576 = vperm.xlu0 %3575, %v2885
        %v3577 = vpop.permute.xlu0 %3576
        %3578 = vset.pattern.permute.xlu0 0
        %3579 = vperm.xlu0 %3578, %v2934
        %v3580 = vpop.permute.xlu0 %3579
        %3581 = vset.pattern.permute.xlu0 0
        %3582 = vperm.xlu0 %3581, %v2983
        %v3583 = vpop.permute.xlu0 %3582
        %3584 = vset.pattern.permute.xlu0 0
        %3585 = vperm.xlu0 %3584, %v3032
        %v3586 = vpop.permute.xlu0 %3585
        %3587 = vset.pattern.permute.xlu0 0
        %3588 = vperm.xlu0 %3587, %v3081
        %v3589 = vpop.permute.xlu0 %3588
        %3590 = vset.pattern.permute.xlu0 0
        %3591 = vperm.xlu0 %3590, %v3130
        %v3592 = vpop.permute.xlu0 %3591
        %3593 = vset.pattern.permute.xlu0 0
        %3594 = vperm.xlu0 %3593, %v3179
        %v3595 = vpop.permute.xlu0 %3594
        %3596 = vset.pattern.permute.xlu0 0
        %3597 = vperm.xlu0 %3596, %v3228
        %v3598 = vpop.permute.xlu0 %3597
        %3599 = vset.pattern.permute.xlu0 0
        %3600 = vperm.xlu0 %3599, %v3277
        %v3601 = vpop.permute.xlu0 %3600
        %3602 = vset.pattern.permute.xlu0 0
        %3603 = vperm.xlu0 %3602, %v3326
        %v3604 = vpop.permute.xlu0 %3603
        %3605 = vset.pattern.permute.xlu0 0
        %3606 = vperm.xlu0 %3605, %v3375
        %v3607 = vpop.permute.xlu0 %3606
        %3608 = vset.pattern.permute.xlu0 0
        %3609 = vperm.xlu0 %3608, %v3424
        %v3610 = vpop.permute.xlu0 %3609
        %3611 = vset.pattern.permute.xlu0 0
        %3612 = vperm.xlu0 %3611, %v3473
        %v3613 = vpop.permute.xlu0 %3612
        %3614 = vset.pattern.permute.xlu0 0
        %3615 = vperm.xlu0 %3614, %v3522
        %v3616 = vpop.permute.xlu0 %3615
        %3617 = vset.pattern.permute.xlu0 0
        %3618 = vperm.xlu0 %3617, %v3571
        %v3619 = vpop.permute.xlu0 %3618
        %v3620 = vlaneseq
        %v3621 = vand.u32 %v3620, 127
        %v3622 = vlaneseq
        %v3623 = vshrl.u32 %v3622, 7
        %v3624 = vsub.s32 %v3621, %v3623
        %v3625 = vrot.slane %v3574, %v3624
        %v3626 = vadd.s32 %v3621, 4294967288
        %v3627 = vlaneseq
        %v3628 = vshrl.u32 %v3627, 7
        %v3629 = vsub.s32 %v3626, %v3628
        %v3630 = vrot.slane %v3577, %v3629
        %vm3631 = vcmask 130112
        %v3632 = vsel %vm3631, %v3630, %v3625
        %v3633 = vadd.s32 %v3621, 4294967280
        %v3634 = vlaneseq
        %v3635 = vshrl.u32 %v3634, 7
        %v3636 = vsub.s32 %v3633, %v3635
        %v3637 = vrot.slane %v3580, %v3636
        %vm3638 = vcmask 195712
        %v3639 = vsel %vm3638, %v3637, %v3632
        %v3640 = vadd.s32 %v3621, 4294967272
        %v3641 = vlaneseq
        %v3642 = vshrl.u32 %v3641, 7
        %v3643 = vsub.s32 %v3640, %v3642
        %v3644 = vrot.slane %v3583, %v3643
        %vm3645 = vcmask 261312
        %v3646 = vsel %vm3645, %v3644, %v3639
        %v3647 = vadd.s32 %v3621, 4294967264
        %v3648 = vlaneseq
        %v3649 = vshrl.u32 %v3648, 7
        %v3650 = vsub.s32 %v3647, %v3649
        %v3651 = vrot.slane %v3586, %v3650
        %vm3652 = vcmask 326912
        %v3653 = vsel %vm3652, %v3651, %v3646
        %v3654 = vadd.s32 %v3621, 4294967256
        %v3655 = vlaneseq
        %v3656 = vshrl.u32 %v3655, 7
        %v3657 = vsub.s32 %v3654, %v3656
        %v3658 = vrot.slane %v3589, %v3657
        %vm3659 = vcmask 392512
        %v3660 = vsel %vm3659, %v3658, %v3653
        %v3661 = vadd.s32 %v3621, 4294967248
        %v3662 = vlaneseq
        %v3663 = vshrl.u32 %v3662, 7
        %v3664 = vsub.s32 %v3661, %v3663
        %v3665 = vrot.slane %v3592, %v3664
        %vm3666 = vcmask 458112
        %v3667 = vsel %vm3666, %v3665, %v3660
        %v3668 = vadd.s32 %v3621, 4294967240
        %v3669 = vlaneseq
        %v3670 = vshrl.u32 %v3669, 7
        %v3671 = vsub.s32 %v3668, %v3670
        %v3672 = vrot.slane %v3595, %v3671
        %vm3673 = vcmask 523712
        %v3674 = vsel %vm3673, %v3672, %v3667
        %v3675 = vadd.s32 %v3621, 4294967232
        %v3676 = vlaneseq
        %v3677 = vshrl.u32 %v3676, 7
        %v3678 = vsub.s32 %v3675, %v3677
        %v3679 = vrot.slane %v3598, %v3678
        %vm3680 = vcmask 589312
        %v3681 = vsel %vm3680, %v3679, %v3674
        %v3682 = vadd.s32 %v3621, 4294967224
        %v3683 = vlaneseq
        %v3684 = vshrl.u32 %v3683, 7
        %v3685 = vsub.s32 %v3682, %v3684
        %v3686 = vrot.slane %v3601, %v3685
        %vm3687 = vcmask 654912
        %v3688 = vsel %vm3687, %v3686, %v3681
        %v3689 = vadd.s32 %v3621, 4294967216
        %v3690 = vlaneseq
        %v3691 = vshrl.u32 %v3690, 7
        %v3692 = vsub.s32 %v3689, %v3691
        %v3693 = vrot.slane %v3604, %v3692
        %vm3694 = vcmask 720512
        %v3695 = vsel %vm3694, %v3693, %v3688
        %v3696 = vadd.s32 %v3621, 4294967208
        %v3697 = vlaneseq
        %v3698 = vshrl.u32 %v3697, 7
        %v3699 = vsub.s32 %v3696, %v3698
        %v3700 = vrot.slane %v3607, %v3699
        %vm3701 = vcmask 786112
        %v3702 = vsel %vm3701, %v3700, %v3695
        %v3703 = vadd.s32 %v3621, 4294967200
        %v3704 = vlaneseq
        %v3705 = vshrl.u32 %v3704, 7
        %v3706 = vsub.s32 %v3703, %v3705
        %v3707 = vrot.slane %v3610, %v3706
        %vm3708 = vcmask 851712
        %v3709 = vsel %vm3708, %v3707, %v3702
        %v3710 = vadd.s32 %v3621, 4294967192
        %v3711 = vlaneseq
        %v3712 = vshrl.u32 %v3711, 7
        %v3713 = vsub.s32 %v3710, %v3712
        %v3714 = vrot.slane %v3613, %v3713
        %vm3715 = vcmask 917312
        %v3716 = vsel %vm3715, %v3714, %v3709
        %v3717 = vadd.s32 %v3621, 4294967184
        %v3718 = vlaneseq
        %v3719 = vshrl.u32 %v3718, 7
        %v3720 = vsub.s32 %v3717, %v3719
        %v3721 = vrot.slane %v3616, %v3720
        %vm3722 = vcmask 982912
        %v3723 = vsel %vm3722, %v3721, %v3716
        %v3724 = vadd.s32 %v3621, 4294967176
        %v3725 = vlaneseq
        %v3726 = vshrl.u32 %v3725, 7
        %v3727 = vsub.s32 %v3724, %v3726
        %v3728 = vrot.slane %v3619, %v3727
        %vm3729 = vcmask 1048512
        %v3730 = vsel %vm3729, %v3728, %v3723
        %v3732 = vunpack.c.l.s4 1966171168
        %v3733 = vunpack.c.0.s8 %v3732
        %v3734 = vlaneseq
        %v3735 = vshrl.u32 %v3734, 7
        %v3736 = vsub.s32 %v3733, %v3735
        %v3737 = vrot.slane %v3730, %v3736
        %v3739 = vunpack.c.l.s4 1966171168
        %v3740 = vunpack.c.0.s8 %v3739
        %v3741 = vlaneseq
        %v3742 = vshrl.u32 %v3741, 7
        %v3743 = vsub.s32 %v3740, %v3742
        %v3744 = vrot.slane %v3737, %v3743
        %v3746 = vadd.f32 %v2259, %v3744
        %3747 = vst [vmem:[%s155] sm:$0x1] %v3746
        // Predicated region
        $region33: #{tpu_custom_call.1} parent=27 // pred_check
          %p3748 = pneg %p165
        $region34: #{tpu_custom_call.1} parent=27 // pred_check_branch
          %3750 = sbr.rel (%p3748) target = $region36
        $region35: #{tpu_custom_call.1} parent=27 // pred_region
          %v3751 = vld [vmem:[%s155] sm:$0x1]
          %v3752 = vmul.f32 %v3751, 0.0625
          %3753 = vst [vmem:[%s155] sm:$0x1] %v3752
        $region36: #{tpu_custom_call.1} parent=27 // pred_fallthru
          _
        %s3754 = sand.u32 %s85, 1
        %s3755 = scalar_lea.sflag [#allocation3], %s3754
        %s3756 = sand.u32 %s85, 1
        %s3757 = scalar_lea.vmem [#allocation2], %s3756
        // Predicated region
        $region37: #{tpu_custom_call.1} parent=27 // pred_check
          %p3758 = pneg %p95
        $region38: #{tpu_custom_call.1} parent=27 // pred_check_branch
          %3760 = sbr.rel (%p3758) target = $region40
        $region39: #{tpu_custom_call.1} parent=27 // pred_region
          %s3762 = ssub.s32 16, 16
          %3763 = vsyncadd %s3755, %s3762
          %s3764 = smul.addr %s20, 16
          %s3765 = scalar_lea.hbm %s2, %s3764
          %s3767 = sshll.u32 %s3757, 4
          %s3768 = int_to_ptr.vmem [resolvable:$true] %s3767
          %3770 = dma.vmem_to_hbm [thread:$0]  %s3768, 16, %s3765, %s3755
        $region40: #{tpu_custom_call.1} parent=27 // pred_fallthru
          _
      $region28: #{tpu_custom_call.1} parent=5 // pred_fallthru
        _
      %p3771 = scmp.le.s32.totalorder 2, %s11
      // Predicated region
      $region41: #{tpu_custom_call.1} parent=5 // pred_check
        %p3772 = pneg %p3771
      $region42: #{tpu_custom_call.1} parent=5 // pred_check_branch
        %3774 = sbr.rel (%p3772) target = $region44
      $region43: #{tpu_custom_call.1} parent=5 // pred_region
        %s3775 = ssub.s32 %s11, 2
        // Predicated region
        $region45: #{tpu_custom_call.1} parent=43 // pred_check
          %p3776 = pneg %p101
        $region46: #{tpu_custom_call.1} parent=43 // pred_check_branch
          %3778 = sbr.rel (%p3776) target = $region48
        $region47: #{tpu_custom_call.1} parent=43 // pred_region
          %s3779 = sand.u32 %s86, 1
          %s3780 = scalar_lea.sflag [#allocation3], %s3779
          %s3781 = sand.u32 %s86, 1
          %s3782 = scalar_lea.vmem [#allocation2], %s3781
          %3783 = dma.done %s3780, 16
        $region48: #{tpu_custom_call.1} parent=43 // pred_fallthru
          _
      $region44: #{tpu_custom_call.1} parent=5 // pred_fallthru
        _
    $region6: #{tpu_custom_call.1} parent=1 // loop_footer
      %s15 = sadd.s32 1, %s11
    $region7: #{tpu_custom_call.1} parent=1 // loop_footer_branch
      %10 = sbr.rel target = $region3
    $region8: #{tpu_custom_call.1} parent=1 // loop_exit
      _
    %3784 = vsyncpa [#allocation3], 1
    %s3785 = scalar_lea.sflag [#allocation3], 1
    %3786 = vsyncpa %s3785, 1

</llo_original>
